<compile_context>
chip_gen: v7x
topology: tpu7x:2x2x1
jax: 0.10.0
libtpu: 0.0.40
codegen_flags: <defaults>
</compile_context>

<pallas_src>
import jax
import jax.numpy as jnp
from jax.experimental import pallas as pl
from jax.experimental.pallas import tpu as pltpu

HIDDEN = 128      # LSTM hidden size
EMBED = 30        # embedding dim
N_VOCAB = 200     # embedding vocab
N_CLASSES = 18    # linear2 output
EXT_DIM = 1000    # feature-extractor output dim (ImageNet-style logits)
BN_EPS = 1e-5

TK_CAP = 8192     # max K tile of the streamed image weight (lane-aligned)
N_SPLIT = 2       # leading "parallel" axis: 2 TCs on v7x, sequential elsewhere


# ----------------------------- Pallas kernel ------------------------------- #

def vgg_lstm_ws_kernel(x_ref, wih0_ref, whh0_ref, b0_ref, w1cat_ref, b1_ref,
                       img_ref, wimg_ref, bimg_ref, out_ref, acc_scr):
    H = HIDDEN
    p = pl.program_id(0)           # core-split index ("parallel")
    k = pl.program_id(1)           # K-tile index of this core's weight stream

    # ------------------- per-core accumulator init -------------------------- #
    @pl.when(k == 0)
    def _():
        acc_scr[...] = jnp.zeros_like(acc_scr)

    # ---------------- LSTM: runs once, on core 0's first step --------------- #
    @pl.when(jnp.logical_and(k == 0, p == 0))
    def _():
        TB = x_ref.shape[0]
        B = acc_scr.shape[0]
        T = TB // B

        # Hoisted layer-0 input projection: one lane-dense (T*B, E) @ (E, 4H)
        # matmul instead of T tiny matmuls inside the recurrence.
        xp = (jnp.dot(x_ref[...], wih0_ref[...],
                      preferred_element_type=jnp.float32) + b0_ref[...])   # (T*B, 4H)
        whh0 = whh0_ref[...]
        w1cat = w1cat_ref[...]          # [wih1; whh1] fused -> (2H, 4H)
        bl1 = b1_ref[...]

        def gates(g, c_prev):
            # PyTorch gate order: i, f, g, o
            i = jax.nn.sigmoid(g[:, 0 * H:1 * H])
            f = jax.nn.sigmoid(g[:, 1 * H:2 * H])
            gg = jnp.tanh(g[:, 2 * H:3 * H])
            o = jax.nn.sigmoid(g[:, 3 * H:4 * H])
            c_new = f * c_prev + i * gg
            return o * jnp.tanh(c_new), c_new

        h1 = jnp.zeros((B, H), jnp.float32)
        c1 = jnp.zeros((B, H), jnp.float32)
        h2 = jnp.zeros((B, H), jnp.float32)
        c2 = jnp.zeros((B, H), jnp.float32)

        # Fully unrolled: T is static & small (8). State stays in vregs and the
        # scheduler interleaves layer-1 of step t with layer-0 of step t+1.
        # (If T ever grows beyond ~16, switch to lax.fori_loop(..., unroll=2)
        #  carrying (h1,c1,h2,c2) to bound vreg live ranges.)
        for t in range(T):
            g0 = xp[t * B:(t + 1) * B, :] + jnp.dot(
                h1, whh0, preferred_element_type=jnp.float32)
            h1, c1 = gates(g0, c1)
            g1 = jnp.dot(jnp.concatenate([h1, h2], axis=1), w1cat,
                         preferred_element_type=jnp.float32) + bl1
            h2, c2 = gates(g1, c2)

        # Seed core 0's accumulator: 0.5*hidden[-1] + 0.5*(image-path bias).
        acc_scr[...] = bimg_ref[...] + 0.5 * h2

    # ------- image path: K-tiled bf16 weight streaming, f32 accumulate ------ #
    acc_scr[...] += jnp.dot(img_ref[...], wimg_ref[...],
                            preferred_element_type=jnp.float32)

    # --------------- write this core's (B, 128) partial result -------------- #
    @pl.when(k == pl.num_programs(1) - 1)
    def _():
        out_ref[0] = acc_scr[...]


# ------------------------------ tiling helper ------------------------------ #

def _pick_k_tiling(chw, n_split=N_SPLIT, cap=TK_CAP):
    """Largest lane-aligned (multiple-of-128) K tile such that the weight
    stream splits evenly into n_split * nk tiles. Falls back to a single
    untiled block on a single core-slab if chw has no suitable divisor."""
    start = (min(cap, chw) // 128) * 128
    for tk in range(start, 0, -128):
        if chw % (n_split * tk) == 0:
            return n_split, tk, chw // (n_split * tk)
    return 1, chw, 1


def _wimg_block_spec(tk, index_map, depth):
    """Streamed-weight BlockSpec with deeper prefetch so the weight DMA keeps
    flowing under the long LSTM step. Falls back to default double-buffering
    if this JAX version's BlockSpec does not accept pipeline_mode."""
    try:
        return pl.BlockSpec((tk, HIDDEN), index_map,
                            pipeline_mode=pl.Buffered(depth))
    except TypeError:
        return pl.BlockSpec((tk, HIDDEN), index_map)


# -------------------------- one-time parameter fold ------------------------ #

def prepare_params(params):
    """Fold eval-mode constants ONCE (outside the per-call forward):
      * wimg = 0.5 * wvgg @ wext   (pre-composed image-path weight, bf16)
      * bimg = 0.5 * (bvgg @ wext + bext)
      * BatchNorm1d (eval, after ReLU) folded exactly into linear2
      * LSTM layer-1 input/recurrent weights fused into one (2H, 4H) operand
    Call this once and reuse the result for every forward call."""
    # TODO(synk): hyp_params.feature_extractor is an external module (e.g. a
    # torchvision VGG producing 1000 logits); it is stood in by flatten+linear.
    # Pre-composing wvgg @ wext is exact only while that stand-in is linear.
    wimg = (0.5 * (params["wvgg"] @ params["wext"])).astype(jnp.bfloat16)   # (chw, 128)
    bimg = 0.5 * (params["bvgg"] @ params["wext"] + params["bext"])         # (1, 128)

    bn_scale = params["bn_gamma"] / jnp.sqrt(params["bn_var"] + BN_EPS)     # (64,)
    bn_shift = params["bn_beta"] - params["bn_mean"] * bn_scale             # (64,)
    w2f = params["w2"] * bn_scale[:, None]                                  # (64, 18)
    b2f = params["b2"] + bn_shift[None, :] @ params["w2"]                   # (1, 18)

    w1cat = jnp.concatenate([params["wih1"], params["whh1"]], axis=0)       # (2H, 4H)

    return {
        "embed": params["embed"],
        "wih0": params["wih0"], "whh0": params["whh0"], "b0": params["b0"],
        "w1cat": w1cat, "b1": params["b1"],
        "wimg": wimg, "bimg": bimg,
        "w1": params["w1"], "b1_lin": params["b1_lin"],
        "w2f": w2f, "b2f": b2f,
    }


# ------------------------------- forward ----------------------------------- #

def vgg_lstm_ws_forward(prepared, text_encoded, images, ratings):
    # `ratings` is accepted to match the PyTorch forward signature but unused.
    del ratings
    B, T = text_encoded.shape

    # glue: embedding gather + time-major flatten (tiny; done in XLA)
    emb = prepared["embed"][text_encoded]                                   # (B, T, E)
    x2d = jnp.transpose(emb, (1, 0, 2)).reshape(T * B, EMBED).astype(jnp.float32)

    img_flat = images.reshape(B, -1)                                        # NCHW flatten
    chw = img_flat.shape[1]
    img_bf16 = img_flat.astype(jnp.bfloat16)

    # Grid: leading "parallel" core-split axis (2x HBM bandwidth on v7x's two
    # TensorCores; runs sequentially on single-core v5e/v6e), trailing
    # "arbitrary" K-tile axis with few large lane-aligned tiles.
    n_split, tk, nk2 = _pick_k_tiling(chw)
    depth = 3 if nk2 >= 3 else 2

    operands = (x2d, prepared["wih0"], prepared["whh0"], prepared["b0"],
                prepared["w1cat"], prepared["b1"], img_bf16,
                prepared["wimg"], prepared["bimg"])

    flops = (2 * B * chw * HIDDEN                       # image matmul (pre-composed)
             + 2 * T * B * EMBED * 4 * HIDDEN           # hoisted input projection
             + 2 * T * B * HIDDEN * 4 * HIDDEN          # layer-0 recurrence
             + 2 * T * B * 2 * HIDDEN * 4 * HIDDEN)     # layer-1 (fused)
    transcendentals = T * B * 2 * 5 * HIDDEN
    bytes_accessed = int(sum(x.size * x.dtype.itemsize for x in operands)
                         + n_split * B * HIDDEN * 4)

    partials = pl.pallas_call(
        vgg_lstm_ws_kernel,
        out_shape=jax.ShapeDtypeStruct((n_split, B, HIDDEN), jnp.float32),
        grid_spec=pltpu.PrefetchScalarGridSpec(
            num_scalar_prefetch=0,
            grid=(n_split, nk2),
            in_specs=[
                pl.BlockSpec((T * B, EMBED), lambda p, k: (0, 0)),            # x2d
                pl.BlockSpec((EMBED, 4 * HIDDEN), lambda p, k: (0, 0)),       # wih0
                pl.BlockSpec((HIDDEN, 4 * HIDDEN), lambda p, k: (0, 0)),      # whh0
                pl.BlockSpec((1, 4 * HIDDEN), lambda p, k: (0, 0)),           # b0
                pl.BlockSpec((2 * HIDDEN, 4 * HIDDEN), lambda p, k: (0, 0)),  # [wih1;whh1]
                pl.BlockSpec((1, 4 * HIDDEN), lambda p, k: (0, 0)),           # lstm b1
                pl.BlockSpec((B, tk), lambda p, k: (0, p * nk2 + k)),         # img tile
                _wimg_block_spec(tk, lambda p, k: (p * nk2 + k, 0), depth),   # Wimg tile
                pl.BlockSpec((1, HIDDEN), lambda p, k: (0, 0)),               # bimg
            ],
            out_specs=pl.BlockSpec((1, B, HIDDEN), lambda p, k: (p, 0, 0)),
            scratch_shapes=[pltpu.VMEM((B, HIDDEN), jnp.float32)],   # f32 accumulator
        ),
        compiler_params=pltpu.CompilerParams(
            dimension_semantics=("parallel", "arbitrary")),
        cost_estimate=pl.CostEstimate(flops=flops,
                                      transcendentals=transcendentals,
                                      bytes_accessed=bytes_accessed),
    )(*operands)

    # Tiny head on the combined partials (XLA): sum of per-core partials equals
    # hidden[-1]*0.5 + linear_ext(ext(images))*0.5. Dropout(0.2) -> identity
    # (eval); BatchNorm1d (eval, after ReLU) is folded into w2f/b2f.
    outs = jnp.sum(partials, axis=0)                                        # (B, 128)
    z = jnp.maximum(outs @ prepared["w1"] + prepared["b1_lin"], 0.0)        # linear1+ReLU
    return z @ prepared["w2f"] + prepared["b2f"]                            # BN-folded linear2


# --------------------------- params / reference ---------------------------- #

def init_params(key, chw):
    ks = jax.random.split(key, 21)

    def u(k, shape, fan_in):
        bound = 1.0 / jnp.sqrt(jnp.float32(fan_in))
        return jax.random.uniform(k, shape, jnp.float32, -bound, bound)

    p = {}
    p["embed"] = jax.random.normal(ks[0], (N_VOCAB, EMBED), jnp.float32)
    # LSTM layer 0 (in=30) and layer 1 (in=128); stored transposed (in, 4H).
    p["wih0"] = u(ks[1], (EMBED, 4 * HIDDEN), HIDDEN)
    p["whh0"] = u(ks[2], (HIDDEN, 4 * HIDDEN), HIDDEN)
    p["b0"] = u(ks[3], (1, 4 * HIDDEN), HIDDEN) + u(ks[4], (1, 4 * HIDDEN), HIDDEN)
    p["wih1"] = u(ks[5], (HIDDEN, 4 * HIDDEN), HIDDEN)
    p["whh1"] = u(ks[6], (HIDDEN, 4 * HIDDEN), HIDDEN)
    p["b1"] = u(ks[7], (1, 4 * HIDDEN), HIDDEN) + u(ks[8], (1, 4 * HIDDEN), HIDDEN)
    # stand-in feature extractor (flatten + linear -> 1000)
    p["wvgg"] = u(ks[9], (chw, EXT_DIM), chw)
    p["bvgg"] = u(ks[10], (1, EXT_DIM), chw)
    # linear_ext: 1000 -> 128
    p["wext"] = u(ks[11], (EXT_DIM, HIDDEN), EXT_DIM)
    p["bext"] = u(ks[12], (1, HIDDEN), EXT_DIM)
    # linear1: 128 -> 64, linear2: 64 -> 18
    p["w1"] = u(ks[13], (HIDDEN, 64), HIDDEN)
    p["b1_lin"] = u(ks[14], (1, 64), HIDDEN)
    p["w2"] = u(ks[15], (64, N_CLASSES), 64)
    p["b2"] = u(ks[16], (1, N_CLASSES), 64)
    # BatchNorm1d(64) with non-trivial running stats so the BN fold is exercised.
    p["bn_gamma"] = jax.random.uniform(ks[17], (64,), jnp.float32, 0.5, 1.5)
    p["bn_beta"] = 0.1 * jax.random.normal(ks[18], (64,), jnp.float32)
    p["bn_mean"] = 0.1 * jax.random.normal(ks[19], (64,), jnp.float32)
    p["bn_var"] = jax.random.uniform(ks[20], (64,), jnp.float32, 0.5, 1.5)
    return p


def reference_forward(params, text_encoded, images, ratings):
    del ratings
    B, T = text_encoded.shape
    H = HIDDEN
    emb = params["embed"][text_encoded]

    def cell(x_t, h, c, wih, whh, b):
        g = x_t @ wih + h @ whh + b
        i = jax.nn.sigmoid(g[:, :H])
        f = jax.nn.sigmoid(g[:, H:2 * H])
        gg = jnp.tanh(g[:, 2 * H:3 * H])
        o = jax.nn.sigmoid(g[:, 3 * H:])
        c = f * c + i * gg
        return o * jnp.tanh(c), c

    h1 = jnp.zeros((B, H)); c1 = jnp.zeros((B, H))
    h2 = jnp.zeros((B, H)); c2 = jnp.zeros((B, H))
    for t in range(T):
        h1, c1 = cell(emb[:, t, :], h1, c1, params["wih0"], params["whh0"], params["b0"])
        h2, c2 = cell(h1, h2, c2, params["wih1"], params["whh1"], params["b1"])

    img_flat = images.reshape(B, -1)
    feat = img_flat @ params["wvgg"] + params["bvgg"]
    img128 = feat @ params["wext"] + params["bext"]
    outs = 0.5 * h2 + 0.5 * img128
    z = jnp.maximum(outs @ params["w1"] + params["b1_lin"], 0.0)
    scale = params["bn_gamma"] / jnp.sqrt(params["bn_var"] + BN_EPS)
    shift = params["bn_beta"] - params["bn_mean"] * scale
    z = z * scale + shift
    return z @ params["w2"] + params["b2"]


if __name__ == "__main__":
    key = jax.random.PRNGKey(0)
    B, T, C, Himg, Wimg = 2, 8, 4, 16, 16
    k_txt, k_img, k_rat, k_par = jax.random.split(key, 4)

    text_encoded = jax.random.randint(k_txt, (B, T), 0, N_VOCAB)
    images = jax.random.normal(k_img, (B, C, Himg, Wimg), jnp.float32)   # NCHW
    ratings = jax.random.normal(k_rat, (B, 1), jnp.float32)              # unused by forward

    params = init_params(k_par, C * Himg * Wimg)

    # One-time fold (kept OUT of the per-call forward), then the jitted forward.
    prepared = prepare_params(params)
    prepared = jax.tree_util.tree_map(jax.block_until_ready, prepared)

    fwd = jax.jit(vgg_lstm_ws_forward)
    out = jax.block_until_ready(fwd(prepared, text_encoded, images, ratings))
    ref = reference_forward(params, text_encoded, images, ratings)

    assert out.shape == (B, N_CLASSES), out.shape
    assert bool(jnp.all(jnp.isfinite(out)))
    assert bool(jnp.allclose(out, ref, atol=1e-1, rtol=1e-1))
    print("KERNEL_OK")
</pallas_src>

<mosaic_0001>
module attributes {stable_mosaic.version = 11 : i64} {
  func.func @vgg_lstm_ws_kernel(%arg0: i32, %arg1: i32, %arg2: memref<16x30xf32, #tpu.memory_space<vmem>>, %arg3: memref<30x512xf32, #tpu.memory_space<vmem>>, %arg4: memref<128x512xf32, #tpu.memory_space<vmem>>, %arg5: memref<1x512xf32, #tpu.memory_space<vmem>>, %arg6: memref<256x512xf32, #tpu.memory_space<vmem>>, %arg7: memref<1x512xf32, #tpu.memory_space<vmem>>, %arg8: memref<2x512xbf16, #tpu.memory_space<vmem>>, %arg9: memref<512x128xbf16, #tpu.memory_space<vmem>>, %arg10: memref<1x128xf32, #tpu.memory_space<vmem>>, %arg11: memref<1x2x128xf32, #tpu.memory_space<vmem>>, %arg12: memref<2x128xf32, #tpu.memory_space<vmem>>) attributes {dimension_semantics = [#tpu.dimension_semantics<parallel>, #tpu.dimension_semantics<arbitrary>], iteration_bounds = array<i64: 2, 1>, scalar_prefetch = 0 : i64, scratch_operands = 1 : i64, tpu.core_type = #tpu.core_type<tc>, window_params = [{pipeline_mode = #tpu.pipeline_mode<synchronous>, transform_indices = @transform_0, window_bounds = array<i64: 16, 30>}, {pipeline_mode = #tpu.pipeline_mode<synchronous>, transform_indices = @transform_1, window_bounds = array<i64: 30, 512>}, {pipeline_mode = #tpu.pipeline_mode<synchronous>, transform_indices = @transform_2, window_bounds = array<i64: 128, 512>}, {pipeline_mode = #tpu.pipeline_mode<synchronous>, transform_indices = @transform_3, window_bounds = array<i64: 1, 512>}, {pipeline_mode = #tpu.pipeline_mode<synchronous>, transform_indices = @transform_4, window_bounds = array<i64: 256, 512>}, {pipeline_mode = #tpu.pipeline_mode<synchronous>, transform_indices = @transform_5, window_bounds = array<i64: 1, 512>}, {transform_indices = @transform_6, window_bounds = array<i64: 2, 512>}, {pipeline_mode = #tpu.pipeline_mode<double_buffered>, transform_indices = @transform_7, window_bounds = array<i64: 512, 128>}, {pipeline_mode = #tpu.pipeline_mode<synchronous>, transform_indices = @transform_8, window_bounds = array<i64: 1, 128>}, {transform_indices = @transform_9, window_bounds = array<i64: 1, 2, 128>}]} {
    %c0_i32 = arith.constant 0 : i32
    %0 = arith.cmpi eq, %arg1, %c0_i32 : i32
    %1 = arith.extui %0 : i1 to i32
    %c0_i32_0 = arith.constant 0 : i32
    %2 = arith.cmpi ne, %1, %c0_i32_0 : i32
    scf.if %2 {
      %cst_13 = arith.constant 0.000000e+00 : f32
      %17 = vector.broadcast %cst_13 : f32 to vector<2x128xf32>
      %c0_14 = arith.constant 0 : index
      %c0_15 = arith.constant 0 : index
      %18 = vector.load %arg12[%c0_14, %c0_15] : memref<2x128xf32, #tpu.memory_space<vmem>>, vector<2x128xf32>
      tpu.vector_store %arg12[%c0_14, %c0_15], %17 {strides = array<i32>} : memref<2x128xf32, #tpu.memory_space<vmem>>, vector<2x128xf32>,
    } else {
    }
    %c0_i32_1 = arith.constant 0 : i32
    %3 = arith.cmpi eq, %arg1, %c0_i32_1 : i32
    %c0_i32_2 = arith.constant 0 : i32
    %4 = arith.cmpi eq, %arg0, %c0_i32_2 : i32
    %5 = arith.andi %3, %4 : i1
    %6 = arith.extui %5 : i1 to i32
    %c0_i32_3 = arith.constant 0 : i32
    %7 = arith.cmpi ne, %6, %c0_i32_3 : i32
    scf.if %7 {
      %c0_13 = arith.constant 0 : index
      %c0_14 = arith.constant 0 : index
      %17 = vector.load %arg2[%c0_13, %c0_14] : memref<16x30xf32, #tpu.memory_space<vmem>>, vector<16x30xf32>
      %c0_15 = arith.constant 0 : index
      %c0_16 = arith.constant 0 : index
      %18 = vector.load %arg3[%c0_15, %c0_16] : memref<30x512xf32, #tpu.memory_space<vmem>>, vector<30x512xf32>
      %cst_17 = arith.constant dense<0.000000e+00> : vector<16x512xf32>
      %19 = tpu.matmul %17, %18, %cst_17 {dimension_numbers = #tpu.dot_dimension_numbers<[1], [0], [0], [1], [0, 0, 1, 1], [], []>} : vector<16x30xf32>, vector<30x512xf32>, vector<16x512xf32> -> vector<16x512xf32>
      %c0_18 = arith.constant 0 : index
      %c0_19 = arith.constant 0 : index
      %20 = vector.load %arg5[%c0_18, %c0_19] : memref<1x512xf32, #tpu.memory_space<vmem>>, vector<1x512xf32>
      %21 = vector.broadcast %20 : vector<1x512xf32> to vector<16x512xf32>
      %22 = arith.addf %19, %21 : vector<16x512xf32>
      %c0_20 = arith.constant 0 : index
      %c0_21 = arith.constant 0 : index
      %23 = vector.load %arg4[%c0_20, %c0_21] : memref<128x512xf32, #tpu.memory_space<vmem>>, vector<128x512xf32>
      %c0_22 = arith.constant 0 : index
      %c0_23 = arith.constant 0 : index
      %24 = vector.load %arg6[%c0_22, %c0_23] : memref<256x512xf32, #tpu.memory_space<vmem>>, vector<256x512xf32>
      %c0_24 = arith.constant 0 : index
      %c0_25 = arith.constant 0 : index
      %25 = vector.load %arg7[%c0_24, %c0_25] : memref<1x512xf32, #tpu.memory_space<vmem>>, vector<1x512xf32>
      %cst_26 = arith.constant 0.000000e+00 : f32
      %26 = vector.broadcast %cst_26 : f32 to vector<2x128xf32>
      %cst_27 = arith.constant 0.000000e+00 : f32
      %27 = vector.broadcast %cst_27 : f32 to vector<2x128xf32>
      %cst_28 = arith.constant 0.000000e+00 : f32
      %28 = vector.broadcast %cst_28 : f32 to vector<2x128xf32>
      %cst_29 = arith.constant 0.000000e+00 : f32
      %29 = vector.broadcast %cst_29 : f32 to vector<2x128xf32>
      %30 = vector.extract_strided_slice %22 {offsets = [0, 0], sizes = [2, 512], strides = [1, 1]} : vector<16x512xf32> to vector<2x512xf32>
      %cst_30 = arith.constant dense<0.000000e+00> : vector<2x512xf32>
      %31 = tpu.matmul %26, %23, %cst_30 {dimension_numbers = #tpu.dot_dimension_numbers<[1], [0], [0], [1], [0, 0, 1, 1], [], []>} : vector<2x128xf32>, vector<128x512xf32>, vector<2x512xf32> -> vector<2x512xf32>
      %32 = arith.addf %30, %31 : vector<2x512xf32>
      %33 = vector.extract_strided_slice %32 {offsets = [0, 0], sizes = [2, 128], strides = [1, 1]} : vector<2x512xf32> to vector<2x128xf32>
      %34 = arith.negf %33 : vector<2x128xf32>
      %35 = math.exp %34 : vector<2x128xf32>
      %cst_31 = arith.constant 1.000000e+00 : f32
      %36 = vector.broadcast %cst_31 : f32 to vector<2x128xf32>
      %37 = arith.addf %36, %35 : vector<2x128xf32>
      %38 = arith.divf %36, %37 : vector<2x128xf32>
      %39 = vector.extract_strided_slice %32 {offsets = [0, 128], sizes = [2, 128], strides = [1, 1]} : vector<2x512xf32> to vector<2x128xf32>
      %40 = arith.negf %39 : vector<2x128xf32>
      %41 = math.exp %40 : vector<2x128xf32>
      %cst_32 = arith.constant 1.000000e+00 : f32
      %42 = vector.broadcast %cst_32 : f32 to vector<2x128xf32>
      %43 = arith.addf %42, %41 : vector<2x128xf32>
      %44 = arith.divf %42, %43 : vector<2x128xf32>
      %45 = vector.extract_strided_slice %32 {offsets = [0, 256], sizes = [2, 128], strides = [1, 1]} : vector<2x512xf32> to vector<2x128xf32>
      %46 = math.tanh %45 : vector<2x128xf32>
      %47 = vector.extract_strided_slice %32 {offsets = [0, 384], sizes = [2, 128], strides = [1, 1]} : vector<2x512xf32> to vector<2x128xf32>
      %48 = arith.negf %47 : vector<2x128xf32>
      %49 = math.exp %48 : vector<2x128xf32>
      %cst_33 = arith.constant 1.000000e+00 : f32
      %50 = vector.broadcast %cst_33 : f32 to vector<2x128xf32>
      %51 = arith.addf %50, %49 : vector<2x128xf32>
      %52 = arith.divf %50, %51 : vector<2x128xf32>
      %53 = arith.mulf %44, %27 : vector<2x128xf32>
      %54 = arith.mulf %38, %46 : vector<2x128xf32>
      %55 = arith.addf %53, %54 : vector<2x128xf32>
      %56 = math.tanh %55 : vector<2x128xf32>
      %57 = arith.mulf %52, %56 : vector<2x128xf32>
      %58 = tpu.concatenate %57, %28 in 1 : vector<2x128xf32>, vector<2x128xf32> -> vector<2x256xf32>
      %cst_34 = arith.constant dense<0.000000e+00> : vector<2x512xf32>
      %59 = tpu.matmul %58, %24, %cst_34 {dimension_numbers = #tpu.dot_dimension_numbers<[1], [0], [0], [1], [0, 0, 1, 1], [], []>} : vector<2x256xf32>, vector<256x512xf32>, vector<2x512xf32> -> vector<2x512xf32>
      %60 = vector.broadcast %25 : vector<1x512xf32> to vector<2x512xf32>
      %61 = arith.addf %59, %60 : vector<2x512xf32>
      %62 = vector.extract_strided_slice %61 {offsets = [0, 0], sizes = [2, 128], strides = [1, 1]} : vector<2x512xf32> to vector<2x128xf32>
      %63 = arith.negf %62 : vector<2x128xf32>
      %64 = math.exp %63 : vector<2x128xf32>
      %cst_35 = arith.constant 1.000000e+00 : f32
      %65 = vector.broadcast %cst_35 : f32 to vector<2x128xf32>
      %66 = arith.addf %65, %64 : vector<2x128xf32>
      %67 = arith.divf %65, %66 : vector<2x128xf32>
      %68 = vector.extract_strided_slice %61 {offsets = [0, 128], sizes = [2, 128], strides = [1, 1]} : vector<2x512xf32> to vector<2x128xf32>
      %69 = arith.negf %68 : vector<2x128xf32>
      %70 = math.exp %69 : vector<2x128xf32>
      %cst_36 = arith.constant 1.000000e+00 : f32
      %71 = vector.broadcast %cst_36 : f32 to vector<2x128xf32>
      %72 = arith.addf %71, %70 : vector<2x128xf32>
      %73 = arith.divf %71, %72 : vector<2x128xf32>
      %74 = vector.extract_strided_slice %61 {offsets = [0, 256], sizes = [2, 128], strides = [1, 1]} : vector<2x512xf32> to vector<2x128xf32>
      %75 = math.tanh %74 : vector<2x128xf32>
      %76 = vector.extract_strided_slice %61 {offsets = [0, 384], sizes = [2, 128], strides = [1, 1]} : vector<2x512xf32> to vector<2x128xf32>
      %77 = arith.negf %76 : vector<2x128xf32>
      %78 = math.exp %77 : vector<2x128xf32>
      %cst_37 = arith.constant 1.000000e+00 : f32
      %79 = vector.broadcast %cst_37 : f32 to vector<2x128xf32>
      %80 = arith.addf %79, %78 : vector<2x128xf32>
      %81 = arith.divf %79, %80 : vector<2x128xf32>
      %82 = arith.mulf %73, %29 : vector<2x128xf32>
      %83 = arith.mulf %67, %75 : vector<2x128xf32>
      %84 = arith.addf %82, %83 : vector<2x128xf32>
      %85 = math.tanh %84 : vector<2x128xf32>
      %86 = arith.mulf %81, %85 : vector<2x128xf32>
      %87 = vector.extract_strided_slice %22 {offsets = [2, 0], sizes = [2, 512], strides = [1, 1]} : vector<16x512xf32> to vector<2x512xf32>
      %cst_38 = arith.constant dense<0.000000e+00> : vector<2x512xf32>
      %88 = tpu.matmul %57, %23, %cst_38 {dimension_numbers = #tpu.dot_dimension_numbers<[1], [0], [0], [1], [0, 0, 1, 1], [], []>} : vector<2x128xf32>, vector<128x512xf32>, vector<2x512xf32> -> vector<2x512xf32>
      %89 = arith.addf %87, %88 : vector<2x512xf32>
      %90 = vector.extract_strided_slice %89 {offsets = [0, 0], sizes = [2, 128], strides = [1, 1]} : vector<2x512xf32> to vector<2x128xf32>
      %91 = arith.negf %90 : vector<2x128xf32>
      %92 = math.exp %91 : vector<2x128xf32>
      %cst_39 = arith.constant 1.000000e+00 : f32
      %93 = vector.broadcast %cst_39 : f32 to vector<2x128xf32>
      %94 = arith.addf %93, %92 : vector<2x128xf32>
      %95 = arith.divf %93, %94 : vector<2x128xf32>
      %96 = vector.extract_strided_slice %89 {offsets = [0, 128], sizes = [2, 128], strides = [1, 1]} : vector<2x512xf32> to vector<2x128xf32>
      %97 = arith.negf %96 : vector<2x128xf32>
      %98 = math.exp %97 : vector<2x128xf32>
      %cst_40 = arith.constant 1.000000e+00 : f32
      %99 = vector.broadcast %cst_40 : f32 to vector<2x128xf32>
      %100 = arith.addf %99, %98 : vector<2x128xf32>
      %101 = arith.divf %99, %100 : vector<2x128xf32>
      %102 = vector.extract_strided_slice %89 {offsets = [0, 256], sizes = [2, 128], strides = [1, 1]} : vector<2x512xf32> to vector<2x128xf32>
      %103 = math.tanh %102 : vector<2x128xf32>
      %104 = vector.extract_strided_slice %89 {offsets = [0, 384], sizes = [2, 128], strides = [1, 1]} : vector<2x512xf32> to vector<2x128xf32>
      %105 = arith.negf %104 : vector<2x128xf32>
      %106 = math.exp %105 : vector<2x128xf32>
      %cst_41 = arith.constant 1.000000e+00 : f32
      %107 = vector.broadcast %cst_41 : f32 to vector<2x128xf32>
      %108 = arith.addf %107, %106 : vector<2x128xf32>
      %109 = arith.divf %107, %108 : vector<2x128xf32>
      %110 = arith.mulf %101, %55 : vector<2x128xf32>
      %111 = arith.mulf %95, %103 : vector<2x128xf32>
      %112 = arith.addf %110, %111 : vector<2x128xf32>
      %113 = math.tanh %112 : vector<2x128xf32>
      %114 = arith.mulf %109, %113 : vector<2x128xf32>
      %115 = tpu.concatenate %114, %86 in 1 : vector<2x128xf32>, vector<2x128xf32> -> vector<2x256xf32>
      %cst_42 = arith.constant dense<0.000000e+00> : vector<2x512xf32>
      %116 = tpu.matmul %115, %24, %cst_42 {dimension_numbers = #tpu.dot_dimension_numbers<[1], [0], [0], [1], [0, 0, 1, 1], [], []>} : vector<2x256xf32>, vector<256x512xf32>, vector<2x512xf32> -> vector<2x512xf32>
      %117 = vector.broadcast %25 : vector<1x512xf32> to vector<2x512xf32>
      %118 = arith.addf %116, %117 : vector<2x512xf32>
      %119 = vector.extract_strided_slice %118 {offsets = [0, 0], sizes = [2, 128], strides = [1, 1]} : vector<2x512xf32> to vector<2x128xf32>
      %120 = arith.negf %119 : vector<2x128xf32>
      %121 = math.exp %120 : vector<2x128xf32>
      %cst_43 = arith.constant 1.000000e+00 : f32
      %122 = vector.broadcast %cst_43 : f32 to vector<2x128xf32>
      %123 = arith.addf %122, %121 : vector<2x128xf32>
      %124 = arith.divf %122, %123 : vector<2x128xf32>
      %125 = vector.extract_strided_slice %118 {offsets = [0, 128], sizes = [2, 128], strides = [1, 1]} : vector<2x512xf32> to vector<2x128xf32>
      %126 = arith.negf %125 : vector<2x128xf32>
      %127 = math.exp %126 : vector<2x128xf32>
      %cst_44 = arith.constant 1.000000e+00 : f32
      %128 = vector.broadcast %cst_44 : f32 to vector<2x128xf32>
      %129 = arith.addf %128, %127 : vector<2x128xf32>
      %130 = arith.divf %128, %129 : vector<2x128xf32>
      %131 = vector.extract_strided_slice %118 {offsets = [0, 256], sizes = [2, 128], strides = [1, 1]} : vector<2x512xf32> to vector<2x128xf32>
      %132 = math.tanh %131 : vector<2x128xf32>
      %133 = vector.extract_strided_slice %118 {offsets = [0, 384], sizes = [2, 128], strides = [1, 1]} : vector<2x512xf32> to vector<2x128xf32>
      %134 = arith.negf %133 : vector<2x128xf32>
      %135 = math.exp %134 : vector<2x128xf32>
      %cst_45 = arith.constant 1.000000e+00 : f32
      %136 = vector.broadcast %cst_45 : f32 to vector<2x128xf32>
      %137 = arith.addf %136, %135 : vector<2x128xf32>
      %138 = arith.divf %136, %137 : vector<2x128xf32>
      %139 = arith.mulf %130, %84 : vector<2x128xf32>
      %140 = arith.mulf %124, %132 : vector<2x128xf32>
      %141 = arith.addf %139, %140 : vector<2x128xf32>
      %142 = math.tanh %141 : vector<2x128xf32>
      %143 = arith.mulf %138, %142 : vector<2x128xf32>
      %144 = vector.extract_strided_slice %22 {offsets = [4, 0], sizes = [2, 512], strides = [1, 1]} : vector<16x512xf32> to vector<2x512xf32>
      %cst_46 = arith.constant dense<0.000000e+00> : vector<2x512xf32>
      %145 = tpu.matmul %114, %23, %cst_46 {dimension_numbers = #tpu.dot_dimension_numbers<[1], [0], [0], [1], [0, 0, 1, 1], [], []>} : vector<2x128xf32>, vector<128x512xf32>, vector<2x512xf32> -> vector<2x512xf32>
      %146 = arith.addf %144, %145 : vector<2x512xf32>
      %147 = vector.extract_strided_slice %146 {offsets = [0, 0], sizes = [2, 128], strides = [1, 1]} : vector<2x512xf32> to vector<2x128xf32>
      %148 = arith.negf %147 : vector<2x128xf32>
      %149 = math.exp %148 : vector<2x128xf32>
      %cst_47 = arith.constant 1.000000e+00 : f32
      %150 = vector.broadcast %cst_47 : f32 to vector<2x128xf32>
      %151 = arith.addf %150, %149 : vector<2x128xf32>
      %152 = arith.divf %150, %151 : vector<2x128xf32>
      %153 = vector.extract_strided_slice %146 {offsets = [0, 128], sizes = [2, 128], strides = [1, 1]} : vector<2x512xf32> to vector<2x128xf32>
      %154 = arith.negf %153 : vector<2x128xf32>
      %155 = math.exp %154 : vector<2x128xf32>
      %cst_48 = arith.constant 1.000000e+00 : f32
      %156 = vector.broadcast %cst_48 : f32 to vector<2x128xf32>
      %157 = arith.addf %156, %155 : vector<2x128xf32>
      %158 = arith.divf %156, %157 : vector<2x128xf32>
      %159 = vector.extract_strided_slice %146 {offsets = [0, 256], sizes = [2, 128], strides = [1, 1]} : vector<2x512xf32> to vector<2x128xf32>
      %160 = math.tanh %159 : vector<2x128xf32>
      %161 = vector.extract_strided_slice %146 {offsets = [0, 384], sizes = [2, 128], strides = [1, 1]} : vector<2x512xf32> to vector<2x128xf32>
      %162 = arith.negf %161 : vector<2x128xf32>
      %163 = math.exp %162 : vector<2x128xf32>
      %cst_49 = arith.constant 1.000000e+00 : f32
      %164 = vector.broadcast %cst_49 : f32 to vector<2x128xf32>
      %165 = arith.addf %164, %163 : vector<2x128xf32>
      %166 = arith.divf %164, %165 : vector<2x128xf32>
      %167 = arith.mulf %158, %112 : vector<2x128xf32>
      %168 = arith.mulf %152, %160 : vector<2x128xf32>
      %169 = arith.addf %167, %168 : vector<2x128xf32>
      %170 = math.tanh %169 : vector<2x128xf32>
      %171 = arith.mulf %166, %170 : vector<2x128xf32>
      %172 = tpu.concatenate %171, %143 in 1 : vector<2x128xf32>, vector<2x128xf32> -> vector<2x256xf32>
      %cst_50 = arith.constant dense<0.000000e+00> : vector<2x512xf32>
      %173 = tpu.matmul %172, %24, %cst_50 {dimension_numbers = #tpu.dot_dimension_numbers<[1], [0], [0], [1], [0, 0, 1, 1], [], []>} : vector<2x256xf32>, vector<256x512xf32>, vector<2x512xf32> -> vector<2x512xf32>
      %174 = vector.broadcast %25 : vector<1x512xf32> to vector<2x512xf32>
      %175 = arith.addf %173, %174 : vector<2x512xf32>
      %176 = vector.extract_strided_slice %175 {offsets = [0, 0], sizes = [2, 128], strides = [1, 1]} : vector<2x512xf32> to vector<2x128xf32>
      %177 = arith.negf %176 : vector<2x128xf32>
      %178 = math.exp %177 : vector<2x128xf32>
      %cst_51 = arith.constant 1.000000e+00 : f32
      %179 = vector.broadcast %cst_51 : f32 to vector<2x128xf32>
      %180 = arith.addf %179, %178 : vector<2x128xf32>
      %181 = arith.divf %179, %180 : vector<2x128xf32>
      %182 = vector.extract_strided_slice %175 {offsets = [0, 128], sizes = [2, 128], strides = [1, 1]} : vector<2x512xf32> to vector<2x128xf32>
      %183 = arith.negf %182 : vector<2x128xf32>
      %184 = math.exp %183 : vector<2x128xf32>
      %cst_52 = arith.constant 1.000000e+00 : f32
      %185 = vector.broadcast %cst_52 : f32 to vector<2x128xf32>
      %186 = arith.addf %185, %184 : vector<2x128xf32>
      %187 = arith.divf %185, %186 : vector<2x128xf32>
      %188 = vector.extract_strided_slice %175 {offsets = [0, 256], sizes = [2, 128], strides = [1, 1]} : vector<2x512xf32> to vector<2x128xf32>
      %189 = math.tanh %188 : vector<2x128xf32>
      %190 = vector.extract_strided_slice %175 {offsets = [0, 384], sizes = [2, 128], strides = [1, 1]} : vector<2x512xf32> to vector<2x128xf32>
      %191 = arith.negf %190 : vector<2x128xf32>
      %192 = math.exp %191 : vector<2x128xf32>
      %cst_53 = arith.constant 1.000000e+00 : f32
      %193 = vector.broadcast %cst_53 : f32 to vector<2x128xf32>
      %194 = arith.addf %193, %192 : vector<2x128xf32>
      %195 = arith.divf %193, %194 : vector<2x128xf32>
      %196 = arith.mulf %187, %141 : vector<2x128xf32>
      %197 = arith.mulf %181, %189 : vector<2x128xf32>
      %198 = arith.addf %196, %197 : vector<2x128xf32>
      %199 = math.tanh %198 : vector<2x128xf32>
      %200 = arith.mulf %195, %199 : vector<2x128xf32>
      %201 = vector.extract_strided_slice %22 {offsets = [6, 0], sizes = [2, 512], strides = [1, 1]} : vector<16x512xf32> to vector<2x512xf32>
      %cst_54 = arith.constant dense<0.000000e+00> : vector<2x512xf32>
      %202 = tpu.matmul %171, %23, %cst_54 {dimension_numbers = #tpu.dot_dimension_numbers<[1], [0], [0], [1], [0, 0, 1, 1], [], []>} : vector<2x128xf32>, vector<128x512xf32>, vector<2x512xf32> -> vector<2x512xf32>
      %203 = arith.addf %201, %202 : vector<2x512xf32>
      %204 = vector.extract_strided_slice %203 {offsets = [0, 0], sizes = [2, 128], strides = [1, 1]} : vector<2x512xf32> to vector<2x128xf32>
      %205 = arith.negf %204 : vector<2x128xf32>
      %206 = math.exp %205 : vector<2x128xf32>
      %cst_55 = arith.constant 1.000000e+00 : f32
      %207 = vector.broadcast %cst_55 : f32 to vector<2x128xf32>
      %208 = arith.addf %207, %206 : vector<2x128xf32>
      %209 = arith.divf %207, %208 : vector<2x128xf32>
      %210 = vector.extract_strided_slice %203 {offsets = [0, 128], sizes = [2, 128], strides = [1, 1]} : vector<2x512xf32> to vector<2x128xf32>
      %211 = arith.negf %210 : vector<2x128xf32>
      %212 = math.exp %211 : vector<2x128xf32>
      %cst_56 = arith.constant 1.000000e+00 : f32
      %213 = vector.broadcast %cst_56 : f32 to vector<2x128xf32>
      %214 = arith.addf %213, %212 : vector<2x128xf32>
      %215 = arith.divf %213, %214 : vector<2x128xf32>
      %216 = vector.extract_strided_slice %203 {offsets = [0, 256], sizes = [2, 128], strides = [1, 1]} : vector<2x512xf32> to vector<2x128xf32>
      %217 = math.tanh %216 : vector<2x128xf32>
      %218 = vector.extract_strided_slice %203 {offsets = [0, 384], sizes = [2, 128], strides = [1, 1]} : vector<2x512xf32> to vector<2x128xf32>
      %219 = arith.negf %218 : vector<2x128xf32>
      %220 = math.exp %219 : vector<2x128xf32>
      %cst_57 = arith.constant 1.000000e+00 : f32
      %221 = vector.broadcast %cst_57 : f32 to vector<2x128xf32>
      %222 = arith.addf %221, %220 : vector<2x128xf32>
      %223 = arith.divf %221, %222 : vector<2x128xf32>
      %224 = arith.mulf %215, %169 : vector<2x128xf32>
      %225 = arith.mulf %209, %217 : vector<2x128xf32>
      %226 = arith.addf %224, %225 : vector<2x128xf32>
      %227 = math.tanh %226 : vector<2x128xf32>
      %228 = arith.mulf %223, %227 : vector<2x128xf32>
      %229 = tpu.concatenate %228, %200 in 1 : vector<2x128xf32>, vector<2x128xf32> -> vector<2x256xf32>
      %cst_58 = arith.constant dense<0.000000e+00> : vector<2x512xf32>
      %230 = tpu.matmul %229, %24, %cst_58 {dimension_numbers = #tpu.dot_dimension_numbers<[1], [0], [0], [1], [0, 0, 1, 1], [], []>} : vector<2x256xf32>, vector<256x512xf32>, vector<2x512xf32> -> vector<2x512xf32>
      %231 = vector.broadcast %25 : vector<1x512xf32> to vector<2x512xf32>
      %232 = arith.addf %230, %231 : vector<2x512xf32>
      %233 = vector.extract_strided_slice %232 {offsets = [0, 0], sizes = [2, 128], strides = [1, 1]} : vector<2x512xf32> to vector<2x128xf32>
      %234 = arith.negf %233 : vector<2x128xf32>
      %235 = math.exp %234 : vector<2x128xf32>
      %cst_59 = arith.constant 1.000000e+00 : f32
      %236 = vector.broadcast %cst_59 : f32 to vector<2x128xf32>
      %237 = arith.addf %236, %235 : vector<2x128xf32>
      %238 = arith.divf %236, %237 : vector<2x128xf32>
      %239 = vector.extract_strided_slice %232 {offsets = [0, 128], sizes = [2, 128], strides = [1, 1]} : vector<2x512xf32> to vector<2x128xf32>
      %240 = arith.negf %239 : vector<2x128xf32>
      %241 = math.exp %240 : vector<2x128xf32>
      %cst_60 = arith.constant 1.000000e+00 : f32
      %242 = vector.broadcast %cst_60 : f32 to vector<2x128xf32>
      %243 = arith.addf %242, %241 : vector<2x128xf32>
      %244 = arith.divf %242, %243 : vector<2x128xf32>
      %245 = vector.extract_strided_slice %232 {offsets = [0, 256], sizes = [2, 128], strides = [1, 1]} : vector<2x512xf32> to vector<2x128xf32>
      %246 = math.tanh %245 : vector<2x128xf32>
      %247 = vector.extract_strided_slice %232 {offsets = [0, 384], sizes = [2, 128], strides = [1, 1]} : vector<2x512xf32> to vector<2x128xf32>
      %248 = arith.negf %247 : vector<2x128xf32>
      %249 = math.exp %248 : vector<2x128xf32>
      %cst_61 = arith.constant 1.000000e+00 : f32
      %250 = vector.broadcast %cst_61 : f32 to vector<2x128xf32>
      %251 = arith.addf %250, %249 : vector<2x128xf32>
      %252 = arith.divf %250, %251 : vector<2x128xf32>
      %253 = arith.mulf %244, %198 : vector<2x128xf32>
      %254 = arith.mulf %238, %246 : vector<2x128xf32>
      %255 = arith.addf %253, %254 : vector<2x128xf32>
      %256 = math.tanh %255 : vector<2x128xf32>
      %257 = arith.mulf %252, %256 : vector<2x128xf32>
      %258 = vector.extract_strided_slice %22 {offsets = [8, 0], sizes = [2, 512], strides = [1, 1]} : vector<16x512xf32> to vector<2x512xf32>
      %cst_62 = arith.constant dense<0.000000e+00> : vector<2x512xf32>
      %259 = tpu.matmul %228, %23, %cst_62 {dimension_numbers = #tpu.dot_dimension_numbers<[1], [0], [0], [1], [0, 0, 1, 1], [], []>} : vector<2x128xf32>, vector<128x512xf32>, vector<2x512xf32> -> vector<2x512xf32>
      %260 = arith.addf %258, %259 : vector<2x512xf32>
      %261 = vector.extract_strided_slice %260 {offsets = [0, 0], sizes = [2, 128], strides = [1, 1]} : vector<2x512xf32> to vector<2x128xf32>
      %262 = arith.negf %261 : vector<2x128xf32>
      %263 = math.exp %262 : vector<2x128xf32>
      %cst_63 = arith.constant 1.000000e+00 : f32
      %264 = vector.broadcast %cst_63 : f32 to vector<2x128xf32>
      %265 = arith.addf %264, %263 : vector<2x128xf32>
      %266 = arith.divf %264, %265 : vector<2x128xf32>
      %267 = vector.extract_strided_slice %260 {offsets = [0, 128], sizes = [2, 128], strides = [1, 1]} : vector<2x512xf32> to vector<2x128xf32>
      %268 = arith.negf %267 : vector<2x128xf32>
      %269 = math.exp %268 : vector<2x128xf32>
      %cst_64 = arith.constant 1.000000e+00 : f32
      %270 = vector.broadcast %cst_64 : f32 to vector<2x128xf32>
      %271 = arith.addf %270, %269 : vector<2x128xf32>
      %272 = arith.divf %270, %271 : vector<2x128xf32>
      %273 = vector.extract_strided_slice %260 {offsets = [0, 256], sizes = [2, 128], strides = [1, 1]} : vector<2x512xf32> to vector<2x128xf32>
      %274 = math.tanh %273 : vector<2x128xf32>
      %275 = vector.extract_strided_slice %260 {offsets = [0, 384], sizes = [2, 128], strides = [1, 1]} : vector<2x512xf32> to vector<2x128xf32>
      %276 = arith.negf %275 : vector<2x128xf32>
      %277 = math.exp %276 : vector<2x128xf32>
      %cst_65 = arith.constant 1.000000e+00 : f32
      %278 = vector.broadcast %cst_65 : f32 to vector<2x128xf32>
      %279 = arith.addf %278, %277 : vector<2x128xf32>
      %280 = arith.divf %278, %279 : vector<2x128xf32>
      %281 = arith.mulf %272, %226 : vector<2x128xf32>
      %282 = arith.mulf %266, %274 : vector<2x128xf32>
      %283 = arith.addf %281, %282 : vector<2x128xf32>
      %284 = math.tanh %283 : vector<2x128xf32>
      %285 = arith.mulf %280, %284 : vector<2x128xf32>
      %286 = tpu.concatenate %285, %257 in 1 : vector<2x128xf32>, vector<2x128xf32> -> vector<2x256xf32>
      %cst_66 = arith.constant dense<0.000000e+00> : vector<2x512xf32>
      %287 = tpu.matmul %286, %24, %cst_66 {dimension_numbers = #tpu.dot_dimension_numbers<[1], [0], [0], [1], [0, 0, 1, 1], [], []>} : vector<2x256xf32>, vector<256x512xf32>, vector<2x512xf32> -> vector<2x512xf32>
      %288 = vector.broadcast %25 : vector<1x512xf32> to vector<2x512xf32>
      %289 = arith.addf %287, %288 : vector<2x512xf32>
      %290 = vector.extract_strided_slice %289 {offsets = [0, 0], sizes = [2, 128], strides = [1, 1]} : vector<2x512xf32> to vector<2x128xf32>
      %291 = arith.negf %290 : vector<2x128xf32>
      %292 = math.exp %291 : vector<2x128xf32>
      %cst_67 = arith.constant 1.000000e+00 : f32
      %293 = vector.broadcast %cst_67 : f32 to vector<2x128xf32>
      %294 = arith.addf %293, %292 : vector<2x128xf32>
      %295 = arith.divf %293, %294 : vector<2x128xf32>
      %296 = vector.extract_strided_slice %289 {offsets = [0, 128], sizes = [2, 128], strides = [1, 1]} : vector<2x512xf32> to vector<2x128xf32>
      %297 = arith.negf %296 : vector<2x128xf32>
      %298 = math.exp %297 : vector<2x128xf32>
      %cst_68 = arith.constant 1.000000e+00 : f32
      %299 = vector.broadcast %cst_68 : f32 to vector<2x128xf32>
      %300 = arith.addf %299, %298 : vector<2x128xf32>
      %301 = arith.divf %299, %300 : vector<2x128xf32>
      %302 = vector.extract_strided_slice %289 {offsets = [0, 256], sizes = [2, 128], strides = [1, 1]} : vector<2x512xf32> to vector<2x128xf32>
      %303 = math.tanh %302 : vector<2x128xf32>
      %304 = vector.extract_strided_slice %289 {offsets = [0, 384], sizes = [2, 128], strides = [1, 1]} : vector<2x512xf32> to vector<2x128xf32>
      %305 = arith.negf %304 : vector<2x128xf32>
      %306 = math.exp %305 : vector<2x128xf32>
      %cst_69 = arith.constant 1.000000e+00 : f32
      %307 = vector.broadcast %cst_69 : f32 to vector<2x128xf32>
      %308 = arith.addf %307, %306 : vector<2x128xf32>
      %309 = arith.divf %307, %308 : vector<2x128xf32>
      %310 = arith.mulf %301, %255 : vector<2x128xf32>
      %311 = arith.mulf %295, %303 : vector<2x128xf32>
      %312 = arith.addf %310, %311 : vector<2x128xf32>
      %313 = math.tanh %312 : vector<2x128xf32>
      %314 = arith.mulf %309, %313 : vector<2x128xf32>
      %315 = vector.extract_strided_slice %22 {offsets = [10, 0], sizes = [2, 512], strides = [1, 1]} : vector<16x512xf32> to vector<2x512xf32>
      %cst_70 = arith.constant dense<0.000000e+00> : vector<2x512xf32>
      %316 = tpu.matmul %285, %23, %cst_70 {dimension_numbers = #tpu.dot_dimension_numbers<[1], [0], [0], [1], [0, 0, 1, 1], [], []>} : vector<2x128xf32>, vector<128x512xf32>, vector<2x512xf32> -> vector<2x512xf32>
      %317 = arith.addf %315, %316 : vector<2x512xf32>
      %318 = vector.extract_strided_slice %317 {offsets = [0, 0], sizes = [2, 128], strides = [1, 1]} : vector<2x512xf32> to vector<2x128xf32>
      %319 = arith.negf %318 : vector<2x128xf32>
      %320 = math.exp %319 : vector<2x128xf32>
      %cst_71 = arith.constant 1.000000e+00 : f32
      %321 = vector.broadcast %cst_71 : f32 to vector<2x128xf32>
      %322 = arith.addf %321, %320 : vector<2x128xf32>
      %323 = arith.divf %321, %322 : vector<2x128xf32>
      %324 = vector.extract_strided_slice %317 {offsets = [0, 128], sizes = [2, 128], strides = [1, 1]} : vector<2x512xf32> to vector<2x128xf32>
      %325 = arith.negf %324 : vector<2x128xf32>
      %326 = math.exp %325 : vector<2x128xf32>
      %cst_72 = arith.constant 1.000000e+00 : f32
      %327 = vector.broadcast %cst_72 : f32 to vector<2x128xf32>
      %328 = arith.addf %327, %326 : vector<2x128xf32>
      %329 = arith.divf %327, %328 : vector<2x128xf32>
      %330 = vector.extract_strided_slice %317 {offsets = [0, 256], sizes = [2, 128], strides = [1, 1]} : vector<2x512xf32> to vector<2x128xf32>
      %331 = math.tanh %330 : vector<2x128xf32>
      %332 = vector.extract_strided_slice %317 {offsets = [0, 384], sizes = [2, 128], strides = [1, 1]} : vector<2x512xf32> to vector<2x128xf32>
      %333 = arith.negf %332 : vector<2x128xf32>
      %334 = math.exp %333 : vector<2x128xf32>
      %cst_73 = arith.constant 1.000000e+00 : f32
      %335 = vector.broadcast %cst_73 : f32 to vector<2x128xf32>
      %336 = arith.addf %335, %334 : vector<2x128xf32>
      %337 = arith.divf %335, %336 : vector<2x128xf32>
      %338 = arith.mulf %329, %283 : vector<2x128xf32>
      %339 = arith.mulf %323, %331 : vector<2x128xf32>
      %340 = arith.addf %338, %339 : vector<2x128xf32>
      %341 = math.tanh %340 : vector<2x128xf32>
      %342 = arith.mulf %337, %341 : vector<2x128xf32>
      %343 = tpu.concatenate %342, %314 in 1 : vector<2x128xf32>, vector<2x128xf32> -> vector<2x256xf32>
      %cst_74 = arith.constant dense<0.000000e+00> : vector<2x512xf32>
      %344 = tpu.matmul %343, %24, %cst_74 {dimension_numbers = #tpu.dot_dimension_numbers<[1], [0], [0], [1], [0, 0, 1, 1], [], []>} : vector<2x256xf32>, vector<256x512xf32>, vector<2x512xf32> -> vector<2x512xf32>
      %345 = vector.broadcast %25 : vector<1x512xf32> to vector<2x512xf32>
      %346 = arith.addf %344, %345 : vector<2x512xf32>
      %347 = vector.extract_strided_slice %346 {offsets = [0, 0], sizes = [2, 128], strides = [1, 1]} : vector<2x512xf32> to vector<2x128xf32>
      %348 = arith.negf %347 : vector<2x128xf32>
      %349 = math.exp %348 : vector<2x128xf32>
      %cst_75 = arith.constant 1.000000e+00 : f32
      %350 = vector.broadcast %cst_75 : f32 to vector<2x128xf32>
      %351 = arith.addf %350, %349 : vector<2x128xf32>
      %352 = arith.divf %350, %351 : vector<2x128xf32>
      %353 = vector.extract_strided_slice %346 {offsets = [0, 128], sizes = [2, 128], strides = [1, 1]} : vector<2x512xf32> to vector<2x128xf32>
      %354 = arith.negf %353 : vector<2x128xf32>
      %355 = math.exp %354 : vector<2x128xf32>
      %cst_76 = arith.constant 1.000000e+00 : f32
      %356 = vector.broadcast %cst_76 : f32 to vector<2x128xf32>
      %357 = arith.addf %356, %355 : vector<2x128xf32>
      %358 = arith.divf %356, %357 : vector<2x128xf32>
      %359 = vector.extract_strided_slice %346 {offsets = [0, 256], sizes = [2, 128], strides = [1, 1]} : vector<2x512xf32> to vector<2x128xf32>
      %360 = math.tanh %359 : vector<2x128xf32>
      %361 = vector.extract_strided_slice %346 {offsets = [0, 384], sizes = [2, 128], strides = [1, 1]} : vector<2x512xf32> to vector<2x128xf32>
      %362 = arith.negf %361 : vector<2x128xf32>
      %363 = math.exp %362 : vector<2x128xf32>
      %cst_77 = arith.constant 1.000000e+00 : f32
      %364 = vector.broadcast %cst_77 : f32 to vector<2x128xf32>
      %365 = arith.addf %364, %363 : vector<2x128xf32>
      %366 = arith.divf %364, %365 : vector<2x128xf32>
      %367 = arith.mulf %358, %312 : vector<2x128xf32>
      %368 = arith.mulf %352, %360 : vector<2x128xf32>
      %369 = arith.addf %367, %368 : vector<2x128xf32>
      %370 = math.tanh %369 : vector<2x128xf32>
      %371 = arith.mulf %366, %370 : vector<2x128xf32>
      %372 = vector.extract_strided_slice %22 {offsets = [12, 0], sizes = [2, 512], strides = [1, 1]} : vector<16x512xf32> to vector<2x512xf32>
      %cst_78 = arith.constant dense<0.000000e+00> : vector<2x512xf32>
      %373 = tpu.matmul %342, %23, %cst_78 {dimension_numbers = #tpu.dot_dimension_numbers<[1], [0], [0], [1], [0, 0, 1, 1], [], []>} : vector<2x128xf32>, vector<128x512xf32>, vector<2x512xf32> -> vector<2x512xf32>
      %374 = arith.addf %372, %373 : vector<2x512xf32>
      %375 = vector.extract_strided_slice %374 {offsets = [0, 0], sizes = [2, 128], strides = [1, 1]} : vector<2x512xf32> to vector<2x128xf32>
      %376 = arith.negf %375 : vector<2x128xf32>
      %377 = math.exp %376 : vector<2x128xf32>
      %cst_79 = arith.constant 1.000000e+00 : f32
      %378 = vector.broadcast %cst_79 : f32 to vector<2x128xf32>
      %379 = arith.addf %378, %377 : vector<2x128xf32>
      %380 = arith.divf %378, %379 : vector<2x128xf32>
      %381 = vector.extract_strided_slice %374 {offsets = [0, 128], sizes = [2, 128], strides = [1, 1]} : vector<2x512xf32> to vector<2x128xf32>
      %382 = arith.negf %381 : vector<2x128xf32>
      %383 = math.exp %382 : vector<2x128xf32>
      %cst_80 = arith.constant 1.000000e+00 : f32
      %384 = vector.broadcast %cst_80 : f32 to vector<2x128xf32>
      %385 = arith.addf %384, %383 : vector<2x128xf32>
      %386 = arith.divf %384, %385 : vector<2x128xf32>
      %387 = vector.extract_strided_slice %374 {offsets = [0, 256], sizes = [2, 128], strides = [1, 1]} : vector<2x512xf32> to vector<2x128xf32>
      %388 = math.tanh %387 : vector<2x128xf32>
      %389 = vector.extract_strided_slice %374 {offsets = [0, 384], sizes = [2, 128], strides = [1, 1]} : vector<2x512xf32> to vector<2x128xf32>
      %390 = arith.negf %389 : vector<2x128xf32>
      %391 = math.exp %390 : vector<2x128xf32>
      %cst_81 = arith.constant 1.000000e+00 : f32
      %392 = vector.broadcast %cst_81 : f32 to vector<2x128xf32>
      %393 = arith.addf %392, %391 : vector<2x128xf32>
      %394 = arith.divf %392, %393 : vector<2x128xf32>
      %395 = arith.mulf %386, %340 : vector<2x128xf32>
      %396 = arith.mulf %380, %388 : vector<2x128xf32>
      %397 = arith.addf %395, %396 : vector<2x128xf32>
      %398 = math.tanh %397 : vector<2x128xf32>
      %399 = arith.mulf %394, %398 : vector<2x128xf32>
      %400 = tpu.concatenate %399, %371 in 1 : vector<2x128xf32>, vector<2x128xf32> -> vector<2x256xf32>
      %cst_82 = arith.constant dense<0.000000e+00> : vector<2x512xf32>
      %401 = tpu.matmul %400, %24, %cst_82 {dimension_numbers = #tpu.dot_dimension_numbers<[1], [0], [0], [1], [0, 0, 1, 1], [], []>} : vector<2x256xf32>, vector<256x512xf32>, vector<2x512xf32> -> vector<2x512xf32>
      %402 = vector.broadcast %25 : vector<1x512xf32> to vector<2x512xf32>
      %403 = arith.addf %401, %402 : vector<2x512xf32>
      %404 = vector.extract_strided_slice %403 {offsets = [0, 0], sizes = [2, 128], strides = [1, 1]} : vector<2x512xf32> to vector<2x128xf32>
      %405 = arith.negf %404 : vector<2x128xf32>
      %406 = math.exp %405 : vector<2x128xf32>
      %cst_83 = arith.constant 1.000000e+00 : f32
      %407 = vector.broadcast %cst_83 : f32 to vector<2x128xf32>
      %408 = arith.addf %407, %406 : vector<2x128xf32>
      %409 = arith.divf %407, %408 : vector<2x128xf32>
      %410 = vector.extract_strided_slice %403 {offsets = [0, 128], sizes = [2, 128], strides = [1, 1]} : vector<2x512xf32> to vector<2x128xf32>
      %411 = arith.negf %410 : vector<2x128xf32>
      %412 = math.exp %411 : vector<2x128xf32>
      %cst_84 = arith.constant 1.000000e+00 : f32
      %413 = vector.broadcast %cst_84 : f32 to vector<2x128xf32>
      %414 = arith.addf %413, %412 : vector<2x128xf32>
      %415 = arith.divf %413, %414 : vector<2x128xf32>
      %416 = vector.extract_strided_slice %403 {offsets = [0, 256], sizes = [2, 128], strides = [1, 1]} : vector<2x512xf32> to vector<2x128xf32>
      %417 = math.tanh %416 : vector<2x128xf32>
      %418 = vector.extract_strided_slice %403 {offsets = [0, 384], sizes = [2, 128], strides = [1, 1]} : vector<2x512xf32> to vector<2x128xf32>
      %419 = arith.negf %418 : vector<2x128xf32>
      %420 = math.exp %419 : vector<2x128xf32>
      %cst_85 = arith.constant 1.000000e+00 : f32
      %421 = vector.broadcast %cst_85 : f32 to vector<2x128xf32>
      %422 = arith.addf %421, %420 : vector<2x128xf32>
      %423 = arith.divf %421, %422 : vector<2x128xf32>
      %424 = arith.mulf %415, %369 : vector<2x128xf32>
      %425 = arith.mulf %409, %417 : vector<2x128xf32>
      %426 = arith.addf %424, %425 : vector<2x128xf32>
      %427 = math.tanh %426 : vector<2x128xf32>
      %428 = arith.mulf %423, %427 : vector<2x128xf32>
      %429 = vector.extract_strided_slice %22 {offsets = [14, 0], sizes = [2, 512], strides = [1, 1]} : vector<16x512xf32> to vector<2x512xf32>
      %cst_86 = arith.constant dense<0.000000e+00> : vector<2x512xf32>
      %430 = tpu.matmul %399, %23, %cst_86 {dimension_numbers = #tpu.dot_dimension_numbers<[1], [0], [0], [1], [0, 0, 1, 1], [], []>} : vector<2x128xf32>, vector<128x512xf32>, vector<2x512xf32> -> vector<2x512xf32>
      %431 = arith.addf %429, %430 : vector<2x512xf32>
      %432 = vector.extract_strided_slice %431 {offsets = [0, 0], sizes = [2, 128], strides = [1, 1]} : vector<2x512xf32> to vector<2x128xf32>
      %433 = arith.negf %432 : vector<2x128xf32>
      %434 = math.exp %433 : vector<2x128xf32>
      %cst_87 = arith.constant 1.000000e+00 : f32
      %435 = vector.broadcast %cst_87 : f32 to vector<2x128xf32>
      %436 = arith.addf %435, %434 : vector<2x128xf32>
      %437 = arith.divf %435, %436 : vector<2x128xf32>
      %438 = vector.extract_strided_slice %431 {offsets = [0, 128], sizes = [2, 128], strides = [1, 1]} : vector<2x512xf32> to vector<2x128xf32>
      %439 = arith.negf %438 : vector<2x128xf32>
      %440 = math.exp %439 : vector<2x128xf32>
      %cst_88 = arith.constant 1.000000e+00 : f32
      %441 = vector.broadcast %cst_88 : f32 to vector<2x128xf32>
      %442 = arith.addf %441, %440 : vector<2x128xf32>
      %443 = arith.divf %441, %442 : vector<2x128xf32>
      %444 = vector.extract_strided_slice %431 {offsets = [0, 256], sizes = [2, 128], strides = [1, 1]} : vector<2x512xf32> to vector<2x128xf32>
      %445 = math.tanh %444 : vector<2x128xf32>
      %446 = vector.extract_strided_slice %431 {offsets = [0, 384], sizes = [2, 128], strides = [1, 1]} : vector<2x512xf32> to vector<2x128xf32>
      %447 = arith.negf %446 : vector<2x128xf32>
      %448 = math.exp %447 : vector<2x128xf32>
      %cst_89 = arith.constant 1.000000e+00 : f32
      %449 = vector.broadcast %cst_89 : f32 to vector<2x128xf32>
      %450 = arith.addf %449, %448 : vector<2x128xf32>
      %451 = arith.divf %449, %450 : vector<2x128xf32>
      %452 = arith.mulf %443, %397 : vector<2x128xf32>
      %453 = arith.mulf %437, %445 : vector<2x128xf32>
      %454 = arith.addf %452, %453 : vector<2x128xf32>
      %455 = math.tanh %454 : vector<2x128xf32>
      %456 = arith.mulf %451, %455 : vector<2x128xf32>
      %457 = tpu.concatenate %456, %428 in 1 : vector<2x128xf32>, vector<2x128xf32> -> vector<2x256xf32>
      %cst_90 = arith.constant dense<0.000000e+00> : vector<2x512xf32>
      %458 = tpu.matmul %457, %24, %cst_90 {dimension_numbers = #tpu.dot_dimension_numbers<[1], [0], [0], [1], [0, 0, 1, 1], [], []>} : vector<2x256xf32>, vector<256x512xf32>, vector<2x512xf32> -> vector<2x512xf32>
      %459 = vector.broadcast %25 : vector<1x512xf32> to vector<2x512xf32>
      %460 = arith.addf %458, %459 : vector<2x512xf32>
      %461 = vector.extract_strided_slice %460 {offsets = [0, 0], sizes = [2, 128], strides = [1, 1]} : vector<2x512xf32> to vector<2x128xf32>
      %462 = arith.negf %461 : vector<2x128xf32>
      %463 = math.exp %462 : vector<2x128xf32>
      %cst_91 = arith.constant 1.000000e+00 : f32
      %464 = vector.broadcast %cst_91 : f32 to vector<2x128xf32>
      %465 = arith.addf %464, %463 : vector<2x128xf32>
      %466 = arith.divf %464, %465 : vector<2x128xf32>
      %467 = vector.extract_strided_slice %460 {offsets = [0, 128], sizes = [2, 128], strides = [1, 1]} : vector<2x512xf32> to vector<2x128xf32>
      %468 = arith.negf %467 : vector<2x128xf32>
      %469 = math.exp %468 : vector<2x128xf32>
      %cst_92 = arith.constant 1.000000e+00 : f32
      %470 = vector.broadcast %cst_92 : f32 to vector<2x128xf32>
      %471 = arith.addf %470, %469 : vector<2x128xf32>
      %472 = arith.divf %470, %471 : vector<2x128xf32>
      %473 = vector.extract_strided_slice %460 {offsets = [0, 256], sizes = [2, 128], strides = [1, 1]} : vector<2x512xf32> to vector<2x128xf32>
      %474 = math.tanh %473 : vector<2x128xf32>
      %475 = vector.extract_strided_slice %460 {offsets = [0, 384], sizes = [2, 128], strides = [1, 1]} : vector<2x512xf32> to vector<2x128xf32>
      %476 = arith.negf %475 : vector<2x128xf32>
      %477 = math.exp %476 : vector<2x128xf32>
      %cst_93 = arith.constant 1.000000e+00 : f32
      %478 = vector.broadcast %cst_93 : f32 to vector<2x128xf32>
      %479 = arith.addf %478, %477 : vector<2x128xf32>
      %480 = arith.divf %478, %479 : vector<2x128xf32>
      %481 = arith.mulf %472, %426 : vector<2x128xf32>
      %482 = arith.mulf %466, %474 : vector<2x128xf32>
      %483 = arith.addf %481, %482 : vector<2x128xf32>
      %484 = math.tanh %483 : vector<2x128xf32>
      %485 = arith.mulf %480, %484 : vector<2x128xf32>
      %c0_94 = arith.constant 0 : index
      %c0_95 = arith.constant 0 : index
      %486 = vector.load %arg10[%c0_94, %c0_95] : memref<1x128xf32, #tpu.memory_space<vmem>>, vector<1x128xf32>
      %cst_96 = arith.constant 5.000000e-01 : f32
      %487 = vector.broadcast %cst_96 : f32 to vector<2x128xf32>
      %488 = arith.mulf %487, %485 : vector<2x128xf32>
      %489 = vector.broadcast %486 : vector<1x128xf32> to vector<2x128xf32>
      %490 = arith.addf %489, %488 : vector<2x128xf32>
      %c0_97 = arith.constant 0 : index
      %c0_98 = arith.constant 0 : index
      %491 = vector.load %arg12[%c0_97, %c0_98] : memref<2x128xf32, #tpu.memory_space<vmem>>, vector<2x128xf32>
      tpu.vector_store %arg12[%c0_97, %c0_98], %490 {strides = array<i32>} : memref<2x128xf32, #tpu.memory_space<vmem>>, vector<2x128xf32>,
    } else {
    }
    %c0 = arith.constant 0 : index
    %c0_4 = arith.constant 0 : index
    %8 = vector.load %arg12[%c0, %c0_4] : memref<2x128xf32, #tpu.memory_space<vmem>>, vector<2x128xf32>
    %c0_5 = arith.constant 0 : index
    %c0_6 = arith.constant 0 : index
    %9 = vector.load %arg8[%c0_5, %c0_6] : memref<2x512xbf16, #tpu.memory_space<vmem>>, vector<2x512xbf16>
    %c0_7 = arith.constant 0 : index
    %c0_8 = arith.constant 0 : index
    %10 = vector.load %arg9[%c0_7, %c0_8] : memref<512x128xbf16, #tpu.memory_space<vmem>>, vector<512x128xbf16>
    %cst = arith.constant dense<0.000000e+00> : vector<2x128xf32>
    %11 = tpu.matmul %9, %10, %cst {dimension_numbers = #tpu.dot_dimension_numbers<[1], [0], [0], [1], [0, 0, 1, 1], [], []>} : vector<2x512xbf16>, vector<512x128xbf16>, vector<2x128xf32> -> vector<2x128xf32>
    %12 = arith.addf %8, %11 : vector<2x128xf32>
    %c0_9 = arith.constant 0 : index
    %c0_10 = arith.constant 0 : index
    %13 = vector.load %arg12[%c0_9, %c0_10] : memref<2x128xf32, #tpu.memory_space<vmem>>, vector<2x128xf32>
    tpu.vector_store %arg12[%c0_9, %c0_10], %12 {strides = array<i32>} : memref<2x128xf32, #tpu.memory_space<vmem>>, vector<2x128xf32>,
    %c0_i32_11 = arith.constant 0 : i32
    %14 = arith.cmpi eq, %arg1, %c0_i32_11 : i32
    %15 = arith.extui %14 : i1 to i32
    %c0_i32_12 = arith.constant 0 : i32
    %16 = arith.cmpi ne, %15, %c0_i32_12 : i32
    scf.if %16 {
      %c0_13 = arith.constant 0 : index
      %c0_14 = arith.constant 0 : index
      %17 = vector.load %arg12[%c0_13, %c0_14] : memref<2x128xf32, #tpu.memory_space<vmem>>, vector<2x128xf32>
      %c0_15 = arith.constant 0 : index
      %c0_16 = arith.constant 0 : index
      %c0_17 = arith.constant 0 : index
      %18 = vector.load %arg11[%c0_15, %c0_16, %c0_17] : memref<1x2x128xf32, #tpu.memory_space<vmem>>, vector<1x2x128xf32>
      %19 = vector.shape_cast %18 : vector<1x2x128xf32> to vector<2x128xf32>
      %20 = vector.shape_cast %17 : vector<2x128xf32> to vector<1x2x128xf32>
      tpu.vector_store %arg11[%c0_15, %c0_16, %c0_17], %20 {strides = array<i32>} : memref<1x2x128xf32, #tpu.memory_space<vmem>>, vector<1x2x128xf32>,
    } else {
    }
    return
  }
  func.func @transform_0(%arg0: i32, %arg1: i32) -> (i32, i32) {
    %c0_i32 = arith.constant 0 : i32
    %c0_i32_0 = arith.constant 0 : i32
    %c0_i32_1 = arith.constant 0 : i32
    return %c0_i32, %c0_i32_0 : i32, i32
  }
  func.func @transform_1(%arg0: i32, %arg1: i32) -> (i32, i32) {
    %c0_i32 = arith.constant 0 : i32
    %c0_i32_0 = arith.constant 0 : i32
    %c0_i32_1 = arith.constant 0 : i32
    return %c0_i32, %c0_i32_0 : i32, i32
  }
  func.func @transform_2(%arg0: i32, %arg1: i32) -> (i32, i32) {
    %c0_i32 = arith.constant 0 : i32
    %c0_i32_0 = arith.constant 0 : i32
    %c0_i32_1 = arith.constant 0 : i32
    return %c0_i32, %c0_i32_0 : i32, i32
  }
  func.func @transform_3(%arg0: i32, %arg1: i32) -> (i32, i32) {
    %c0_i32 = arith.constant 0 : i32
    %c0_i32_0 = arith.constant 0 : i32
    %c0_i32_1 = arith.constant 0 : i32
    return %c0_i32, %c0_i32_0 : i32, i32
  }
  func.func @transform_4(%arg0: i32, %arg1: i32) -> (i32, i32) {
    %c0_i32 = arith.constant 0 : i32
    %c0_i32_0 = arith.constant 0 : i32
    %c0_i32_1 = arith.constant 0 : i32
    return %c0_i32, %c0_i32_0 : i32, i32
  }
  func.func @transform_5(%arg0: i32, %arg1: i32) -> (i32, i32) {
    %c0_i32 = arith.constant 0 : i32
    %c0_i32_0 = arith.constant 0 : i32
    %c0_i32_1 = arith.constant 0 : i32
    return %c0_i32, %c0_i32_0 : i32, i32
  }
  func.func @transform_6(%arg0: i32, %arg1: i32) -> (i32, i32) {
    %c1_i32 = arith.constant 1 : i32
    %0 = arith.muli %arg0, %c1_i32 : i32
    %1 = arith.addi %0, %arg1 : i32
    %c0_i32 = arith.constant 0 : i32
    %c0_i32_0 = arith.constant 0 : i32
    return %c0_i32, %1 : i32, i32
  }
  func.func @transform_7(%arg0: i32, %arg1: i32) -> (i32, i32) {
    %c1_i32 = arith.constant 1 : i32
    %0 = arith.muli %arg0, %c1_i32 : i32
    %1 = arith.addi %0, %arg1 : i32
    %c0_i32 = arith.constant 0 : i32
    %c0_i32_0 = arith.constant 0 : i32
    return %1, %c0_i32 : i32, i32
  }
  func.func @transform_8(%arg0: i32, %arg1: i32) -> (i32, i32) {
    %c0_i32 = arith.constant 0 : i32
    %c0_i32_0 = arith.constant 0 : i32
    %c0_i32_1 = arith.constant 0 : i32
    return %c0_i32, %c0_i32_0 : i32, i32
  }
  func.func @transform_9(%arg0: i32, %arg1: i32) -> (i32, i32, i32) {
    %c0_i32 = arith.constant 0 : i32
    %c0_i32_0 = arith.constant 0 : i32
    %c0_i32_1 = arith.constant 0 : i32
    return %arg0, %c0_i32, %c0_i32_0 : i32, i32, i32
  }
}

</mosaic_0001>

<llo_original>
// kernel: vgg_lstm_ws_forward.1
$region0: #{vgg_lstm_ws_forward.1}
  #allocation0 [shape = 'u32[]', space=smem, size = 0x4, offset = 0x4, fixed_abs, tag = 'smem constant byte address 0x4 - core index']
  #allocation1 [shape = 'u32[144,128]{1,0:T(1,128)}', space=vmem, size = 0x12000, scoped, tag = 'internal scratch']
  #allocation2 [shape = 'f32[2,128]{1,0:T(2,128)}', space=vmem, size = 0x400, scoped, tag = 'scratch operand']
  %s0 = inlined_call_operand.vmem [shape: f32[16,30], index: 0, kind: input, shape index: {}]
  %s1 = inlined_call_operand.vmem [shape: f32[30,512], index: 1, kind: input, shape index: {}]
  %s2 = inlined_call_operand.vmem [shape: f32[128,512], index: 2, kind: input, shape index: {}]
  %s3 = inlined_call_operand.hbm [shape: f32[1,512], index: 3, kind: input, shape index: {}]
  %s4 = inlined_call_operand.hbm [shape: f32[256,512], index: 4, kind: input, shape index: {}]
  %s5 = inlined_call_operand.hbm [shape: f32[1,512], index: 5, kind: input, shape index: {}]
  %s6 = inlined_call_operand.vmem [shape: bf16[2,1024], index: 6, kind: input, shape index: {}]
  %s7 = inlined_call_operand.hbm [shape: bf16[1024,128], index: 7, kind: input, shape index: {}]
  %s8 = inlined_call_operand.hbm [shape: f32[1,128], index: 8, kind: input, shape index: {}]
  %s9 = inlined_call_operand.vmem [shape: f32[2,2,128], index: 9, kind: output, shape index: {}]
  %s10 = sld [smem:[#allocation0]]
  $region101: #{vgg_lstm_ws_forward.1} parent=0
    _
  %s12 = ssub.s32 1, %s10
  %s13 = scalar_select 0, %s12, %s10
  $region1: #{vgg_lstm_ws_forward.1} parent=0
    #allocation3 [shape = 'u8[2048]{0}', space=vmem, size = 0x800, scoped, tag = 'input window, operand 3, single buffered']
    #allocation4 [shape = 's32[2]{0}', space=sflag, size = 0x8, scoped, tag = 'scoped memory for vgg_lstm_ws_forward.1']
    #allocation5 [shape = 'u8[524288]{0}', space=vmem, size = 0x80000, scoped, tag = 'input window, operand 4, single buffered']
    #allocation6 [shape = 's32[1]{0}', space=sflag, size = 0x4, scoped, tag = 'scoped memory for vgg_lstm_ws_forward.1']
    #allocation7 [shape = 'u8[2048]{0}', space=vmem, size = 0x800, scoped, tag = 'input window, operand 5, single buffered']
    #allocation8 [shape = 'u8[262144]{0}', space=vmem, size = 0x40000, scoped, tag = 'input window, operand 7']
    #allocation9 [shape = 's32[2]{0}', space=sflag, size = 0x8, scoped, tag = 'scoped memory for vgg_lstm_ws_forward.1']
    #allocation10 [shape = 'u8[512]{0}', space=vmem, size = 0x400, scoped, tag = 'input window, operand 8, single buffered']
    %14 = vsyncpa [#allocation4], 0
    %15 = vsyncpa [#allocation6], 0
    %16 = vsyncpa [#allocation9], 0
    %s17 = scalar_lea.sflag [#allocation9], 1
    %18 = vsyncpa %s17, 0
    loop: start=0, step=1, limit=4
    $region2: #{vgg_lstm_ws_forward.1} parent=1 // loop_pre_header
      _
    $region3: #{vgg_lstm_ws_forward.1} parent=1 // loop_header
      %s20 = sphi 0, %s24
      %p21 = scmp.ge.s32.totalorder %s20, 4
      %s27 = sphi 0, %s39
      %s28 = sphi 0, %s35
      %s29 = sphi 0, %s27
      %s30 = sphi 0, %s28
      %s31 = sphi 0, %s29
      %s32 = sphi 0, %s30
      %s40 = sphi 0, %s40
      %s42 = sphi 0, %s40
      %s43 = sphi 0, %s42
      %s57 = sphi 0, %s43
      %s61 = sphi 0, %s61
      %s63 = sphi 0, %s61
      %s64 = sphi 0, %s63
      %s78 = sphi 0, %s64
      %s82 = sphi 0, %s82
      %s84 = sphi 0, %s82
      %s85 = sphi 0, %s84
      %s99 = sphi 0, %s85
      %s103 = sphi 0, %s103
      %s105 = sphi 0, %s103
      %s106 = sphi 0, %s105
      %s120 = sphi 0, %s106
      %s124 = sphi 0, %s124
      %s126 = sphi 0, %s124
      %s127 = sphi 0, %s126
      %s141 = sphi 0, %s127
      %s145 = sphi 0, %s145
      %s147 = sphi 0, %s145
      %s148 = sphi 0, %s147
      %s162 = sphi 0, %s148
      %s170 = sphi 0, %s172
      %s173 = sphi 0, %s170
      %s174 = sphi 0, %s173
      %s190 = sphi 0, %s174
      %s198 = sphi 0, %s200
      %s201 = sphi 0, %s198
      %s202 = sphi 0, %s201
      %s218 = sphi 0, %s202
      %s222 = sphi 0, %s222
      %s224 = sphi 0, %s222
      %s225 = sphi 0, %s224
      %s239 = sphi 0, %s225
      %s245 = sphi 0, %s247
      %s248 = sphi 0, %s245
      %s249 = sphi 0, %s248
      %s265 = sphi 0, %s249
    $region4: #{vgg_lstm_ws_forward.1} parent=1 // loop_header_branch
      %23 = sbr.rel (%p21) target = $region8
    $region5: #{vgg_lstm_ws_forward.1} parent=1 // loop_body
      %s25 = ssub.s32 %s20, 1
      %s26 = ssub.s32 %s20, 2
      %s33 = sadd.s32 1, %s28
      %p34 = scmp.ge.s32.totalorder %s33, 1
      %s35 = scalar_select %p34, 0, %s33
      %s36 = sadd.s32 1, %s27
      %s37 = scalar_select %p34, %s36, %s27
      %p38 = scmp.ge.s32.totalorder %s37, 2
      %s39 = scalar_select %p38, 0, %s37
      %s41 = sadd.s32 %s40, 1
      %p44 = scmp.eq.s32.totalorder %s20, 1
      %p45 = scmp.ne.s32.totalorder %s40, %s42
      %p46 = scmp.eq.s32.totalorder %s20, 0
      %p47 = por %p45, %p46
      %p48 = scmp.ne.s32.totalorder %s40, %s42
      %p49 = scmp.eq.s32.totalorder %s25, 1
      %p50 = por %p48, %p49
      %p51 = scmp.ne.s32.totalorder %s42, %s43
      %p52 = scmp.eq.s32.totalorder %s25, 0
      %p53 = por %p51, %p52
      %p54 = scmp.ne.s32.totalorder %s42, %s43
      %p55 = scmp.eq.s32.totalorder %s26, 1
      %p56 = por %p54, %p55
      %p58 = scmp.ne.s32.totalorder %s43, %s57
      %p59 = scmp.eq.s32.totalorder %s26, 0
      %p60 = por %p58, %p59
      %s62 = sadd.s32 %s61, 1
      %p65 = scmp.eq.s32.totalorder %s20, 1
      %p66 = scmp.ne.s32.totalorder %s61, %s63
      %p67 = scmp.eq.s32.totalorder %s20, 0
      %p68 = por %p66, %p67
      %p69 = scmp.ne.s32.totalorder %s61, %s63
      %p70 = scmp.eq.s32.totalorder %s25, 1
      %p71 = por %p69, %p70
      %p72 = scmp.ne.s32.totalorder %s63, %s64
      %p73 = scmp.eq.s32.totalorder %s25, 0
      %p74 = por %p72, %p73
      %p75 = scmp.ne.s32.totalorder %s63, %s64
      %p76 = scmp.eq.s32.totalorder %s26, 1
      %p77 = por %p75, %p76
      %p79 = scmp.ne.s32.totalorder %s64, %s78
      %p80 = scmp.eq.s32.totalorder %s26, 0
      %p81 = por %p79, %p80
      %s83 = sadd.s32 %s82, 1
      %p86 = scmp.eq.s32.totalorder %s20, 1
      %p87 = scmp.ne.s32.totalorder %s82, %s84
      %p88 = scmp.eq.s32.totalorder %s20, 0
      %p89 = por %p87, %p88
      %p90 = scmp.ne.s32.totalorder %s82, %s84
      %p91 = scmp.eq.s32.totalorder %s25, 1
      %p92 = por %p90, %p91
      %p93 = scmp.ne.s32.totalorder %s84, %s85
      %p94 = scmp.eq.s32.totalorder %s25, 0
      %p95 = por %p93, %p94
      %p96 = scmp.ne.s32.totalorder %s84, %s85
      %p97 = scmp.eq.s32.totalorder %s26, 1
      %p98 = por %p96, %p97
      %p100 = scmp.ne.s32.totalorder %s85, %s99
      %p101 = scmp.eq.s32.totalorder %s26, 0
      %p102 = por %p100, %p101
      %s104 = sadd.s32 %s103, 1
      %p107 = scmp.eq.s32.totalorder %s20, 1
      %p108 = scmp.ne.s32.totalorder %s103, %s105
      %p109 = scmp.eq.s32.totalorder %s20, 0
      %p110 = por %p108, %p109
      %p111 = scmp.ne.s32.totalorder %s103, %s105
      %p112 = scmp.eq.s32.totalorder %s25, 1
      %p113 = por %p111, %p112
      %p114 = scmp.ne.s32.totalorder %s105, %s106
      %p115 = scmp.eq.s32.totalorder %s25, 0
      %p116 = por %p114, %p115
      %p117 = scmp.ne.s32.totalorder %s105, %s106
      %p118 = scmp.eq.s32.totalorder %s26, 1
      %p119 = por %p117, %p118
      %p121 = scmp.ne.s32.totalorder %s106, %s120
      %p122 = scmp.eq.s32.totalorder %s26, 0
      %p123 = por %p121, %p122
      %s125 = sadd.s32 %s124, 1
      %p128 = scmp.eq.s32.totalorder %s20, 1
      %p129 = scmp.ne.s32.totalorder %s124, %s126
      %p130 = scmp.eq.s32.totalorder %s20, 0
      %p131 = por %p129, %p130
      %p132 = scmp.ne.s32.totalorder %s124, %s126
      %p133 = scmp.eq.s32.totalorder %s25, 1
      %p134 = por %p132, %p133
      %p135 = scmp.ne.s32.totalorder %s126, %s127
      %p136 = scmp.eq.s32.totalorder %s25, 0
      %p137 = por %p135, %p136
      %p138 = scmp.ne.s32.totalorder %s126, %s127
      %p139 = scmp.eq.s32.totalorder %s26, 1
      %p140 = por %p138, %p139
      %p142 = scmp.ne.s32.totalorder %s127, %s141
      %p143 = scmp.eq.s32.totalorder %s26, 0
      %p144 = por %p142, %p143
      %s146 = sadd.s32 %s145, 1
      %p149 = scmp.eq.s32.totalorder %s20, 1
      %p150 = scmp.ne.s32.totalorder %s145, %s147
      %p151 = scmp.eq.s32.totalorder %s20, 0
      %p152 = por %p150, %p151
      %p153 = scmp.ne.s32.totalorder %s145, %s147
      %p154 = scmp.eq.s32.totalorder %s25, 1
      %p155 = por %p153, %p154
      %p156 = scmp.ne.s32.totalorder %s147, %s148
      %p157 = scmp.eq.s32.totalorder %s25, 0
      %p158 = por %p156, %p157
      %p159 = scmp.ne.s32.totalorder %s147, %s148
      %p160 = scmp.eq.s32.totalorder %s26, 1
      %p161 = por %p159, %p160
      %p163 = scmp.ne.s32.totalorder %s148, %s162
      %p164 = scmp.eq.s32.totalorder %s26, 0
      %p165 = por %p163, %p164
      %s166 = sadd.s32 %s27, %s28
      %s167 = sadd.s32 %s39, %s35
      %s168 = ssub.s32 %s166, %s167
      %p169 = scmp.eq.s32.totalorder %s168, 0
      %s171 = sadd.s32 %s170, 1
      %s172 = scalar_select %p169, %s170, %s171
      %p175 = pneg %p169
      %p176 = scmp.eq.s32.totalorder %s20, 1
      %p177 = por %p175, %p176
      %p178 = scmp.ne.s32.totalorder %s170, %s173
      %p179 = scmp.eq.s32.totalorder %s20, 0
      %p180 = por %p178, %p179
      %p181 = scmp.ne.s32.totalorder %s170, %s173
      %p182 = scmp.eq.s32.totalorder %s25, 1
      %p183 = por %p181, %p182
      %p184 = scmp.ne.s32.totalorder %s173, %s174
      %p185 = scmp.eq.s32.totalorder %s25, 0
      %p186 = por %p184, %p185
      %p187 = scmp.ne.s32.totalorder %s173, %s174
      %p188 = scmp.eq.s32.totalorder %s26, 1
      %p189 = por %p187, %p188
      %p191 = scmp.ne.s32.totalorder %s174, %s190
      %p192 = scmp.eq.s32.totalorder %s26, 0
      %p193 = por %p191, %p192
      %s194 = sadd.s32 %s27, %s28
      %s195 = sadd.s32 %s39, %s35
      %s196 = ssub.s32 %s194, %s195
      %p197 = scmp.eq.s32.totalorder %s196, 0
      %s199 = sadd.s32 %s198, 1
      %s200 = scalar_select %p197, %s198, %s199
      %p203 = pneg %p197
      %p204 = scmp.eq.s32.totalorder %s20, 1
      %p205 = por %p203, %p204
      %p206 = scmp.ne.s32.totalorder %s198, %s201
      %p207 = scmp.eq.s32.totalorder %s20, 0
      %p208 = por %p206, %p207
      %p209 = scmp.ne.s32.totalorder %s198, %s201
      %p210 = scmp.eq.s32.totalorder %s25, 1
      %p211 = por %p209, %p210
      %p212 = scmp.ne.s32.totalorder %s201, %s202
      %p213 = scmp.eq.s32.totalorder %s25, 0
      %p214 = por %p212, %p213
      %p215 = scmp.ne.s32.totalorder %s201, %s202
      %p216 = scmp.eq.s32.totalorder %s26, 1
      %p217 = por %p215, %p216
      %p219 = scmp.ne.s32.totalorder %s202, %s218
      %p220 = scmp.eq.s32.totalorder %s26, 0
      %p221 = por %p219, %p220
      %s223 = sadd.s32 %s222, 1
      %p226 = scmp.eq.s32.totalorder %s20, 1
      %p227 = scmp.ne.s32.totalorder %s222, %s224
      %p228 = scmp.eq.s32.totalorder %s20, 0
      %p229 = por %p227, %p228
      %p230 = scmp.ne.s32.totalorder %s222, %s224
      %p231 = scmp.eq.s32.totalorder %s25, 1
      %p232 = por %p230, %p231
      %p233 = scmp.ne.s32.totalorder %s224, %s225
      %p234 = scmp.eq.s32.totalorder %s25, 0
      %p235 = por %p233, %p234
      %p236 = scmp.ne.s32.totalorder %s224, %s225
      %p237 = scmp.eq.s32.totalorder %s26, 1
      %p238 = por %p236, %p237
      %p240 = scmp.ne.s32.totalorder %s225, %s239
      %p241 = scmp.eq.s32.totalorder %s26, 0
      %p242 = por %p240, %p241
      %s243 = ssub.s32 %s27, %s39
      %p244 = scmp.eq.s32.totalorder %s243, 0
      %s246 = sadd.s32 %s245, 1
      %s247 = scalar_select %p244, %s245, %s246
      %p250 = pneg %p244
      %p251 = scmp.eq.s32.totalorder %s20, 1
      %p252 = por %p250, %p251
      %p253 = scmp.ne.s32.totalorder %s245, %s248
      %p254 = scmp.eq.s32.totalorder %s20, 0
      %p255 = por %p253, %p254
      %p256 = scmp.ne.s32.totalorder %s245, %s248
      %p257 = scmp.eq.s32.totalorder %s25, 1
      %p258 = por %p256, %p257
      %p259 = scmp.ne.s32.totalorder %s248, %s249
      %p260 = scmp.eq.s32.totalorder %s25, 0
      %p261 = por %p259, %p260
      %p262 = scmp.ne.s32.totalorder %s248, %s249
      %p263 = scmp.eq.s32.totalorder %s26, 1
      %p264 = por %p262, %p263
      %p266 = scmp.ne.s32.totalorder %s249, %s265
      %p267 = scmp.eq.s32.totalorder %s26, 0
      %p268 = por %p266, %p267
      %p269 = scmp.le.s32.totalorder 1, %s20
      %p270 = scmp.lt.s32.totalorder %s20, 3
      %p271 = pnand %p269, %p270
      %p272 = pneg %p271
      // Predicated region
      $region9: #{vgg_lstm_ws_forward.1} parent=5 // pred_check
        _
      $region10: #{vgg_lstm_ws_forward.1} parent=5 // pred_check_branch
        %274 = sbr.rel (%p271) target = $region12
      $region11: #{vgg_lstm_ws_forward.1} parent=5 // pred_region
        %s275 = ssub.s32 %s20, 1
        // Predicated region
        $region13: #{vgg_lstm_ws_forward.1} parent=11 // pred_check
          %p276 = pneg %p53
        $region14: #{vgg_lstm_ws_forward.1} parent=11 // pred_check_branch
          %278 = sbr.rel (%p276) target = $region16
        $region15: #{vgg_lstm_ws_forward.1} parent=11 // pred_region
          _
        $region16: #{vgg_lstm_ws_forward.1} parent=11 // pred_fallthru
          _
        // Predicated region
        $region17: #{vgg_lstm_ws_forward.1} parent=11 // pred_check
          %p279 = pneg %p74
        $region18: #{vgg_lstm_ws_forward.1} parent=11 // pred_check_branch
          %281 = sbr.rel (%p279) target = $region20
        $region19: #{vgg_lstm_ws_forward.1} parent=11 // pred_region
          _
        $region20: #{vgg_lstm_ws_forward.1} parent=11 // pred_fallthru
          _
        // Predicated region
        $region21: #{vgg_lstm_ws_forward.1} parent=11 // pred_check
          %p282 = pneg %p95
        $region22: #{vgg_lstm_ws_forward.1} parent=11 // pred_check_branch
          %284 = sbr.rel (%p282) target = $region24
        $region23: #{vgg_lstm_ws_forward.1} parent=11 // pred_region
          _
        $region24: #{vgg_lstm_ws_forward.1} parent=11 // pred_fallthru
          _
        // Predicated region
        $region25: #{vgg_lstm_ws_forward.1} parent=11 // pred_check
          %p285 = pneg %p116
        $region26: #{vgg_lstm_ws_forward.1} parent=11 // pred_check_branch
          %287 = sbr.rel (%p285) target = $region28
        $region27: #{vgg_lstm_ws_forward.1} parent=11 // pred_region
          %s289 = ssub.s32 64, 64
          %290 = vsyncadd [#allocation4], %s289
          %s292 = sshll.u32 [#allocation3], 4
          %s293 = int_to_ptr.vmem [resolvable:$true] %s292
          %295 = dma.hbm_to_vmem [thread:$0]  %s3, 64, %s293, [#allocation4]
        $region28: #{vgg_lstm_ws_forward.1} parent=11 // pred_fallthru
          _
        // Predicated region
        $region29: #{vgg_lstm_ws_forward.1} parent=11 // pred_check
          %p296 = pneg %p137
        $region30: #{vgg_lstm_ws_forward.1} parent=11 // pred_check_branch
          %298 = sbr.rel (%p296) target = $region32
        $region31: #{vgg_lstm_ws_forward.1} parent=11 // pred_region
          %s300 = ssub.s32 16384, 16384
          %301 = vsyncadd [#allocation6], %s300
          %s302 = sshll.u32 [#allocation5], 4
          %s303 = int_to_ptr.vmem [resolvable:$true] %s302
          %308 = dma.hbm_to_vmem [thread:$0]  %s4, 16384, %s303, [#allocation6], 512, 512, 32
        $region32: #{vgg_lstm_ws_forward.1} parent=11 // pred_fallthru
          _
        // Predicated region
        $region33: #{vgg_lstm_ws_forward.1} parent=11 // pred_check
          %p309 = pneg %p158
        $region34: #{vgg_lstm_ws_forward.1} parent=11 // pred_check_branch
          %311 = sbr.rel (%p309) target = $region36
        $region35: #{vgg_lstm_ws_forward.1} parent=11 // pred_region
          %s313 = ssub.s32 64, 64
          %314 = vsyncadd [#allocation6], %s313
          %s316 = sshll.u32 [#allocation7], 4
          %s317 = int_to_ptr.vmem [resolvable:$true] %s316
          %319 = dma.hbm_to_vmem [thread:$0]  %s5, 64, %s317, [#allocation6]
        $region36: #{vgg_lstm_ws_forward.1} parent=11 // pred_fallthru
          _
        // Predicated region
        $region37: #{vgg_lstm_ws_forward.1} parent=11 // pred_check
          %p320 = pneg %p235
        $region38: #{vgg_lstm_ws_forward.1} parent=11 // pred_check_branch
          %322 = sbr.rel (%p320) target = $region40
        $region39: #{vgg_lstm_ws_forward.1} parent=11 // pred_region
          %s324 = ssub.s32 16, 16
          %325 = vsyncadd [#allocation9], %s324
          %s327 = sshll.u32 [#allocation10], 4
          %s328 = int_to_ptr.vmem [resolvable:$true] %s327
          %330 = dma.hbm_to_vmem [thread:$0]  %s8, 16, %s328, [#allocation9]
        $region40: #{vgg_lstm_ws_forward.1} parent=11 // pred_fallthru
          _
      $region12: #{vgg_lstm_ws_forward.1} parent=5 // pred_fallthru
        _
      %p331 = scmp.lt.s32.totalorder %s20, 2
      // Predicated region
      $region41: #{vgg_lstm_ws_forward.1} parent=5 // pred_check
        %p332 = pneg %p331
      $region42: #{vgg_lstm_ws_forward.1} parent=5 // pred_check_branch
        %334 = sbr.rel (%p332) target = $region44
      $region43: #{vgg_lstm_ws_forward.1} parent=5 // pred_region
        // Predicated region
        $region45: #{vgg_lstm_ws_forward.1} parent=43 // pred_check
          %p335 = pneg %p180
        $region46: #{vgg_lstm_ws_forward.1} parent=43 // pred_check_branch
          %337 = sbr.rel (%p335) target = $region48
        $region47: #{vgg_lstm_ws_forward.1} parent=43 // pred_region
          %s338 = sadd.s32 %s27, %s28
          %s339 = smul.u32 4, %s338
          %p340 = scmp.lt.s32.totalorder %s339, 7
          %s341 = scalar_select %p340, %s339, 7
          %s342 = scalar_lea.vmem %s6, %s341
          %s343 = sadd.s32 %s27, %s28
          %s344 = smul.u32 4, %s343
        $region48: #{vgg_lstm_ws_forward.1} parent=43 // pred_fallthru
          _
        // Predicated region
        $region49: #{vgg_lstm_ws_forward.1} parent=43 // pred_check
          %p345 = pneg %p208
        $region50: #{vgg_lstm_ws_forward.1} parent=43 // pred_check_branch
          %347 = sbr.rel (%p345) target = $region52
        $region51: #{vgg_lstm_ws_forward.1} parent=43 // pred_region
          %s348 = sand.u32 %s20, 1
          %s349 = scalar_lea.sflag [#allocation9], %s348
          %s350 = sand.u32 %s198, 1
          %s351 = smul.addr %s350, 256
          %s352 = scalar_lea.vmem [#allocation8], %s351
          %s353 = sadd.s32 %s27, %s28
          %s354 = smul.u32 64, %s353
          %s356 = ssub.s32 4096, 4096
          %357 = vsyncadd %s349, %s356
          %s358 = smul.addr %s354, 64
          %s359 = scalar_lea.hbm %s7, %s358
          %s360 = sshll.u32 %s352, 4
          %s361 = int_to_ptr.vmem [resolvable:$true] %s360
          %366 = dma.hbm_to_vmem [thread:$0]  %s359, 4096, %s361, %s349, 64, 64, 4
        $region52: #{vgg_lstm_ws_forward.1} parent=43 // pred_fallthru
          _
      $region44: #{vgg_lstm_ws_forward.1} parent=5 // pred_fallthru
        _
      %p367 = scmp.le.s32.totalorder 1, %s20
      %p368 = scmp.lt.s32.totalorder %s20, 3
      %p369 = pnand %p367, %p368
      %p370 = pneg %p369
      // Predicated region
      $region53: #{vgg_lstm_ws_forward.1} parent=5 // pred_check
        _
      $region54: #{vgg_lstm_ws_forward.1} parent=5 // pred_check_branch
        %372 = sbr.rel (%p369) target = $region56
      $region55: #{vgg_lstm_ws_forward.1} parent=5 // pred_region
        %s373 = ssub.s32 %s20, 1
        // Predicated region
        $region57: #{vgg_lstm_ws_forward.1} parent=55 // pred_check
          %p374 = pneg %p116
        $region58: #{vgg_lstm_ws_forward.1} parent=55 // pred_check_branch
          %376 = sbr.rel (%p374) target = $region60
        $region59: #{vgg_lstm_ws_forward.1} parent=55 // pred_region
          %377 = dma.done [#allocation4], 64
        $region60: #{vgg_lstm_ws_forward.1} parent=55 // pred_fallthru
          _
        // Predicated region
        $region61: #{vgg_lstm_ws_forward.1} parent=55 // pred_check
          %p378 = pneg %p137
        $region62: #{vgg_lstm_ws_forward.1} parent=55 // pred_check_branch
          %380 = sbr.rel (%p378) target = $region64
        $region63: #{vgg_lstm_ws_forward.1} parent=55 // pred_region
          %381 = dma.done [#allocation6], 16384
        $region64: #{vgg_lstm_ws_forward.1} parent=55 // pred_fallthru
          _
        // Predicated region
        $region65: #{vgg_lstm_ws_forward.1} parent=55 // pred_check
          %p382 = pneg %p158
        $region66: #{vgg_lstm_ws_forward.1} parent=55 // pred_check_branch
          %384 = sbr.rel (%p382) target = $region68
        $region67: #{vgg_lstm_ws_forward.1} parent=55 // pred_region
          %385 = dma.done [#allocation6], 64
        $region68: #{vgg_lstm_ws_forward.1} parent=55 // pred_fallthru
          _
        %s386 = sand.u32 %s25, 1
        %s387 = scalar_lea.sflag [#allocation9], %s386
        %s388 = sand.u32 %s201, 1
        %s389 = smul.addr %s388, 256
        %s390 = scalar_lea.vmem [#allocation8], %s389
        // Predicated region
        $region69: #{vgg_lstm_ws_forward.1} parent=55 // pred_check
          %p391 = pneg %p214
        $region70: #{vgg_lstm_ws_forward.1} parent=55 // pred_check_branch
          %393 = sbr.rel (%p391) target = $region72
        $region71: #{vgg_lstm_ws_forward.1} parent=55 // pred_region
          %394 = dma.done %s387, 4096
        $region72: #{vgg_lstm_ws_forward.1} parent=55 // pred_fallthru
          _
        // Predicated region
        $region73: #{vgg_lstm_ws_forward.1} parent=55 // pred_check
          %p395 = pneg %p235
        $region74: #{vgg_lstm_ws_forward.1} parent=55 // pred_check_branch
          %397 = sbr.rel (%p395) target = $region76
        $region75: #{vgg_lstm_ws_forward.1} parent=55 // pred_region
          %398 = dma.done [#allocation9], 16
        $region76: #{vgg_lstm_ws_forward.1} parent=55 // pred_fallthru
          _
        %p399 = pneg %p53
        %p400 = pneg %p50
        %p401 = pneg %p74
        %p402 = pneg %p71
        %p403 = pneg %p95
        %p404 = pneg %p92
        %p405 = pneg %p116
        %p406 = pneg %p113
        %p407 = pneg %p137
        %p408 = pneg %p134
        %p409 = pneg %p158
        %p410 = pneg %p155
        %s411 = sadd.s32 %s29, %s30
        %s412 = smul.u32 4, %s411
        %p413 = scmp.lt.s32.totalorder %s412, 7
        %s414 = scalar_select %p413, %s412, 7
        %s415 = scalar_lea.vmem %s6, %s414
        %p416 = pneg %p186
        %p417 = pneg %p183
        %s418 = sand.u32 %s25, 1
        %s419 = scalar_lea.sflag [#allocation9], %s418
        %s420 = sand.u32 %s201, 1
        %s421 = smul.addr %s420, 256
        %s422 = scalar_lea.vmem [#allocation8], %s421
        %p423 = pneg %p214
        %p424 = pneg %p211
        %p425 = pneg %p235
        %p426 = pneg %p232
        %p427 = pneg %p261
        %p428 = pneg %p258
        %p429 = scmp.lt.s32.totalorder %s29, 1
        %s430 = scalar_select %p429, %s29, 1
        %s431 = smul.addr %s430, 2
        %s432 = scalar_lea.vmem %s9, %s431
        %s433 = sadd.s32 %s29, %s30
        %s434 = smul.u32 4, %s433
        %p435 = scmp.lt.s32.totalorder %s434, 7
        %s436 = scalar_select %p435, %s434, 7
        %s437 = scalar_lea.vmem %s6, %s436
        %s438 = sadd.s32 %s29, %s30
        %s439 = smul.u32 4, %s438
        %s440 = sadd.s32 %s29, %s30
        %s441 = smul.u32 64, %s440
        %p442 = scmp.lt.s32.totalorder %s29, 1
        %s443 = scalar_select %p442, %s29, 1
        %s444 = smul.addr %s443, 2
        %s445 = scalar_lea.vmem %s9, %s444
        %p447 = scmp.eq.s32.totalorder %s30, 0
        // Predicated region
        $region77: #{vgg_lstm_ws_forward.1} parent=55 // pred_check
          %p448 = pneg %p447
        $region78: #{vgg_lstm_ws_forward.1} parent=55 // pred_check_branch
          %450 = sbr.rel (%p448) target = $region80
        $region79: #{vgg_lstm_ws_forward.1} parent=55 // pred_region
          %451 = vst [vmem:[#allocation2] sm:$0x3] 0.0
        $region80: #{vgg_lstm_ws_forward.1} parent=55 // pred_fallthru
          _
        %p452 = scmp.eq.s32.totalorder %s29, 0
        %p453 = pnand %p447, %p452
        %p454 = pneg %p453
        // Predicated region
        $region81: #{vgg_lstm_ws_forward.1} parent=55 // pred_check
          _
        $region82: #{vgg_lstm_ws_forward.1} parent=55 // pred_check_branch
          %456 = sbr.rel (%p453) target = $region84
        $region83: #{vgg_lstm_ws_forward.1} parent=55 // pred_region
          %v457 = vld [vmem:[%s0] sm:$0xff]
          %v458 = vld [vmem:[%s0 + $0x8] sm:$0xff]
          %v459 = vld [vmem:[%s1] sm:$0xff]
          %v460 = vld [vmem:[%s1 + $0x8] sm:$0xff]
          %v461 = vld [vmem:[%s1 + $0x10] sm:$0xff]
          %v462 = vld [vmem:[%s1 + $0x18] sm:$0xff]
          %v463 = vld [vmem:[%s1 + $0x20] sm:$0xff]
          %v464 = vld [vmem:[%s1 + $0x28] sm:$0xff]
          %v465 = vld [vmem:[%s1 + $0x30] sm:$0xff]
          %v466 = vld [vmem:[%s1 + $0x38] sm:$0xff]
          %v467 = vld [vmem:[%s1 + $0x40] sm:$0xff]
          %v468 = vld [vmem:[%s1 + $0x48] sm:$0xff]
          %v469 = vld [vmem:[%s1 + $0x50] sm:$0xff]
          %v470 = vld [vmem:[%s1 + $0x58] sm:$0xff]
          %v471 = vld [vmem:[%s1 + $0x60] sm:$0x3f]
          %v472 = vld [vmem:[%s1 + $0x68] sm:$0x3f]
          %v473 = vld [vmem:[%s1 + $0x70] sm:$0x3f]
          %v474 = vld [vmem:[%s1 + $0x78] sm:$0x3f]
          %v475 = vld [vmem:[#allocation3] sm:$0xf]
          %v477 = vlaneseq
          %v478 = vshrl.u32 %v477, 7
          %v479 = vsub.s32 0, %v478
          %v480 = vrot.slane %v475, %v479
          %v481 = vlaneseq
          %v482 = vshrl.u32 %v481, 7
          %v483 = vsub.s32 1, %v482
          %v484 = vrot.slane %v475, %v483
          %v485 = vlaneseq
          %v486 = vshrl.u32 %v485, 7
          %v487 = vsub.s32 2, %v486
          %v488 = vrot.slane %v475, %v487
          %v489 = vlaneseq
          %v490 = vshrl.u32 %v489, 7
          %v491 = vsub.s32 3, %v490
          %v492 = vrot.slane %v475, %v491
          %vm497 = vcmask 244736
          %v499 = vsel %vm497, %v457, 0
          %v502 = vsel %vm497, %v458, 0
          %vm504 = vcmask 1045504
          %v506 = vsel %vm504, %v471, 0
          %v509 = vsel %vm504, %v472, 0
          %v512 = vsel %vm504, %v473, 0
          %v515 = vsel %vm504, %v474, 0
          %517 = vmatprep.subr.mxu0 %v460
          %518 = vmatpush1.msra.mxu0 %v459
          %519 = vmatprep.subr.mxu0 %v464
          %520 = vmatpush1.msra.mxu0 %v463
          %521 = vmatprep.subr.mxu0 %v468
          %522 = vmatpush1.msra.mxu0 %v467
          %523 = vmatprep.subr.mxu0 %v509
          %524 = vmatpush1.msra.mxu0 %v506
          %525 = vmatprep.subr.mxu0 0.0
          %526 = vmatpush1.msra.mxu0 0.0
          %527 = vmatprep.subr.mxu0 0.0
          %528 = vmatpush1.msra.mxu0 0.0
          %529 = vmatprep.subr.mxu0 0.0
          %530 = vmatpush1.msra.mxu0 0.0
          %531 = vmatprep.subr.mxu0 0.0
          %532 = vmatpush1.msra.mxu0 0.0
          %533 = vmatprep.subr.mxu0 0.0
          %534 = vmatpush1.msra.mxu0 0.0
          %535 = vmatprep.subr.mxu0 0.0
          %536 = vmatpush1.msra.mxu0 0.0
          %537 = vmatprep.subr.mxu0 0.0
          %538 = vmatpush1.msra.mxu0 0.0
          %539 = vmatprep.subr.mxu0 0.0
          %540 = vmatpush1.msra.mxu0 0.0
          %541 = vmatprep.subr.mxu0 0.0
          %542 = vmatpush1.msra.mxu0 0.0
          %543 = vmatprep.subr.mxu0 0.0
          %544 = vmatpush1.msra.mxu0 0.0
          %545 = vmatprep.subr.mxu0 0.0
          %546 = vmatpush1.msra.mxu0 0.0
          %547 = vmatprep.subr.mxu0 0.0
          %548 = vmatpush1.msra.mxu0 0.0
          %549 = vmatprep.subr.mxu0 0.0
          %550 = vmatpush1.msra.mxu0 0.0
          %551 = vmatprep.subr.mxu0 0.0
          %552 = vmatpush1.msra.mxu0 0.0
          %553 = vmatprep.subr.mxu0 0.0
          %554 = vmatpush1.msra.mxu0 0.0
          %555 = vmatprep.subr.mxu0 0.0
          %556 = vmatpush1.msra.mxu0 0.0
          %557 = vmatprep.subr.mxu0 0.0
          %558 = vmatpush1.msra.mxu0 0.0
          %559 = vmatprep.subr.mxu0 0.0
          %560 = vmatpush1.msra.mxu0 0.0
          %561 = vmatprep.subr.mxu0 0.0
          %562 = vmatpush1.msra.mxu0 0.0
          %563 = vmatprep.subr.mxu0 0.0
          %564 = vmatpush1.msra.mxu0 0.0
          %565 = vmatprep.subr.mxu0 0.0
          %566 = vmatpush1.msra.mxu0 0.0
          %567 = vmatprep.subr.mxu0 0.0
          %568 = vmatpush1.msra.mxu0 0.0
          %569 = vmatprep.subr.mxu0 0.0
          %570 = vmatpush1.msra.mxu0 0.0
          %571 = vmatprep.subr.mxu0 0.0
          %572 = vmatpush1.msra.mxu0 0.0
          %573 = vmatprep.subr.mxu0 0.0
          %574 = vmatpush1.msra.mxu0 0.0
          %575 = vmatprep.subr.mxu0 0.0
          %576 = vmatpush1.msra.mxu0 0.0
          %577 = vmatprep.subr.mxu0 0.0
          %578 = vmatpush1.msra.mxu0 0.0
          %579 = vmatprep.subr.mxu0 0.0
          %580 = vmatpush1.msra.mxu0 0.0
          %581 = vmatprep.mubr.f32.mxu0 0.0
          %582 = vmatmul.mubr.f32.gmra.mrb[0].mxu0 %v499
          %v583 = vpop.f32.mrb[0].mxu0
          %v584 = vadd.f32 %v480, %v583
          %v585 = vpop.f32.mrb[0].mxu0
          %v586 = vadd.f32 %v484, %v585
          %587 = vmatprep.mubr.f32.mxu0 0.0
          %588 = vmatmul.mubr.f32.gmra.mrb[0].mxu0 %v502
          %v589 = vpop.f32.mrb[0].mxu0
          %v590 = vadd.f32 %v480, %v589
          %v591 = vpop.f32.mrb[0].mxu0
          %v592 = vadd.f32 %v484, %v591
          %593 = vdwg.mxu0
          %594 = vmatprep.subr.mxu0 %v462
          %595 = vmatpush1.msra.mxu0 %v461
          %596 = vmatprep.subr.mxu0 %v466
          %597 = vmatpush1.msra.mxu0 %v465
          %598 = vmatprep.subr.mxu0 %v470
          %599 = vmatpush1.msra.mxu0 %v469
          %600 = vmatprep.subr.mxu0 %v515
          %601 = vmatpush1.msra.mxu0 %v512
          %602 = vmatprep.subr.mxu0 0.0
          %603 = vmatpush1.msra.mxu0 0.0
          %604 = vmatprep.subr.mxu0 0.0
          %605 = vmatpush1.msra.mxu0 0.0
          %606 = vmatprep.subr.mxu0 0.0
          %607 = vmatpush1.msra.mxu0 0.0
          %608 = vmatprep.subr.mxu0 0.0
          %609 = vmatpush1.msra.mxu0 0.0
          %610 = vmatprep.subr.mxu0 0.0
          %611 = vmatpush1.msra.mxu0 0.0
          %612 = vmatprep.subr.mxu0 0.0
          %613 = vmatpush1.msra.mxu0 0.0
          %614 = vmatprep.subr.mxu0 0.0
          %615 = vmatpush1.msra.mxu0 0.0
          %616 = vmatprep.subr.mxu0 0.0
          %617 = vmatpush1.msra.mxu0 0.0
          %618 = vmatprep.subr.mxu0 0.0
          %619 = vmatpush1.msra.mxu0 0.0
          %620 = vmatprep.subr.mxu0 0.0
          %621 = vmatpush1.msra.mxu0 0.0
          %622 = vmatprep.subr.mxu0 0.0
          %623 = vmatpush1.msra.mxu0 0.0
          %624 = vmatprep.subr.mxu0 0.0
          %625 = vmatpush1.msra.mxu0 0.0
          %626 = vmatprep.subr.mxu0 0.0
          %627 = vmatpush1.msra.mxu0 0.0
          %628 = vmatprep.subr.mxu0 0.0
          %629 = vmatpush1.msra.mxu0 0.0
          %630 = vmatprep.subr.mxu0 0.0
          %631 = vmatpush1.msra.mxu0 0.0
          %632 = vmatprep.subr.mxu0 0.0
          %633 = vmatpush1.msra.mxu0 0.0
          %634 = vmatprep.subr.mxu0 0.0
          %635 = vmatpush1.msra.mxu0 0.0
          %636 = vmatprep.subr.mxu0 0.0
          %637 = vmatpush1.msra.mxu0 0.0
          %638 = vmatprep.subr.mxu0 0.0
          %639 = vmatpush1.msra.mxu0 0.0
          %640 = vmatprep.subr.mxu0 0.0
          %641 = vmatpush1.msra.mxu0 0.0
          %642 = vmatprep.subr.mxu0 0.0
          %643 = vmatpush1.msra.mxu0 0.0
          %644 = vmatprep.subr.mxu0 0.0
          %645 = vmatpush1.msra.mxu0 0.0
          %646 = vmatprep.subr.mxu0 0.0
          %647 = vmatpush1.msra.mxu0 0.0
          %648 = vmatprep.subr.mxu0 0.0
          %649 = vmatpush1.msra.mxu0 0.0
          %650 = vmatprep.subr.mxu0 0.0
          %651 = vmatpush1.msra.mxu0 0.0
          %652 = vmatprep.subr.mxu0 0.0
          %653 = vmatpush1.msra.mxu0 0.0
          %654 = vmatprep.subr.mxu0 0.0
          %655 = vmatpush1.msra.mxu0 0.0
          %656 = vmatprep.subr.mxu0 0.0
          %657 = vmatpush1.msra.mxu0 0.0
          %658 = vmatprep.mubr.f32.mxu0 0.0
          %659 = vmatmul.mubr.f32.gmra.mrb[0].mxu0 %v499
          %v660 = vpop.f32.mrb[0].mxu0
          %v661 = vadd.f32 %v488, %v660
          %v662 = vpop.f32.mrb[0].mxu0
          %v663 = vadd.f32 %v492, %v662
          %664 = vmatprep.mubr.f32.mxu0 0.0
          %665 = vmatmul.mubr.f32.gmra.mrb[0].mxu0 %v502
          %v666 = vpop.f32.mrb[0].mxu0
          %v667 = vadd.f32 %v488, %v666
          %v668 = vpop.f32.mrb[0].mxu0
          %v669 = vadd.f32 %v492, %v668
          %670 = vdwg.mxu0
          %v671 = vld [vmem:[%s2] sm:$0xff]
          %v672 = vld [vmem:[%s2 + $0x8] sm:$0xff]
          %v673 = vld [vmem:[%s2 + $0x10] sm:$0xff]
          %v674 = vld [vmem:[%s2 + $0x18] sm:$0xff]
          %v675 = vld [vmem:[%s2 + $0x20] sm:$0xff]
          %v676 = vld [vmem:[%s2 + $0x28] sm:$0xff]
          %v677 = vld [vmem:[%s2 + $0x30] sm:$0xff]
          %v678 = vld [vmem:[%s2 + $0x38] sm:$0xff]
          %v679 = vld [vmem:[%s2 + $0x40] sm:$0xff]
          %v680 = vld [vmem:[%s2 + $0x48] sm:$0xff]
          %v681 = vld [vmem:[%s2 + $0x50] sm:$0xff]
          %v682 = vld [vmem:[%s2 + $0x58] sm:$0xff]
          %v683 = vld [vmem:[%s2 + $0x60] sm:$0xff]
          %v684 = vld [vmem:[%s2 + $0x68] sm:$0xff]
          %v685 = vld [vmem:[%s2 + $0x70] sm:$0xff]
          %v686 = vld [vmem:[%s2 + $0x78] sm:$0xff]
          %v687 = vld [vmem:[%s2 + $0x80] sm:$0xff]
          %v688 = vld [vmem:[%s2 + $0x88] sm:$0xff]
          %v689 = vld [vmem:[%s2 + $0x90] sm:$0xff]
          %v690 = vld [vmem:[%s2 + $0x98] sm:$0xff]
          %v691 = vld [vmem:[%s2 + $0xa0] sm:$0xff]
          %v692 = vld [vmem:[%s2 + $0xa8] sm:$0xff]
          %v693 = vld [vmem:[%s2 + $0xb0] sm:$0xff]
          %v694 = vld [vmem:[%s2 + $0xb8] sm:$0xff]
          %v695 = vld [vmem:[%s2 + $0xc0] sm:$0xff]
          %v696 = vld [vmem:[%s2 + $0xc8] sm:$0xff]
          %v697 = vld [vmem:[%s2 + $0xd0] sm:$0xff]
          %v698 = vld [vmem:[%s2 + $0xd8] sm:$0xff]
          %v699 = vld [vmem:[%s2 + $0xe0] sm:$0xff]
          %v700 = vld [vmem:[%s2 + $0xe8] sm:$0xff]
          %v701 = vld [vmem:[%s2 + $0xf0] sm:$0xff]
          %v702 = vld [vmem:[%s2 + $0xf8] sm:$0xff]
          %v703 = vld [vmem:[%s2 + $0x100] sm:$0xff]
          %v704 = vld [vmem:[%s2 + $0x108] sm:$0xff]
          %v705 = vld [vmem:[%s2 + $0x110] sm:$0xff]
          %v706 = vld [vmem:[%s2 + $0x118] sm:$0xff]
          %v707 = vld [vmem:[%s2 + $0x120] sm:$0xff]
          %v708 = vld [vmem:[%s2 + $0x128] sm:$0xff]
          %v709 = vld [vmem:[%s2 + $0x130] sm:$0xff]
          %v710 = vld [vmem:[%s2 + $0x138] sm:$0xff]
          %v711 = vld [vmem:[%s2 + $0x140] sm:$0xff]
          %v712 = vld [vmem:[%s2 + $0x148] sm:$0xff]
          %v713 = vld [vmem:[%s2 + $0x150] sm:$0xff]
          %v714 = vld [vmem:[%s2 + $0x158] sm:$0xff]
          %v715 = vld [vmem:[%s2 + $0x160] sm:$0xff]
          %v716 = vld [vmem:[%s2 + $0x168] sm:$0xff]
          %v717 = vld [vmem:[%s2 + $0x170] sm:$0xff]
          %v718 = vld [vmem:[%s2 + $0x178] sm:$0xff]
          %v719 = vld [vmem:[%s2 + $0x180] sm:$0xff]
          %v720 = vld [vmem:[%s2 + $0x188] sm:$0xff]
          %v721 = vld [vmem:[%s2 + $0x190] sm:$0xff]
          %v722 = vld [vmem:[%s2 + $0x198] sm:$0xff]
          %v723 = vld [vmem:[%s2 + $0x1a0] sm:$0xff]
          %v724 = vld [vmem:[%s2 + $0x1a8] sm:$0xff]
          %v725 = vld [vmem:[%s2 + $0x1b0] sm:$0xff]
          %v726 = vld [vmem:[%s2 + $0x1b8] sm:$0xff]
          %v727 = vld [vmem:[%s2 + $0x1c0] sm:$0xff]
          %v728 = vld [vmem:[%s2 + $0x1c8] sm:$0xff]
          %v729 = vld [vmem:[%s2 + $0x1d0] sm:$0xff]
          %v730 = vld [vmem:[%s2 + $0x1d8] sm:$0xff]
          %v731 = vld [vmem:[%s2 + $0x1e0] sm:$0xff]
          %v732 = vld [vmem:[%s2 + $0x1e8] sm:$0xff]
          %v733 = vld [vmem:[%s2 + $0x1f0] sm:$0xff]
          %v734 = vld [vmem:[%s2 + $0x1f8] sm:$0xff]
          %v735 = vld [vmem:[#allocation5] sm:$0xff]
          %v736 = vld [vmem:[#allocation5 + $0x8] sm:$0xff]
          %v737 = vld [vmem:[#allocation5 + $0x10] sm:$0xff]
          %v738 = vld [vmem:[#allocation5 + $0x18] sm:$0xff]
          %v739 = vld [vmem:[#allocation5 + $0x20] sm:$0xff]
          %v740 = vld [vmem:[#allocation5 + $0x28] sm:$0xff]
          %v741 = vld [vmem:[#allocation5 + $0x30] sm:$0xff]
          %v742 = vld [vmem:[#allocation5 + $0x38] sm:$0xff]
          %v743 = vld [vmem:[#allocation5 + $0x40] sm:$0xff]
          %v744 = vld [vmem:[#allocation5 + $0x48] sm:$0xff]
          %v745 = vld [vmem:[#allocation5 + $0x50] sm:$0xff]
          %v746 = vld [vmem:[#allocation5 + $0x58] sm:$0xff]
          %v747 = vld [vmem:[#allocation5 + $0x60] sm:$0xff]
          %v748 = vld [vmem:[#allocation5 + $0x68] sm:$0xff]
          %v749 = vld [vmem:[#allocation5 + $0x70] sm:$0xff]
          %v750 = vld [vmem:[#allocation5 + $0x78] sm:$0xff]
          %v751 = vld [vmem:[#allocation5 + $0x80] sm:$0xff]
          %v752 = vld [vmem:[#allocation5 + $0x88] sm:$0xff]
          %v753 = vld [vmem:[#allocation5 + $0x90] sm:$0xff]
          %v754 = vld [vmem:[#allocation5 + $0x98] sm:$0xff]
          %v755 = vld [vmem:[#allocation5 + $0xa0] sm:$0xff]
          %v756 = vld [vmem:[#allocation5 + $0xa8] sm:$0xff]
          %v757 = vld [vmem:[#allocation5 + $0xb0] sm:$0xff]
          %v758 = vld [vmem:[#allocation5 + $0xb8] sm:$0xff]
          %v759 = vld [vmem:[#allocation5 + $0xc0] sm:$0xff]
          %v760 = vld [vmem:[#allocation5 + $0xc8] sm:$0xff]
          %v761 = vld [vmem:[#allocation5 + $0xd0] sm:$0xff]
          %v762 = vld [vmem:[#allocation5 + $0xd8] sm:$0xff]
          %v763 = vld [vmem:[#allocation5 + $0xe0] sm:$0xff]
          %v764 = vld [vmem:[#allocation5 + $0xe8] sm:$0xff]
          %v765 = vld [vmem:[#allocation5 + $0xf0] sm:$0xff]
          %v766 = vld [vmem:[#allocation5 + $0xf8] sm:$0xff]
          %v767 = vld [vmem:[#allocation5 + $0x100] sm:$0xff]
          %v768 = vld [vmem:[#allocation5 + $0x108] sm:$0xff]
          %v769 = vld [vmem:[#allocation5 + $0x110] sm:$0xff]
          %v770 = vld [vmem:[#allocation5 + $0x118] sm:$0xff]
          %v771 = vld [vmem:[#allocation5 + $0x120] sm:$0xff]
          %v772 = vld [vmem:[#allocation5 + $0x128] sm:$0xff]
          %v773 = vld [vmem:[#allocation5 + $0x130] sm:$0xff]
          %v774 = vld [vmem:[#allocation5 + $0x138] sm:$0xff]
          %v775 = vld [vmem:[#allocation5 + $0x140] sm:$0xff]
          %v776 = vld [vmem:[#allocation5 + $0x148] sm:$0xff]
          %v777 = vld [vmem:[#allocation5 + $0x150] sm:$0xff]
          %v778 = vld [vmem:[#allocation5 + $0x158] sm:$0xff]
          %v779 = vld [vmem:[#allocation5 + $0x160] sm:$0xff]
          %v780 = vld [vmem:[#allocation5 + $0x168] sm:$0xff]
          %v781 = vld [vmem:[#allocation5 + $0x170] sm:$0xff]
          %v782 = vld [vmem:[#allocation5 + $0x178] sm:$0xff]
          %v783 = vld [vmem:[#allocation5 + $0x180] sm:$0xff]
          %v784 = vld [vmem:[#allocation5 + $0x188] sm:$0xff]
          %v785 = vld [vmem:[#allocation5 + $0x190] sm:$0xff]
          %v786 = vld [vmem:[#allocation5 + $0x198] sm:$0xff]
          %v787 = vld [vmem:[#allocation5 + $0x1a0] sm:$0xff]
          %v788 = vld [vmem:[#allocation5 + $0x1a8] sm:$0xff]
          %v789 = vld [vmem:[#allocation5 + $0x1b0] sm:$0xff]
          %v790 = vld [vmem:[#allocation5 + $0x1b8] sm:$0xff]
          %v791 = vld [vmem:[#allocation5 + $0x1c0] sm:$0xff]
          %v792 = vld [vmem:[#allocation5 + $0x1c8] sm:$0xff]
          %v793 = vld [vmem:[#allocation5 + $0x1d0] sm:$0xff]
          %v794 = vld [vmem:[#allocation5 + $0x1d8] sm:$0xff]
          %v795 = vld [vmem:[#allocation5 + $0x1e0] sm:$0xff]
          %v796 = vld [vmem:[#allocation5 + $0x1e8] sm:$0xff]
          %v797 = vld [vmem:[#allocation5 + $0x1f0] sm:$0xff]
          %v798 = vld [vmem:[#allocation5 + $0x1f8] sm:$0xff]
          %v799 = vld [vmem:[#allocation5 + $0x200] sm:$0xff]
          %v800 = vld [vmem:[#allocation5 + $0x208] sm:$0xff]
          %v801 = vld [vmem:[#allocation5 + $0x210] sm:$0xff]
          %v802 = vld [vmem:[#allocation5 + $0x218] sm:$0xff]
          %v803 = vld [vmem:[#allocation5 + $0x220] sm:$0xff]
          %v804 = vld [vmem:[#allocation5 + $0x228] sm:$0xff]
          %v805 = vld [vmem:[#allocation5 + $0x230] sm:$0xff]
          %v806 = vld [vmem:[#allocation5 + $0x238] sm:$0xff]
          %v807 = vld [vmem:[#allocation5 + $0x240] sm:$0xff]
          %v808 = vld [vmem:[#allocation5 + $0x248] sm:$0xff]
          %v809 = vld [vmem:[#allocation5 + $0x250] sm:$0xff]
          %v810 = vld [vmem:[#allocation5 + $0x258] sm:$0xff]
          %v811 = vld [vmem:[#allocation5 + $0x260] sm:$0xff]
          %v812 = vld [vmem:[#allocation5 + $0x268] sm:$0xff]
          %v813 = vld [vmem:[#allocation5 + $0x270] sm:$0xff]
          %v814 = vld [vmem:[#allocation5 + $0x278] sm:$0xff]
          %v815 = vld [vmem:[#allocation5 + $0x280] sm:$0xff]
          %v816 = vld [vmem:[#allocation5 + $0x288] sm:$0xff]
          %v817 = vld [vmem:[#allocation5 + $0x290] sm:$0xff]
          %v818 = vld [vmem:[#allocation5 + $0x298] sm:$0xff]
          %v819 = vld [vmem:[#allocation5 + $0x2a0] sm:$0xff]
          %v820 = vld [vmem:[#allocation5 + $0x2a8] sm:$0xff]
          %v821 = vld [vmem:[#allocation5 + $0x2b0] sm:$0xff]
          %v822 = vld [vmem:[#allocation5 + $0x2b8] sm:$0xff]
          %v823 = vld [vmem:[#allocation5 + $0x2c0] sm:$0xff]
          %v824 = vld [vmem:[#allocation5 + $0x2c8] sm:$0xff]
          %v825 = vld [vmem:[#allocation5 + $0x2d0] sm:$0xff]
          %v826 = vld [vmem:[#allocation5 + $0x2d8] sm:$0xff]
          %v827 = vld [vmem:[#allocation5 + $0x2e0] sm:$0xff]
          %v828 = vld [vmem:[#allocation5 + $0x2e8] sm:$0xff]
          %v829 = vld [vmem:[#allocation5 + $0x2f0] sm:$0xff]
          %v830 = vld [vmem:[#allocation5 + $0x2f8] sm:$0xff]
          %v831 = vld [vmem:[#allocation5 + $0x300] sm:$0xff]
          %v832 = vld [vmem:[#allocation5 + $0x308] sm:$0xff]
          %v833 = vld [vmem:[#allocation5 + $0x310] sm:$0xff]
          %v834 = vld [vmem:[#allocation5 + $0x318] sm:$0xff]
          %v835 = vld [vmem:[#allocation5 + $0x320] sm:$0xff]
          %v836 = vld [vmem:[#allocation5 + $0x328] sm:$0xff]
          %v837 = vld [vmem:[#allocation5 + $0x330] sm:$0xff]
          %v838 = vld [vmem:[#allocation5 + $0x338] sm:$0xff]
          %v839 = vld [vmem:[#allocation5 + $0x340] sm:$0xff]
          %v840 = vld [vmem:[#allocation5 + $0x348] sm:$0xff]
          %v841 = vld [vmem:[#allocation5 + $0x350] sm:$0xff]
          %v842 = vld [vmem:[#allocation5 + $0x358] sm:$0xff]
          %v843 = vld [vmem:[#allocation5 + $0x360] sm:$0xff]
          %v844 = vld [vmem:[#allocation5 + $0x368] sm:$0xff]
          %v845 = vld [vmem:[#allocation5 + $0x370] sm:$0xff]
          %v846 = vld [vmem:[#allocation5 + $0x378] sm:$0xff]
          %v847 = vld [vmem:[#allocation5 + $0x380] sm:$0xff]
          %v848 = vld [vmem:[#allocation5 + $0x388] sm:$0xff]
          %v849 = vld [vmem:[#allocation5 + $0x390] sm:$0xff]
          %v850 = vld [vmem:[#allocation5 + $0x398] sm:$0xff]
          %v851 = vld [vmem:[#allocation5 + $0x3a0] sm:$0xff]
          %v852 = vld [vmem:[#allocation5 + $0x3a8] sm:$0xff]
          %v853 = vld [vmem:[#allocation5 + $0x3b0] sm:$0xff]
          %v854 = vld [vmem:[#allocation5 + $0x3b8] sm:$0xff]
          %v855 = vld [vmem:[#allocation5 + $0x3c0] sm:$0xff]
          %v856 = vld [vmem:[#allocation5 + $0x3c8] sm:$0xff]
          %v857 = vld [vmem:[#allocation5 + $0x3d0] sm:$0xff]
          %v858 = vld [vmem:[#allocation5 + $0x3d8] sm:$0xff]
          %v859 = vld [vmem:[#allocation5 + $0x3e0] sm:$0xff]
          %v860 = vld [vmem:[#allocation5 + $0x3e8] sm:$0xff]
          %v861 = vld [vmem:[#allocation5 + $0x3f0] sm:$0xff]
          %v862 = vld [vmem:[#allocation5 + $0x3f8] sm:$0xff]
          %v863 = vld [vmem:[#allocation7] sm:$0xf]
          %864 = vmatprep.subr.mxu0 %v672
          %865 = vmatpush1.msra.mxu0 %v671
          %866 = vmatprep.subr.mxu0 %v676
          %867 = vmatpush1.msra.mxu0 %v675
          %868 = vmatprep.subr.mxu0 %v680
          %869 = vmatpush1.msra.mxu0 %v679
          %870 = vmatprep.subr.mxu0 %v684
          %871 = vmatpush1.msra.mxu0 %v683
          %872 = vmatprep.subr.mxu0 %v688
          %873 = vmatpush1.msra.mxu0 %v687
          %874 = vmatprep.subr.mxu0 %v692
          %875 = vmatpush1.msra.mxu0 %v691
          %876 = vmatprep.subr.mxu0 %v696
          %877 = vmatpush1.msra.mxu0 %v695
          %878 = vmatprep.subr.mxu0 %v700
          %879 = vmatpush1.msra.mxu0 %v699
          %880 = vmatprep.subr.mxu0 %v704
          %881 = vmatpush1.msra.mxu0 %v703
          %882 = vmatprep.subr.mxu0 %v708
          %883 = vmatpush1.msra.mxu0 %v707
          %884 = vmatprep.subr.mxu0 %v712
          %885 = vmatpush1.msra.mxu0 %v711
          %886 = vmatprep.subr.mxu0 %v716
          %887 = vmatpush1.msra.mxu0 %v715
          %888 = vmatprep.subr.mxu0 %v720
          %889 = vmatpush1.msra.mxu0 %v719
          %890 = vmatprep.subr.mxu0 %v724
          %891 = vmatpush1.msra.mxu0 %v723
          %892 = vmatprep.subr.mxu0 %v728
          %893 = vmatpush1.msra.mxu0 %v727
          %894 = vmatprep.subr.mxu0 %v732
          %895 = vmatpush1.msra.mxu0 %v731
          %896 = vmatprep.subr.mxu0 0.0
          %897 = vmatpush1.msra.mxu0 0.0
          %898 = vmatprep.subr.mxu0 0.0
          %899 = vmatpush1.msra.mxu0 0.0
          %900 = vmatprep.subr.mxu0 0.0
          %901 = vmatpush1.msra.mxu0 0.0
          %902 = vmatprep.subr.mxu0 0.0
          %903 = vmatpush1.msra.mxu0 0.0
          %904 = vmatprep.subr.mxu0 0.0
          %905 = vmatpush1.msra.mxu0 0.0
          %906 = vmatprep.subr.mxu0 0.0
          %907 = vmatpush1.msra.mxu0 0.0
          %908 = vmatprep.subr.mxu0 0.0
          %909 = vmatpush1.msra.mxu0 0.0
          %910 = vmatprep.subr.mxu0 0.0
          %911 = vmatpush1.msra.mxu0 0.0
          %912 = vmatprep.subr.mxu0 0.0
          %913 = vmatpush1.msra.mxu0 0.0
          %914 = vmatprep.subr.mxu0 0.0
          %915 = vmatpush1.msra.mxu0 0.0
          %916 = vmatprep.subr.mxu0 0.0
          %917 = vmatpush1.msra.mxu0 0.0
          %918 = vmatprep.subr.mxu0 0.0
          %919 = vmatpush1.msra.mxu0 0.0
          %920 = vmatprep.subr.mxu0 0.0
          %921 = vmatpush1.msra.mxu0 0.0
          %922 = vmatprep.subr.mxu0 0.0
          %923 = vmatpush1.msra.mxu0 0.0
          %924 = vmatprep.subr.mxu0 0.0
          %925 = vmatpush1.msra.mxu0 0.0
          %926 = vmatprep.subr.mxu0 0.0
          %927 = vmatpush1.msra.mxu0 0.0
          %928 = vmatprep.mubr.f32.mxu0 0.0
          %929 = vmatmul.mubr.f32.gmra.mrb[0].mxu0 0.0
          %v930 = vpop.f32.mrb[0].mxu0
          %v931 = vadd.f32 0.0, %v930
          %v932 = vpop.f32.mrb[0].mxu0
          %v933 = vadd.f32 0.0, %v932
          %934 = vdwg.mxu0
          %935 = vmatprep.subr.mxu0 %v674
          %936 = vmatpush1.msra.mxu0 %v673
          %937 = vmatprep.subr.mxu0 %v678
          %938 = vmatpush1.msra.mxu0 %v677
          %939 = vmatprep.subr.mxu0 %v682
          %940 = vmatpush1.msra.mxu0 %v681
          %941 = vmatprep.subr.mxu0 %v686
          %942 = vmatpush1.msra.mxu0 %v685
          %943 = vmatprep.subr.mxu0 %v690
          %944 = vmatpush1.msra.mxu0 %v689
          %945 = vmatprep.subr.mxu0 %v694
          %946 = vmatpush1.msra.mxu0 %v693
          %947 = vmatprep.subr.mxu0 %v698
          %948 = vmatpush1.msra.mxu0 %v697
          %949 = vmatprep.subr.mxu0 %v702
          %950 = vmatpush1.msra.mxu0 %v701
          %951 = vmatprep.subr.mxu0 %v706
          %952 = vmatpush1.msra.mxu0 %v705
          %953 = vmatprep.subr.mxu0 %v710
          %954 = vmatpush1.msra.mxu0 %v709
          %955 = vmatprep.subr.mxu0 %v714
          %956 = vmatpush1.msra.mxu0 %v713
          %957 = vmatprep.subr.mxu0 %v718
          %958 = vmatpush1.msra.mxu0 %v717
          %959 = vmatprep.subr.mxu0 %v722
          %960 = vmatpush1.msra.mxu0 %v721
          %961 = vmatprep.subr.mxu0 %v726
          %962 = vmatpush1.msra.mxu0 %v725
          %963 = vmatprep.subr.mxu0 %v730
          %964 = vmatpush1.msra.mxu0 %v729
          %965 = vmatprep.subr.mxu0 %v734
          %966 = vmatpush1.msra.mxu0 %v733
          %967 = vmatprep.subr.mxu0 0.0
          %968 = vmatpush1.msra.mxu0 0.0
          %969 = vmatprep.subr.mxu0 0.0
          %970 = vmatpush1.msra.mxu0 0.0
          %971 = vmatprep.subr.mxu0 0.0
          %972 = vmatpush1.msra.mxu0 0.0
          %973 = vmatprep.subr.mxu0 0.0
          %974 = vmatpush1.msra.mxu0 0.0
          %975 = vmatprep.subr.mxu0 0.0
          %976 = vmatpush1.msra.mxu0 0.0
          %977 = vmatprep.subr.mxu0 0.0
          %978 = vmatpush1.msra.mxu0 0.0
          %979 = vmatprep.subr.mxu0 0.0
          %980 = vmatpush1.msra.mxu0 0.0
          %981 = vmatprep.subr.mxu0 0.0
          %982 = vmatpush1.msra.mxu0 0.0
          %983 = vmatprep.subr.mxu0 0.0
          %984 = vmatpush1.msra.mxu0 0.0
          %985 = vmatprep.subr.mxu0 0.0
          %986 = vmatpush1.msra.mxu0 0.0
          %987 = vmatprep.subr.mxu0 0.0
          %988 = vmatpush1.msra.mxu0 0.0
          %989 = vmatprep.subr.mxu0 0.0
          %990 = vmatpush1.msra.mxu0 0.0
          %991 = vmatprep.subr.mxu0 0.0
          %992 = vmatpush1.msra.mxu0 0.0
          %993 = vmatprep.subr.mxu0 0.0
          %994 = vmatpush1.msra.mxu0 0.0
          %995 = vmatprep.subr.mxu0 0.0
          %996 = vmatpush1.msra.mxu0 0.0
          %997 = vmatprep.subr.mxu0 0.0
          %998 = vmatpush1.msra.mxu0 0.0
          %999 = vmatprep.mubr.f32.mxu0 0.0
          %1000 = vmatmul.mubr.f32.gmra.mrb[0].mxu0 0.0
          %v1001 = vpop.f32.mrb[0].mxu0
          %v1002 = vadd.f32 0.0, %v1001
          %v1003 = vpop.f32.mrb[0].mxu0
          %v1004 = vadd.f32 0.0, %v1003
          %1005 = vdwg.mxu0
          %v1006 = vadd.f32 %v584, %v931
          %v1007 = vadd.f32 %v586, %v933
          %v1008 = vadd.f32 %v661, %v1002
          %v1009 = vadd.f32 %v663, %v1004
          %v1010 = vxor.u32 %v1006, 2147483648
          %v1011 = vmul.f32 %v1010, 1.442695
          %v1012 = vpow.pop %v1011
          %v1013 = vadd.f32 %v1012, 1.0
          %v1014 = vrcp.pop %v1013
          %v1015 = vmul.f32 1.0, %v1014
          %v1016 = vxor.u32 %v1007, 2147483648
          %v1017 = vmul.f32 %v1016, 1.442695
          %v1018 = vpow.pop %v1017
          %v1019 = vadd.f32 %v1018, 1.0
          %v1020 = vrcp.pop %v1019
          %v1021 = vmul.f32 1.0, %v1020
          %v1022 = vtanh.pop %v1008
          %v1023 = vxor.u32 %v1009, 2147483648
          %v1024 = vmul.f32 %v1023, 1.442695
          %v1025 = vpow.pop %v1024
          %v1026 = vadd.f32 %v1025, 1.0
          %v1027 = vrcp.pop %v1026
          %v1028 = vmul.f32 1.0, %v1027
          %v1029 = vmul.f32 %v1021, 0.0
          %v1030 = vmul.f32 %v1015, %v1022
          %v1031 = vadd.f32 %v1029, %v1030
          %v1032 = vtanh.pop %v1031
          %v1033 = vmul.f32 %v1028, %v1032
          %v1035 = vlaneseq
          %v1036 = vshrl.u32 %v1035, 7
          %v1037 = vsub.s32 0, %v1036
          %v1038 = vrot.slane %v863, %v1037
          %v1039 = vlaneseq
          %v1040 = vshrl.u32 %v1039, 7
          %v1041 = vsub.s32 1, %v1040
          %v1042 = vrot.slane %v863, %v1041
          %v1043 = vlaneseq
          %v1044 = vshrl.u32 %v1043, 7
          %v1045 = vsub.s32 2, %v1044
          %v1046 = vrot.slane %v863, %v1045
          %v1047 = vlaneseq
          %v1048 = vshrl.u32 %v1047, 7
          %v1049 = vsub.s32 3, %v1048
          %v1050 = vrot.slane %v863, %v1049
          %1055 = vmatprep.subr.mxu0 %v736
          %1056 = vmatpush1.msra.mxu0 %v735
          %1057 = vmatprep.subr.mxu0 %v740
          %1058 = vmatpush1.msra.mxu0 %v739
          %1059 = vmatprep.subr.mxu0 %v744
          %1060 = vmatpush1.msra.mxu0 %v743
          %1061 = vmatprep.subr.mxu0 %v748
          %1062 = vmatpush1.msra.mxu0 %v747
          %1063 = vmatprep.subr.mxu0 %v752
          %1064 = vmatpush1.msra.mxu0 %v751
          %1065 = vmatprep.subr.mxu0 %v756
          %1066 = vmatpush1.msra.mxu0 %v755
          %1067 = vmatprep.subr.mxu0 %v760
          %1068 = vmatpush1.msra.mxu0 %v759
          %1069 = vmatprep.subr.mxu0 %v764
          %1070 = vmatpush1.msra.mxu0 %v763
          %1071 = vmatprep.subr.mxu0 %v768
          %1072 = vmatpush1.msra.mxu0 %v767
          %1073 = vmatprep.subr.mxu0 %v772
          %1074 = vmatpush1.msra.mxu0 %v771
          %1075 = vmatprep.subr.mxu0 %v776
          %1076 = vmatpush1.msra.mxu0 %v775
          %1077 = vmatprep.subr.mxu0 %v780
          %1078 = vmatpush1.msra.mxu0 %v779
          %1079 = vmatprep.subr.mxu0 %v784
          %1080 = vmatpush1.msra.mxu0 %v783
          %1081 = vmatprep.subr.mxu0 %v788
          %1082 = vmatpush1.msra.mxu0 %v787
          %1083 = vmatprep.subr.mxu0 %v792
          %1084 = vmatpush1.msra.mxu0 %v791
          %1085 = vmatprep.subr.mxu0 %v796
          %1086 = vmatpush1.msra.mxu0 %v795
          %1087 = vmatprep.subr.mxu0 %v800
          %1088 = vmatpush1.msra.mxu0 %v799
          %1089 = vmatprep.subr.mxu0 %v804
          %1090 = vmatpush1.msra.mxu0 %v803
          %1091 = vmatprep.subr.mxu0 %v808
          %1092 = vmatpush1.msra.mxu0 %v807
          %1093 = vmatprep.subr.mxu0 %v812
          %1094 = vmatpush1.msra.mxu0 %v811
          %1095 = vmatprep.subr.mxu0 %v816
          %1096 = vmatpush1.msra.mxu0 %v815
          %1097 = vmatprep.subr.mxu0 %v820
          %1098 = vmatpush1.msra.mxu0 %v819
          %1099 = vmatprep.subr.mxu0 %v824
          %1100 = vmatpush1.msra.mxu0 %v823
          %1101 = vmatprep.subr.mxu0 %v828
          %1102 = vmatpush1.msra.mxu0 %v827
          %1103 = vmatprep.subr.mxu0 %v832
          %1104 = vmatpush1.msra.mxu0 %v831
          %1105 = vmatprep.subr.mxu0 %v836
          %1106 = vmatpush1.msra.mxu0 %v835
          %1107 = vmatprep.subr.mxu0 %v840
          %1108 = vmatpush1.msra.mxu0 %v839
          %1109 = vmatprep.subr.mxu0 %v844
          %1110 = vmatpush1.msra.mxu0 %v843
          %1111 = vmatprep.subr.mxu0 %v848
          %1112 = vmatpush1.msra.mxu0 %v847
          %1113 = vmatprep.subr.mxu0 %v852
          %1114 = vmatpush1.msra.mxu0 %v851
          %1115 = vmatprep.subr.mxu0 %v856
          %1116 = vmatpush1.msra.mxu0 %v855
          %1117 = vmatprep.subr.mxu0 %v860
          %1118 = vmatpush1.msra.mxu0 %v859
          %1119 = vmatprep.mubr.f32.mxu0 0.0
          %1120 = vmatmul.mubr.f32.gmra.mrb[0].mxu0 %v1033
          %v1121 = vpop.f32.mrb[0].mxu0
          %v1122 = vadd.f32 %v1038, %v1121
          %v1123 = vpop.f32.mrb[0].mxu0
          %v1124 = vadd.f32 %v1042, %v1123
          %1125 = vdwg.mxu0
          %1126 = vmatprep.subr.mxu0 %v738
          %1127 = vmatpush1.msra.mxu0 %v737
          %1128 = vmatprep.subr.mxu0 %v742
          %1129 = vmatpush1.msra.mxu0 %v741
          %1130 = vmatprep.subr.mxu0 %v746
          %1131 = vmatpush1.msra.mxu0 %v745
          %1132 = vmatprep.subr.mxu0 %v750
          %1133 = vmatpush1.msra.mxu0 %v749
          %1134 = vmatprep.subr.mxu0 %v754
          %1135 = vmatpush1.msra.mxu0 %v753
          %1136 = vmatprep.subr.mxu0 %v758
          %1137 = vmatpush1.msra.mxu0 %v757
          %1138 = vmatprep.subr.mxu0 %v762
          %1139 = vmatpush1.msra.mxu0 %v761
          %1140 = vmatprep.subr.mxu0 %v766
          %1141 = vmatpush1.msra.mxu0 %v765
          %1142 = vmatprep.subr.mxu0 %v770
          %1143 = vmatpush1.msra.mxu0 %v769
          %1144 = vmatprep.subr.mxu0 %v774
          %1145 = vmatpush1.msra.mxu0 %v773
          %1146 = vmatprep.subr.mxu0 %v778
          %1147 = vmatpush1.msra.mxu0 %v777
          %1148 = vmatprep.subr.mxu0 %v782
          %1149 = vmatpush1.msra.mxu0 %v781
          %1150 = vmatprep.subr.mxu0 %v786
          %1151 = vmatpush1.msra.mxu0 %v785
          %1152 = vmatprep.subr.mxu0 %v790
          %1153 = vmatpush1.msra.mxu0 %v789
          %1154 = vmatprep.subr.mxu0 %v794
          %1155 = vmatpush1.msra.mxu0 %v793
          %1156 = vmatprep.subr.mxu0 %v798
          %1157 = vmatpush1.msra.mxu0 %v797
          %1158 = vmatprep.subr.mxu0 %v802
          %1159 = vmatpush1.msra.mxu0 %v801
          %1160 = vmatprep.subr.mxu0 %v806
          %1161 = vmatpush1.msra.mxu0 %v805
          %1162 = vmatprep.subr.mxu0 %v810
          %1163 = vmatpush1.msra.mxu0 %v809
          %1164 = vmatprep.subr.mxu0 %v814
          %1165 = vmatpush1.msra.mxu0 %v813
          %1166 = vmatprep.subr.mxu0 %v818
          %1167 = vmatpush1.msra.mxu0 %v817
          %1168 = vmatprep.subr.mxu0 %v822
          %1169 = vmatpush1.msra.mxu0 %v821
          %1170 = vmatprep.subr.mxu0 %v826
          %1171 = vmatpush1.msra.mxu0 %v825
          %1172 = vmatprep.subr.mxu0 %v830
          %1173 = vmatpush1.msra.mxu0 %v829
          %1174 = vmatprep.subr.mxu0 %v834
          %1175 = vmatpush1.msra.mxu0 %v833
          %1176 = vmatprep.subr.mxu0 %v838
          %1177 = vmatpush1.msra.mxu0 %v837
          %1178 = vmatprep.subr.mxu0 %v842
          %1179 = vmatpush1.msra.mxu0 %v841
          %1180 = vmatprep.subr.mxu0 %v846
          %1181 = vmatpush1.msra.mxu0 %v845
          %1182 = vmatprep.subr.mxu0 %v850
          %1183 = vmatpush1.msra.mxu0 %v849
          %1184 = vmatprep.subr.mxu0 %v854
          %1185 = vmatpush1.msra.mxu0 %v853
          %1186 = vmatprep.subr.mxu0 %v858
          %1187 = vmatpush1.msra.mxu0 %v857
          %1188 = vmatprep.subr.mxu0 %v862
          %1189 = vmatpush1.msra.mxu0 %v861
          %1190 = vmatprep.mubr.f32.mxu0 0.0
          %1191 = vmatmul.mubr.f32.gmra.mrb[0].mxu0 %v1033
          %v1192 = vpop.f32.mrb[0].mxu0
          %v1193 = vadd.f32 %v1046, %v1192
          %v1194 = vpop.f32.mrb[0].mxu0
          %v1195 = vadd.f32 %v1050, %v1194
          %1196 = vdwg.mxu0
          %v1197 = vxor.u32 %v1122, 2147483648
          %v1198 = vmul.f32 %v1197, 1.442695
          %v1199 = vpow.pop %v1198
          %v1200 = vadd.f32 %v1199, 1.0
          %v1201 = vrcp.pop %v1200
          %v1202 = vmul.f32 1.0, %v1201
          %v1203 = vxor.u32 %v1124, 2147483648
          %v1204 = vmul.f32 %v1203, 1.442695
          %v1205 = vpow.pop %v1204
          %v1206 = vadd.f32 %v1205, 1.0
          %v1207 = vrcp.pop %v1206
          %v1208 = vmul.f32 1.0, %v1207
          %v1209 = vtanh.pop %v1193
          %v1210 = vxor.u32 %v1195, 2147483648
          %v1211 = vmul.f32 %v1210, 1.442695
          %v1212 = vpow.pop %v1211
          %v1213 = vadd.f32 %v1212, 1.0
          %v1214 = vrcp.pop %v1213
          %v1215 = vmul.f32 1.0, %v1214
          %v1216 = vmul.f32 %v1208, 0.0
          %v1217 = vmul.f32 %v1202, %v1209
          %v1218 = vadd.f32 %v1216, %v1217
          %v1219 = vtanh.pop %v1218
          %v1220 = vmul.f32 %v1215, %v1219
          %1221 = vmatprep.subr.mxu0 %v672
          %1222 = vmatpush1.msra.mxu0 %v671
          %1223 = vmatprep.subr.mxu0 %v676
          %1224 = vmatpush1.msra.mxu0 %v675
          %1225 = vmatprep.subr.mxu0 %v680
          %1226 = vmatpush1.msra.mxu0 %v679
          %1227 = vmatprep.subr.mxu0 %v684
          %1228 = vmatpush1.msra.mxu0 %v683
          %1229 = vmatprep.subr.mxu0 %v688
          %1230 = vmatpush1.msra.mxu0 %v687
          %1231 = vmatprep.subr.mxu0 %v692
          %1232 = vmatpush1.msra.mxu0 %v691
          %1233 = vmatprep.subr.mxu0 %v696
          %1234 = vmatpush1.msra.mxu0 %v695
          %1235 = vmatprep.subr.mxu0 %v700
          %1236 = vmatpush1.msra.mxu0 %v699
          %1237 = vmatprep.subr.mxu0 %v704
          %1238 = vmatpush1.msra.mxu0 %v703
          %1239 = vmatprep.subr.mxu0 %v708
          %1240 = vmatpush1.msra.mxu0 %v707
          %1241 = vmatprep.subr.mxu0 %v712
          %1242 = vmatpush1.msra.mxu0 %v711
          %1243 = vmatprep.subr.mxu0 %v716
          %1244 = vmatpush1.msra.mxu0 %v715
          %1245 = vmatprep.subr.mxu0 %v720
          %1246 = vmatpush1.msra.mxu0 %v719
          %1247 = vmatprep.subr.mxu0 %v724
          %1248 = vmatpush1.msra.mxu0 %v723
          %1249 = vmatprep.subr.mxu0 %v728
          %1250 = vmatpush1.msra.mxu0 %v727
          %1251 = vmatprep.subr.mxu0 %v732
          %1252 = vmatpush1.msra.mxu0 %v731
          %1253 = vmatprep.subr.mxu0 0.0
          %1254 = vmatpush1.msra.mxu0 0.0
          %1255 = vmatprep.subr.mxu0 0.0
          %1256 = vmatpush1.msra.mxu0 0.0
          %1257 = vmatprep.subr.mxu0 0.0
          %1258 = vmatpush1.msra.mxu0 0.0
          %1259 = vmatprep.subr.mxu0 0.0
          %1260 = vmatpush1.msra.mxu0 0.0
          %1261 = vmatprep.subr.mxu0 0.0
          %1262 = vmatpush1.msra.mxu0 0.0
          %1263 = vmatprep.subr.mxu0 0.0
          %1264 = vmatpush1.msra.mxu0 0.0
          %1265 = vmatprep.subr.mxu0 0.0
          %1266 = vmatpush1.msra.mxu0 0.0
          %1267 = vmatprep.subr.mxu0 0.0
          %1268 = vmatpush1.msra.mxu0 0.0
          %1269 = vmatprep.subr.mxu0 0.0
          %1270 = vmatpush1.msra.mxu0 0.0
          %1271 = vmatprep.subr.mxu0 0.0
          %1272 = vmatpush1.msra.mxu0 0.0
          %1273 = vmatprep.subr.mxu0 0.0
          %1274 = vmatpush1.msra.mxu0 0.0
          %1275 = vmatprep.subr.mxu0 0.0
          %1276 = vmatpush1.msra.mxu0 0.0
          %1277 = vmatprep.subr.mxu0 0.0
          %1278 = vmatpush1.msra.mxu0 0.0
          %1279 = vmatprep.subr.mxu0 0.0
          %1280 = vmatpush1.msra.mxu0 0.0
          %1281 = vmatprep.subr.mxu0 0.0
          %1282 = vmatpush1.msra.mxu0 0.0
          %1283 = vmatprep.subr.mxu0 0.0
          %1284 = vmatpush1.msra.mxu0 0.0
          %1285 = vmatprep.mubr.f32.mxu0 0.0
          %1286 = vmatmul.mubr.f32.gmra.mrb[0].mxu0 %v1033
          %v1287 = vpop.f32.mrb[0].mxu0
          %v1288 = vadd.f32 0.0, %v1287
          %v1289 = vpop.f32.mrb[0].mxu0
          %v1290 = vadd.f32 0.0, %v1289
          %1291 = vdwg.mxu0
          %1292 = vmatprep.subr.mxu0 %v674
          %1293 = vmatpush1.msra.mxu0 %v673
          %1294 = vmatprep.subr.mxu0 %v678
          %1295 = vmatpush1.msra.mxu0 %v677
          %1296 = vmatprep.subr.mxu0 %v682
          %1297 = vmatpush1.msra.mxu0 %v681
          %1298 = vmatprep.subr.mxu0 %v686
          %1299 = vmatpush1.msra.mxu0 %v685
          %1300 = vmatprep.subr.mxu0 %v690
          %1301 = vmatpush1.msra.mxu0 %v689
          %1302 = vmatprep.subr.mxu0 %v694
          %1303 = vmatpush1.msra.mxu0 %v693
          %1304 = vmatprep.subr.mxu0 %v698
          %1305 = vmatpush1.msra.mxu0 %v697
          %1306 = vmatprep.subr.mxu0 %v702
          %1307 = vmatpush1.msra.mxu0 %v701
          %1308 = vmatprep.subr.mxu0 %v706
          %1309 = vmatpush1.msra.mxu0 %v705
          %1310 = vmatprep.subr.mxu0 %v710
          %1311 = vmatpush1.msra.mxu0 %v709
          %1312 = vmatprep.subr.mxu0 %v714
          %1313 = vmatpush1.msra.mxu0 %v713
          %1314 = vmatprep.subr.mxu0 %v718
          %1315 = vmatpush1.msra.mxu0 %v717
          %1316 = vmatprep.subr.mxu0 %v722
          %1317 = vmatpush1.msra.mxu0 %v721
          %1318 = vmatprep.subr.mxu0 %v726
          %1319 = vmatpush1.msra.mxu0 %v725
          %1320 = vmatprep.subr.mxu0 %v730
          %1321 = vmatpush1.msra.mxu0 %v729
          %1322 = vmatprep.subr.mxu0 %v734
          %1323 = vmatpush1.msra.mxu0 %v733
          %1324 = vmatprep.subr.mxu0 0.0
          %1325 = vmatpush1.msra.mxu0 0.0
          %1326 = vmatprep.subr.mxu0 0.0
          %1327 = vmatpush1.msra.mxu0 0.0
          %1328 = vmatprep.subr.mxu0 0.0
          %1329 = vmatpush1.msra.mxu0 0.0
          %1330 = vmatprep.subr.mxu0 0.0
          %1331 = vmatpush1.msra.mxu0 0.0
          %1332 = vmatprep.subr.mxu0 0.0
          %1333 = vmatpush1.msra.mxu0 0.0
          %1334 = vmatprep.subr.mxu0 0.0
          %1335 = vmatpush1.msra.mxu0 0.0
          %1336 = vmatprep.subr.mxu0 0.0
          %1337 = vmatpush1.msra.mxu0 0.0
          %1338 = vmatprep.subr.mxu0 0.0
          %1339 = vmatpush1.msra.mxu0 0.0
          %1340 = vmatprep.subr.mxu0 0.0
          %1341 = vmatpush1.msra.mxu0 0.0
          %1342 = vmatprep.subr.mxu0 0.0
          %1343 = vmatpush1.msra.mxu0 0.0
          %1344 = vmatprep.subr.mxu0 0.0
          %1345 = vmatpush1.msra.mxu0 0.0
          %1346 = vmatprep.subr.mxu0 0.0
          %1347 = vmatpush1.msra.mxu0 0.0
          %1348 = vmatprep.subr.mxu0 0.0
          %1349 = vmatpush1.msra.mxu0 0.0
          %1350 = vmatprep.subr.mxu0 0.0
          %1351 = vmatpush1.msra.mxu0 0.0
          %1352 = vmatprep.subr.mxu0 0.0
          %1353 = vmatpush1.msra.mxu0 0.0
          %1354 = vmatprep.subr.mxu0 0.0
          %1355 = vmatpush1.msra.mxu0 0.0
          %1356 = vmatprep.mubr.f32.mxu0 0.0
          %1357 = vmatmul.mubr.f32.gmra.mrb[0].mxu0 %v1033
          %v1358 = vpop.f32.mrb[0].mxu0
          %v1359 = vadd.f32 0.0, %v1358
          %v1360 = vpop.f32.mrb[0].mxu0
          %v1361 = vadd.f32 0.0, %v1360
          %1362 = vdwg.mxu0
          %v1367 = vrot.slane %v1288, 6
          %v1368 = vrot.slane %v1290, 6
          %v1369 = vrot.slane %v1359, 6
          %v1370 = vrot.slane %v1361, 6
          %v1375 = vadd.f32 %v584, %v1367
          %v1376 = vadd.f32 %v586, %v1368
          %v1377 = vadd.f32 %v661, %v1369
          %v1378 = vadd.f32 %v663, %v1370
          %v1379 = vxor.u32 %v1375, 2147483648
          %v1380 = vmul.f32 %v1379, 1.442695
          %v1381 = vpow.pop %v1380
          %v1382 = vadd.f32 %v1381, 1.0
          %v1383 = vrcp.pop %v1382
          %v1384 = vmul.f32 1.0, %v1383
          %v1385 = vxor.u32 %v1376, 2147483648
          %v1386 = vmul.f32 %v1385, 1.442695
          %v1387 = vpow.pop %v1386
          %v1388 = vadd.f32 %v1387, 1.0
          %v1389 = vrcp.pop %v1388
          %v1390 = vmul.f32 1.0, %v1389
          %v1391 = vtanh.pop %v1377
          %v1392 = vxor.u32 %v1378, 2147483648
          %v1393 = vmul.f32 %v1392, 1.442695
          %v1394 = vpow.pop %v1393
          %v1395 = vadd.f32 %v1394, 1.0
          %v1396 = vrcp.pop %v1395
          %v1397 = vmul.f32 1.0, %v1396
          %v1399 = vrot.slane %v1031, 6
          %v1401 = vmul.f32 %v1390, %v1399
          %v1402 = vmul.f32 %v1384, %v1391
          %v1403 = vadd.f32 %v1401, %v1402
          %v1404 = vtanh.pop %v1403
          %v1405 = vmul.f32 %v1397, %v1404
          %v1407 = vrot.slane %v1220, 6
          %v1409 = vrot.slane %v1405, 2
          %v1410 = vrot.slane %v1407, 2
          %1413 = vmatprep.subr.mxu0 %v736
          %1414 = vmatpush1.msra.mxu0 %v735
          %1415 = vmatprep.subr.mxu0 %v740
          %1416 = vmatpush1.msra.mxu0 %v739
          %1417 = vmatprep.subr.mxu0 %v744
          %1418 = vmatpush1.msra.mxu0 %v743
          %1419 = vmatprep.subr.mxu0 %v748
          %1420 = vmatpush1.msra.mxu0 %v747
          %1421 = vmatprep.subr.mxu0 %v752
          %1422 = vmatpush1.msra.mxu0 %v751
          %1423 = vmatprep.subr.mxu0 %v756
          %1424 = vmatpush1.msra.mxu0 %v755
          %1425 = vmatprep.subr.mxu0 %v760
          %1426 = vmatpush1.msra.mxu0 %v759
          %1427 = vmatprep.subr.mxu0 %v764
          %1428 = vmatpush1.msra.mxu0 %v763
          %1429 = vmatprep.subr.mxu0 %v768
          %1430 = vmatpush1.msra.mxu0 %v767
          %1431 = vmatprep.subr.mxu0 %v772
          %1432 = vmatpush1.msra.mxu0 %v771
          %1433 = vmatprep.subr.mxu0 %v776
          %1434 = vmatpush1.msra.mxu0 %v775
          %1435 = vmatprep.subr.mxu0 %v780
          %1436 = vmatpush1.msra.mxu0 %v779
          %1437 = vmatprep.subr.mxu0 %v784
          %1438 = vmatpush1.msra.mxu0 %v783
          %1439 = vmatprep.subr.mxu0 %v788
          %1440 = vmatpush1.msra.mxu0 %v787
          %1441 = vmatprep.subr.mxu0 %v792
          %1442 = vmatpush1.msra.mxu0 %v791
          %1443 = vmatprep.subr.mxu0 %v796
          %1444 = vmatpush1.msra.mxu0 %v795
          %1445 = vmatprep.subr.mxu0 %v800
          %1446 = vmatpush1.msra.mxu0 %v799
          %1447 = vmatprep.subr.mxu0 %v804
          %1448 = vmatpush1.msra.mxu0 %v803
          %1449 = vmatprep.subr.mxu0 %v808
          %1450 = vmatpush1.msra.mxu0 %v807
          %1451 = vmatprep.subr.mxu0 %v812
          %1452 = vmatpush1.msra.mxu0 %v811
          %1453 = vmatprep.subr.mxu0 %v816
          %1454 = vmatpush1.msra.mxu0 %v815
          %1455 = vmatprep.subr.mxu0 %v820
          %1456 = vmatpush1.msra.mxu0 %v819
          %1457 = vmatprep.subr.mxu0 %v824
          %1458 = vmatpush1.msra.mxu0 %v823
          %1459 = vmatprep.subr.mxu0 %v828
          %1460 = vmatpush1.msra.mxu0 %v827
          %1461 = vmatprep.subr.mxu0 %v832
          %1462 = vmatpush1.msra.mxu0 %v831
          %1463 = vmatprep.subr.mxu0 %v836
          %1464 = vmatpush1.msra.mxu0 %v835
          %1465 = vmatprep.subr.mxu0 %v840
          %1466 = vmatpush1.msra.mxu0 %v839
          %1467 = vmatprep.subr.mxu0 %v844
          %1468 = vmatpush1.msra.mxu0 %v843
          %1469 = vmatprep.subr.mxu0 %v848
          %1470 = vmatpush1.msra.mxu0 %v847
          %1471 = vmatprep.subr.mxu0 %v852
          %1472 = vmatpush1.msra.mxu0 %v851
          %1473 = vmatprep.subr.mxu0 %v856
          %1474 = vmatpush1.msra.mxu0 %v855
          %1475 = vmatprep.subr.mxu0 %v860
          %1476 = vmatpush1.msra.mxu0 %v859
          %1477 = vmatprep.mubr.f32.mxu0 %v1410
          %1478 = vmatmul.mubr.f32.gmra.mrb[0].mxu0 %v1409
          %v1479 = vpop.f32.mrb[0].mxu0
          %v1480 = vadd.f32 %v1038, %v1479
          %v1481 = vpop.f32.mrb[0].mxu0
          %v1482 = vadd.f32 %v1042, %v1481
          %1483 = vdwg.mxu0
          %1484 = vmatprep.subr.mxu0 %v738
          %1485 = vmatpush1.msra.mxu0 %v737
          %1486 = vmatprep.subr.mxu0 %v742
          %1487 = vmatpush1.msra.mxu0 %v741
          %1488 = vmatprep.subr.mxu0 %v746
          %1489 = vmatpush1.msra.mxu0 %v745
          %1490 = vmatprep.subr.mxu0 %v750
          %1491 = vmatpush1.msra.mxu0 %v749
          %1492 = vmatprep.subr.mxu0 %v754
          %1493 = vmatpush1.msra.mxu0 %v753
          %1494 = vmatprep.subr.mxu0 %v758
          %1495 = vmatpush1.msra.mxu0 %v757
          %1496 = vmatprep.subr.mxu0 %v762
          %1497 = vmatpush1.msra.mxu0 %v761
          %1498 = vmatprep.subr.mxu0 %v766
          %1499 = vmatpush1.msra.mxu0 %v765
          %1500 = vmatprep.subr.mxu0 %v770
          %1501 = vmatpush1.msra.mxu0 %v769
          %1502 = vmatprep.subr.mxu0 %v774
          %1503 = vmatpush1.msra.mxu0 %v773
          %1504 = vmatprep.subr.mxu0 %v778
          %1505 = vmatpush1.msra.mxu0 %v777
          %1506 = vmatprep.subr.mxu0 %v782
          %1507 = vmatpush1.msra.mxu0 %v781
          %1508 = vmatprep.subr.mxu0 %v786
          %1509 = vmatpush1.msra.mxu0 %v785
          %1510 = vmatprep.subr.mxu0 %v790
          %1511 = vmatpush1.msra.mxu0 %v789
          %1512 = vmatprep.subr.mxu0 %v794
          %1513 = vmatpush1.msra.mxu0 %v793
          %1514 = vmatprep.subr.mxu0 %v798
          %1515 = vmatpush1.msra.mxu0 %v797
          %1516 = vmatprep.subr.mxu0 %v802
          %1517 = vmatpush1.msra.mxu0 %v801
          %1518 = vmatprep.subr.mxu0 %v806
          %1519 = vmatpush1.msra.mxu0 %v805
          %1520 = vmatprep.subr.mxu0 %v810
          %1521 = vmatpush1.msra.mxu0 %v809
          %1522 = vmatprep.subr.mxu0 %v814
          %1523 = vmatpush1.msra.mxu0 %v813
          %1524 = vmatprep.subr.mxu0 %v818
          %1525 = vmatpush1.msra.mxu0 %v817
          %1526 = vmatprep.subr.mxu0 %v822
          %1527 = vmatpush1.msra.mxu0 %v821
          %1528 = vmatprep.subr.mxu0 %v826
          %1529 = vmatpush1.msra.mxu0 %v825
          %1530 = vmatprep.subr.mxu0 %v830
          %1531 = vmatpush1.msra.mxu0 %v829
          %1532 = vmatprep.subr.mxu0 %v834
          %1533 = vmatpush1.msra.mxu0 %v833
          %1534 = vmatprep.subr.mxu0 %v838
          %1535 = vmatpush1.msra.mxu0 %v837
          %1536 = vmatprep.subr.mxu0 %v842
          %1537 = vmatpush1.msra.mxu0 %v841
          %1538 = vmatprep.subr.mxu0 %v846
          %1539 = vmatpush1.msra.mxu0 %v845
          %1540 = vmatprep.subr.mxu0 %v850
          %1541 = vmatpush1.msra.mxu0 %v849
          %1542 = vmatprep.subr.mxu0 %v854
          %1543 = vmatpush1.msra.mxu0 %v853
          %1544 = vmatprep.subr.mxu0 %v858
          %1545 = vmatpush1.msra.mxu0 %v857
          %1546 = vmatprep.subr.mxu0 %v862
          %1547 = vmatpush1.msra.mxu0 %v861
          %1548 = vmatprep.mubr.f32.mxu0 %v1410
          %1549 = vmatmul.mubr.f32.gmra.mrb[0].mxu0 %v1409
          %v1550 = vpop.f32.mrb[0].mxu0
          %v1551 = vadd.f32 %v1046, %v1550
          %v1552 = vpop.f32.mrb[0].mxu0
          %v1553 = vadd.f32 %v1050, %v1552
          %1554 = vdwg.mxu0
          %v1555 = vxor.u32 %v1480, 2147483648
          %v1556 = vmul.f32 %v1555, 1.442695
          %v1557 = vpow.pop %v1556
          %v1558 = vadd.f32 %v1557, 1.0
          %v1559 = vrcp.pop %v1558
          %v1560 = vmul.f32 1.0, %v1559
          %v1561 = vxor.u32 %v1482, 2147483648
          %v1562 = vmul.f32 %v1561, 1.442695
          %v1563 = vpow.pop %v1562
          %v1564 = vadd.f32 %v1563, 1.0
          %v1565 = vrcp.pop %v1564
          %v1566 = vmul.f32 1.0, %v1565
          %v1567 = vtanh.pop %v1551
          %v1568 = vxor.u32 %v1553, 2147483648
          %v1569 = vmul.f32 %v1568, 1.442695
          %v1570 = vpow.pop %v1569
          %v1571 = vadd.f32 %v1570, 1.0
          %v1572 = vrcp.pop %v1571
          %v1573 = vmul.f32 1.0, %v1572
          %v1574 = vmul.f32 %v1566, %v1218
          %v1575 = vmul.f32 %v1560, %v1567
          %v1576 = vadd.f32 %v1574, %v1575
          %v1577 = vtanh.pop %v1576
          %v1578 = vmul.f32 %v1573, %v1577
          %1579 = vmatprep.subr.mxu0 %v672
          %1580 = vmatpush1.msra.mxu0 %v671
          %1581 = vmatprep.subr.mxu0 %v676
          %1582 = vmatpush1.msra.mxu0 %v675
          %1583 = vmatprep.subr.mxu0 %v680
          %1584 = vmatpush1.msra.mxu0 %v679
          %1585 = vmatprep.subr.mxu0 %v684
          %1586 = vmatpush1.msra.mxu0 %v683
          %1587 = vmatprep.subr.mxu0 %v688
          %1588 = vmatpush1.msra.mxu0 %v687
          %1589 = vmatprep.subr.mxu0 %v692
          %1590 = vmatpush1.msra.mxu0 %v691
          %1591 = vmatprep.subr.mxu0 %v696
          %1592 = vmatpush1.msra.mxu0 %v695
          %1593 = vmatprep.subr.mxu0 %v700
          %1594 = vmatpush1.msra.mxu0 %v699
          %1595 = vmatprep.subr.mxu0 %v704
          %1596 = vmatpush1.msra.mxu0 %v703
          %1597 = vmatprep.subr.mxu0 %v708
          %1598 = vmatpush1.msra.mxu0 %v707
          %1599 = vmatprep.subr.mxu0 %v712
          %1600 = vmatpush1.msra.mxu0 %v711
          %1601 = vmatprep.subr.mxu0 %v716
          %1602 = vmatpush1.msra.mxu0 %v715
          %1603 = vmatprep.subr.mxu0 %v720
          %1604 = vmatpush1.msra.mxu0 %v719
          %1605 = vmatprep.subr.mxu0 %v724
          %1606 = vmatpush1.msra.mxu0 %v723
          %1607 = vmatprep.subr.mxu0 %v728
          %1608 = vmatpush1.msra.mxu0 %v727
          %1609 = vmatprep.subr.mxu0 %v732
          %1610 = vmatpush1.msra.mxu0 %v731
          %1611 = vmatprep.subr.mxu0 0.0
          %1612 = vmatpush1.msra.mxu0 0.0
          %1613 = vmatprep.subr.mxu0 0.0
          %1614 = vmatpush1.msra.mxu0 0.0
          %1615 = vmatprep.subr.mxu0 0.0
          %1616 = vmatpush1.msra.mxu0 0.0
          %1617 = vmatprep.subr.mxu0 0.0
          %1618 = vmatpush1.msra.mxu0 0.0
          %1619 = vmatprep.subr.mxu0 0.0
          %1620 = vmatpush1.msra.mxu0 0.0
          %1621 = vmatprep.subr.mxu0 0.0
          %1622 = vmatpush1.msra.mxu0 0.0
          %1623 = vmatprep.subr.mxu0 0.0
          %1624 = vmatpush1.msra.mxu0 0.0
          %1625 = vmatprep.subr.mxu0 0.0
          %1626 = vmatpush1.msra.mxu0 0.0
          %1627 = vmatprep.subr.mxu0 0.0
          %1628 = vmatpush1.msra.mxu0 0.0
          %1629 = vmatprep.subr.mxu0 0.0
          %1630 = vmatpush1.msra.mxu0 0.0
          %1631 = vmatprep.subr.mxu0 0.0
          %1632 = vmatpush1.msra.mxu0 0.0
          %1633 = vmatprep.subr.mxu0 0.0
          %1634 = vmatpush1.msra.mxu0 0.0
          %1635 = vmatprep.subr.mxu0 0.0
          %1636 = vmatpush1.msra.mxu0 0.0
          %1637 = vmatprep.subr.mxu0 0.0
          %1638 = vmatpush1.msra.mxu0 0.0
          %1639 = vmatprep.subr.mxu0 0.0
          %1640 = vmatpush1.msra.mxu0 0.0
          %1641 = vmatprep.subr.mxu0 0.0
          %1642 = vmatpush1.msra.mxu0 0.0
          %1643 = vmatprep.mubr.f32.mxu0 0.0
          %1644 = vmatmul.mubr.f32.gmra.mrb[0].mxu0 %v1409
          %v1645 = vpop.f32.mrb[0].mxu0
          %v1646 = vadd.f32 0.0, %v1645
          %v1647 = vpop.f32.mrb[0].mxu0
          %v1648 = vadd.f32 0.0, %v1647
          %1649 = vdwg.mxu0
          %1650 = vmatprep.subr.mxu0 %v674
          %1651 = vmatpush1.msra.mxu0 %v673
          %1652 = vmatprep.subr.mxu0 %v678
          %1653 = vmatpush1.msra.mxu0 %v677
          %1654 = vmatprep.subr.mxu0 %v682
          %1655 = vmatpush1.msra.mxu0 %v681
          %1656 = vmatprep.subr.mxu0 %v686
          %1657 = vmatpush1.msra.mxu0 %v685
          %1658 = vmatprep.subr.mxu0 %v690
          %1659 = vmatpush1.msra.mxu0 %v689
          %1660 = vmatprep.subr.mxu0 %v694
          %1661 = vmatpush1.msra.mxu0 %v693
          %1662 = vmatprep.subr.mxu0 %v698
          %1663 = vmatpush1.msra.mxu0 %v697
          %1664 = vmatprep.subr.mxu0 %v702
          %1665 = vmatpush1.msra.mxu0 %v701
          %1666 = vmatprep.subr.mxu0 %v706
          %1667 = vmatpush1.msra.mxu0 %v705
          %1668 = vmatprep.subr.mxu0 %v710
          %1669 = vmatpush1.msra.mxu0 %v709
          %1670 = vmatprep.subr.mxu0 %v714
          %1671 = vmatpush1.msra.mxu0 %v713
          %1672 = vmatprep.subr.mxu0 %v718
          %1673 = vmatpush1.msra.mxu0 %v717
          %1674 = vmatprep.subr.mxu0 %v722
          %1675 = vmatpush1.msra.mxu0 %v721
          %1676 = vmatprep.subr.mxu0 %v726
          %1677 = vmatpush1.msra.mxu0 %v725
          %1678 = vmatprep.subr.mxu0 %v730
          %1679 = vmatpush1.msra.mxu0 %v729
          %1680 = vmatprep.subr.mxu0 %v734
          %1681 = vmatpush1.msra.mxu0 %v733
          %1682 = vmatprep.subr.mxu0 0.0
          %1683 = vmatpush1.msra.mxu0 0.0
          %1684 = vmatprep.subr.mxu0 0.0
          %1685 = vmatpush1.msra.mxu0 0.0
          %1686 = vmatprep.subr.mxu0 0.0
          %1687 = vmatpush1.msra.mxu0 0.0
          %1688 = vmatprep.subr.mxu0 0.0
          %1689 = vmatpush1.msra.mxu0 0.0
          %1690 = vmatprep.subr.mxu0 0.0
          %1691 = vmatpush1.msra.mxu0 0.0
          %1692 = vmatprep.subr.mxu0 0.0
          %1693 = vmatpush1.msra.mxu0 0.0
          %1694 = vmatprep.subr.mxu0 0.0
          %1695 = vmatpush1.msra.mxu0 0.0
          %1696 = vmatprep.subr.mxu0 0.0
          %1697 = vmatpush1.msra.mxu0 0.0
          %1698 = vmatprep.subr.mxu0 0.0
          %1699 = vmatpush1.msra.mxu0 0.0
          %1700 = vmatprep.subr.mxu0 0.0
          %1701 = vmatpush1.msra.mxu0 0.0
          %1702 = vmatprep.subr.mxu0 0.0
          %1703 = vmatpush1.msra.mxu0 0.0
          %1704 = vmatprep.subr.mxu0 0.0
          %1705 = vmatpush1.msra.mxu0 0.0
          %1706 = vmatprep.subr.mxu0 0.0
          %1707 = vmatpush1.msra.mxu0 0.0
          %1708 = vmatprep.subr.mxu0 0.0
          %1709 = vmatpush1.msra.mxu0 0.0
          %1710 = vmatprep.subr.mxu0 0.0
          %1711 = vmatpush1.msra.mxu0 0.0
          %1712 = vmatprep.subr.mxu0 0.0
          %1713 = vmatpush1.msra.mxu0 0.0
          %1714 = vmatprep.mubr.f32.mxu0 0.0
          %1715 = vmatmul.mubr.f32.gmra.mrb[0].mxu0 %v1409
          %v1716 = vpop.f32.mrb[0].mxu0
          %v1717 = vadd.f32 0.0, %v1716
          %v1718 = vpop.f32.mrb[0].mxu0
          %v1719 = vadd.f32 0.0, %v1718
          %1720 = vdwg.mxu0
          %v1725 = vrot.slane %v1646, 4
          %v1726 = vrot.slane %v1648, 4
          %v1727 = vrot.slane %v1717, 4
          %v1728 = vrot.slane %v1719, 4
          %v1733 = vadd.f32 %v584, %v1725
          %v1734 = vadd.f32 %v586, %v1726
          %v1735 = vadd.f32 %v661, %v1727
          %v1736 = vadd.f32 %v663, %v1728
          %v1737 = vxor.u32 %v1733, 2147483648
          %v1738 = vmul.f32 %v1737, 1.442695
          %v1739 = vpow.pop %v1738
          %v1740 = vadd.f32 %v1739, 1.0
          %v1741 = vrcp.pop %v1740
          %v1742 = vmul.f32 1.0, %v1741
          %v1743 = vxor.u32 %v1734, 2147483648
          %v1744 = vmul.f32 %v1743, 1.442695
          %v1745 = vpow.pop %v1744
          %v1746 = vadd.f32 %v1745, 1.0
          %v1747 = vrcp.pop %v1746
          %v1748 = vmul.f32 1.0, %v1747
          %v1749 = vtanh.pop %v1735
          %v1750 = vxor.u32 %v1736, 2147483648
          %v1751 = vmul.f32 %v1750, 1.442695
          %v1752 = vpow.pop %v1751
          %v1753 = vadd.f32 %v1752, 1.0
          %v1754 = vrcp.pop %v1753
          %v1755 = vmul.f32 1.0, %v1754
          %v1757 = vrot.slane %v1403, 6
          %v1759 = vmul.f32 %v1748, %v1757
          %v1760 = vmul.f32 %v1742, %v1749
          %v1761 = vadd.f32 %v1759, %v1760
          %v1762 = vtanh.pop %v1761
          %v1763 = vmul.f32 %v1755, %v1762
          %v1765 = vrot.slane %v1578, 4
          %v1767 = vrot.slane %v1763, 4
          %v1768 = vrot.slane %v1765, 4
          %1771 = vmatprep.subr.mxu0 %v736
          %1772 = vmatpush1.msra.mxu0 %v735
          %1773 = vmatprep.subr.mxu0 %v740
          %1774 = vmatpush1.msra.mxu0 %v739
          %1775 = vmatprep.subr.mxu0 %v744
          %1776 = vmatpush1.msra.mxu0 %v743
          %1777 = vmatprep.subr.mxu0 %v748
          %1778 = vmatpush1.msra.mxu0 %v747
          %1779 = vmatprep.subr.mxu0 %v752
          %1780 = vmatpush1.msra.mxu0 %v751
          %1781 = vmatprep.subr.mxu0 %v756
          %1782 = vmatpush1.msra.mxu0 %v755
          %1783 = vmatprep.subr.mxu0 %v760
          %1784 = vmatpush1.msra.mxu0 %v759
          %1785 = vmatprep.subr.mxu0 %v764
          %1786 = vmatpush1.msra.mxu0 %v763
          %1787 = vmatprep.subr.mxu0 %v768
          %1788 = vmatpush1.msra.mxu0 %v767
          %1789 = vmatprep.subr.mxu0 %v772
          %1790 = vmatpush1.msra.mxu0 %v771
          %1791 = vmatprep.subr.mxu0 %v776
          %1792 = vmatpush1.msra.mxu0 %v775
          %1793 = vmatprep.subr.mxu0 %v780
          %1794 = vmatpush1.msra.mxu0 %v779
          %1795 = vmatprep.subr.mxu0 %v784
          %1796 = vmatpush1.msra.mxu0 %v783
          %1797 = vmatprep.subr.mxu0 %v788
          %1798 = vmatpush1.msra.mxu0 %v787
          %1799 = vmatprep.subr.mxu0 %v792
          %1800 = vmatpush1.msra.mxu0 %v791
          %1801 = vmatprep.subr.mxu0 %v796
          %1802 = vmatpush1.msra.mxu0 %v795
          %1803 = vmatprep.subr.mxu0 %v800
          %1804 = vmatpush1.msra.mxu0 %v799
          %1805 = vmatprep.subr.mxu0 %v804
          %1806 = vmatpush1.msra.mxu0 %v803
          %1807 = vmatprep.subr.mxu0 %v808
          %1808 = vmatpush1.msra.mxu0 %v807
          %1809 = vmatprep.subr.mxu0 %v812
          %1810 = vmatpush1.msra.mxu0 %v811
          %1811 = vmatprep.subr.mxu0 %v816
          %1812 = vmatpush1.msra.mxu0 %v815
          %1813 = vmatprep.subr.mxu0 %v820
          %1814 = vmatpush1.msra.mxu0 %v819
          %1815 = vmatprep.subr.mxu0 %v824
          %1816 = vmatpush1.msra.mxu0 %v823
          %1817 = vmatprep.subr.mxu0 %v828
          %1818 = vmatpush1.msra.mxu0 %v827
          %1819 = vmatprep.subr.mxu0 %v832
          %1820 = vmatpush1.msra.mxu0 %v831
          %1821 = vmatprep.subr.mxu0 %v836
          %1822 = vmatpush1.msra.mxu0 %v835
          %1823 = vmatprep.subr.mxu0 %v840
          %1824 = vmatpush1.msra.mxu0 %v839
          %1825 = vmatprep.subr.mxu0 %v844
          %1826 = vmatpush1.msra.mxu0 %v843
          %1827 = vmatprep.subr.mxu0 %v848
          %1828 = vmatpush1.msra.mxu0 %v847
          %1829 = vmatprep.subr.mxu0 %v852
          %1830 = vmatpush1.msra.mxu0 %v851
          %1831 = vmatprep.subr.mxu0 %v856
          %1832 = vmatpush1.msra.mxu0 %v855
          %1833 = vmatprep.subr.mxu0 %v860
          %1834 = vmatpush1.msra.mxu0 %v859
          %1835 = vmatprep.mubr.f32.mxu0 %v1768
          %1836 = vmatmul.mubr.f32.gmra.mrb[0].mxu0 %v1767
          %v1837 = vpop.f32.mrb[0].mxu0
          %v1838 = vadd.f32 %v1038, %v1837
          %v1839 = vpop.f32.mrb[0].mxu0
          %v1840 = vadd.f32 %v1042, %v1839
          %1841 = vdwg.mxu0
          %1842 = vmatprep.subr.mxu0 %v738
          %1843 = vmatpush1.msra.mxu0 %v737
          %1844 = vmatprep.subr.mxu0 %v742
          %1845 = vmatpush1.msra.mxu0 %v741
          %1846 = vmatprep.subr.mxu0 %v746
          %1847 = vmatpush1.msra.mxu0 %v745
          %1848 = vmatprep.subr.mxu0 %v750
          %1849 = vmatpush1.msra.mxu0 %v749
          %1850 = vmatprep.subr.mxu0 %v754
          %1851 = vmatpush1.msra.mxu0 %v753
          %1852 = vmatprep.subr.mxu0 %v758
          %1853 = vmatpush1.msra.mxu0 %v757
          %1854 = vmatprep.subr.mxu0 %v762
          %1855 = vmatpush1.msra.mxu0 %v761
          %1856 = vmatprep.subr.mxu0 %v766
          %1857 = vmatpush1.msra.mxu0 %v765
          %1858 = vmatprep.subr.mxu0 %v770
          %1859 = vmatpush1.msra.mxu0 %v769
          %1860 = vmatprep.subr.mxu0 %v774
          %1861 = vmatpush1.msra.mxu0 %v773
          %1862 = vmatprep.subr.mxu0 %v778
          %1863 = vmatpush1.msra.mxu0 %v777
          %1864 = vmatprep.subr.mxu0 %v782
          %1865 = vmatpush1.msra.mxu0 %v781
          %1866 = vmatprep.subr.mxu0 %v786
          %1867 = vmatpush1.msra.mxu0 %v785
          %1868 = vmatprep.subr.mxu0 %v790
          %1869 = vmatpush1.msra.mxu0 %v789
          %1870 = vmatprep.subr.mxu0 %v794
          %1871 = vmatpush1.msra.mxu0 %v793
          %1872 = vmatprep.subr.mxu0 %v798
          %1873 = vmatpush1.msra.mxu0 %v797
          %1874 = vmatprep.subr.mxu0 %v802
          %1875 = vmatpush1.msra.mxu0 %v801
          %1876 = vmatprep.subr.mxu0 %v806
          %1877 = vmatpush1.msra.mxu0 %v805
          %1878 = vmatprep.subr.mxu0 %v810
          %1879 = vmatpush1.msra.mxu0 %v809
          %1880 = vmatprep.subr.mxu0 %v814
          %1881 = vmatpush1.msra.mxu0 %v813
          %1882 = vmatprep.subr.mxu0 %v818
          %1883 = vmatpush1.msra.mxu0 %v817
          %1884 = vmatprep.subr.mxu0 %v822
          %1885 = vmatpush1.msra.mxu0 %v821
          %1886 = vmatprep.subr.mxu0 %v826
          %1887 = vmatpush1.msra.mxu0 %v825
          %1888 = vmatprep.subr.mxu0 %v830
          %1889 = vmatpush1.msra.mxu0 %v829
          %1890 = vmatprep.subr.mxu0 %v834
          %1891 = vmatpush1.msra.mxu0 %v833
          %1892 = vmatprep.subr.mxu0 %v838
          %1893 = vmatpush1.msra.mxu0 %v837
          %1894 = vmatprep.subr.mxu0 %v842
          %1895 = vmatpush1.msra.mxu0 %v841
          %1896 = vmatprep.subr.mxu0 %v846
          %1897 = vmatpush1.msra.mxu0 %v845
          %1898 = vmatprep.subr.mxu0 %v850
          %1899 = vmatpush1.msra.mxu0 %v849
          %1900 = vmatprep.subr.mxu0 %v854
          %1901 = vmatpush1.msra.mxu0 %v853
          %1902 = vmatprep.subr.mxu0 %v858
          %1903 = vmatpush1.msra.mxu0 %v857
          %1904 = vmatprep.subr.mxu0 %v862
          %1905 = vmatpush1.msra.mxu0 %v861
          %1906 = vmatprep.mubr.f32.mxu0 %v1768
          %1907 = vmatmul.mubr.f32.gmra.mrb[0].mxu0 %v1767
          %v1908 = vpop.f32.mrb[0].mxu0
          %v1909 = vadd.f32 %v1046, %v1908
          %v1910 = vpop.f32.mrb[0].mxu0
          %v1911 = vadd.f32 %v1050, %v1910
          %1912 = vdwg.mxu0
          %v1913 = vxor.u32 %v1838, 2147483648
          %v1914 = vmul.f32 %v1913, 1.442695
          %v1915 = vpow.pop %v1914
          %v1916 = vadd.f32 %v1915, 1.0
          %v1917 = vrcp.pop %v1916
          %v1918 = vmul.f32 1.0, %v1917
          %v1919 = vxor.u32 %v1840, 2147483648
          %v1920 = vmul.f32 %v1919, 1.442695
          %v1921 = vpow.pop %v1920
          %v1922 = vadd.f32 %v1921, 1.0
          %v1923 = vrcp.pop %v1922
          %v1924 = vmul.f32 1.0, %v1923
          %v1925 = vtanh.pop %v1909
          %v1926 = vxor.u32 %v1911, 2147483648
          %v1927 = vmul.f32 %v1926, 1.442695
          %v1928 = vpow.pop %v1927
          %v1929 = vadd.f32 %v1928, 1.0
          %v1930 = vrcp.pop %v1929
          %v1931 = vmul.f32 1.0, %v1930
          %v1932 = vmul.f32 %v1924, %v1576
          %v1933 = vmul.f32 %v1918, %v1925
          %v1934 = vadd.f32 %v1932, %v1933
          %v1935 = vtanh.pop %v1934
          %v1936 = vmul.f32 %v1931, %v1935
          %1937 = vmatprep.subr.mxu0 %v672
          %1938 = vmatpush1.msra.mxu0 %v671
          %1939 = vmatprep.subr.mxu0 %v676
          %1940 = vmatpush1.msra.mxu0 %v675
          %1941 = vmatprep.subr.mxu0 %v680
          %1942 = vmatpush1.msra.mxu0 %v679
          %1943 = vmatprep.subr.mxu0 %v684
          %1944 = vmatpush1.msra.mxu0 %v683
          %1945 = vmatprep.subr.mxu0 %v688
          %1946 = vmatpush1.msra.mxu0 %v687
          %1947 = vmatprep.subr.mxu0 %v692
          %1948 = vmatpush1.msra.mxu0 %v691
          %1949 = vmatprep.subr.mxu0 %v696
          %1950 = vmatpush1.msra.mxu0 %v695
          %1951 = vmatprep.subr.mxu0 %v700
          %1952 = vmatpush1.msra.mxu0 %v699
          %1953 = vmatprep.subr.mxu0 %v704
          %1954 = vmatpush1.msra.mxu0 %v703
          %1955 = vmatprep.subr.mxu0 %v708
          %1956 = vmatpush1.msra.mxu0 %v707
          %1957 = vmatprep.subr.mxu0 %v712
          %1958 = vmatpush1.msra.mxu0 %v711
          %1959 = vmatprep.subr.mxu0 %v716
          %1960 = vmatpush1.msra.mxu0 %v715
          %1961 = vmatprep.subr.mxu0 %v720
          %1962 = vmatpush1.msra.mxu0 %v719
          %1963 = vmatprep.subr.mxu0 %v724
          %1964 = vmatpush1.msra.mxu0 %v723
          %1965 = vmatprep.subr.mxu0 %v728
          %1966 = vmatpush1.msra.mxu0 %v727
          %1967 = vmatprep.subr.mxu0 %v732
          %1968 = vmatpush1.msra.mxu0 %v731
          %1969 = vmatprep.subr.mxu0 0.0
          %1970 = vmatpush1.msra.mxu0 0.0
          %1971 = vmatprep.subr.mxu0 0.0
          %1972 = vmatpush1.msra.mxu0 0.0
          %1973 = vmatprep.subr.mxu0 0.0
          %1974 = vmatpush1.msra.mxu0 0.0
          %1975 = vmatprep.subr.mxu0 0.0
          %1976 = vmatpush1.msra.mxu0 0.0
          %1977 = vmatprep.subr.mxu0 0.0
          %1978 = vmatpush1.msra.mxu0 0.0
          %1979 = vmatprep.subr.mxu0 0.0
          %1980 = vmatpush1.msra.mxu0 0.0
          %1981 = vmatprep.subr.mxu0 0.0
          %1982 = vmatpush1.msra.mxu0 0.0
          %1983 = vmatprep.subr.mxu0 0.0
          %1984 = vmatpush1.msra.mxu0 0.0
          %1985 = vmatprep.subr.mxu0 0.0
          %1986 = vmatpush1.msra.mxu0 0.0
          %1987 = vmatprep.subr.mxu0 0.0
          %1988 = vmatpush1.msra.mxu0 0.0
          %1989 = vmatprep.subr.mxu0 0.0
          %1990 = vmatpush1.msra.mxu0 0.0
          %1991 = vmatprep.subr.mxu0 0.0
          %1992 = vmatpush1.msra.mxu0 0.0
          %1993 = vmatprep.subr.mxu0 0.0
          %1994 = vmatpush1.msra.mxu0 0.0
          %1995 = vmatprep.subr.mxu0 0.0
          %1996 = vmatpush1.msra.mxu0 0.0
          %1997 = vmatprep.subr.mxu0 0.0
          %1998 = vmatpush1.msra.mxu0 0.0
          %1999 = vmatprep.subr.mxu0 0.0
          %2000 = vmatpush1.msra.mxu0 0.0
          %2001 = vmatprep.mubr.f32.mxu0 0.0
          %2002 = vmatmul.mubr.f32.gmra.mrb[0].mxu0 %v1767
          %v2003 = vpop.f32.mrb[0].mxu0
          %v2004 = vadd.f32 0.0, %v2003
          %v2005 = vpop.f32.mrb[0].mxu0
          %v2006 = vadd.f32 0.0, %v2005
          %2007 = vdwg.mxu0
          %2008 = vmatprep.subr.mxu0 %v674
          %2009 = vmatpush1.msra.mxu0 %v673
          %2010 = vmatprep.subr.mxu0 %v678
          %2011 = vmatpush1.msra.mxu0 %v677
          %2012 = vmatprep.subr.mxu0 %v682
          %2013 = vmatpush1.msra.mxu0 %v681
          %2014 = vmatprep.subr.mxu0 %v686
          %2015 = vmatpush1.msra.mxu0 %v685
          %2016 = vmatprep.subr.mxu0 %v690
          %2017 = vmatpush1.msra.mxu0 %v689
          %2018 = vmatprep.subr.mxu0 %v694
          %2019 = vmatpush1.msra.mxu0 %v693
          %2020 = vmatprep.subr.mxu0 %v698
          %2021 = vmatpush1.msra.mxu0 %v697
          %2022 = vmatprep.subr.mxu0 %v702
          %2023 = vmatpush1.msra.mxu0 %v701
          %2024 = vmatprep.subr.mxu0 %v706
          %2025 = vmatpush1.msra.mxu0 %v705
          %2026 = vmatprep.subr.mxu0 %v710
          %2027 = vmatpush1.msra.mxu0 %v709
          %2028 = vmatprep.subr.mxu0 %v714
          %2029 = vmatpush1.msra.mxu0 %v713
          %2030 = vmatprep.subr.mxu0 %v718
          %2031 = vmatpush1.msra.mxu0 %v717
          %2032 = vmatprep.subr.mxu0 %v722
          %2033 = vmatpush1.msra.mxu0 %v721
          %2034 = vmatprep.subr.mxu0 %v726
          %2035 = vmatpush1.msra.mxu0 %v725
          %2036 = vmatprep.subr.mxu0 %v730
          %2037 = vmatpush1.msra.mxu0 %v729
          %2038 = vmatprep.subr.mxu0 %v734
          %2039 = vmatpush1.msra.mxu0 %v733
          %2040 = vmatprep.subr.mxu0 0.0
          %2041 = vmatpush1.msra.mxu0 0.0
          %2042 = vmatprep.subr.mxu0 0.0
          %2043 = vmatpush1.msra.mxu0 0.0
          %2044 = vmatprep.subr.mxu0 0.0
          %2045 = vmatpush1.msra.mxu0 0.0
          %2046 = vmatprep.subr.mxu0 0.0
          %2047 = vmatpush1.msra.mxu0 0.0
          %2048 = vmatprep.subr.mxu0 0.0
          %2049 = vmatpush1.msra.mxu0 0.0
          %2050 = vmatprep.subr.mxu0 0.0
          %2051 = vmatpush1.msra.mxu0 0.0
          %2052 = vmatprep.subr.mxu0 0.0
          %2053 = vmatpush1.msra.mxu0 0.0
          %2054 = vmatprep.subr.mxu0 0.0
          %2055 = vmatpush1.msra.mxu0 0.0
          %2056 = vmatprep.subr.mxu0 0.0
          %2057 = vmatpush1.msra.mxu0 0.0
          %2058 = vmatprep.subr.mxu0 0.0
          %2059 = vmatpush1.msra.mxu0 0.0
          %2060 = vmatprep.subr.mxu0 0.0
          %2061 = vmatpush1.msra.mxu0 0.0
          %2062 = vmatprep.subr.mxu0 0.0
          %2063 = vmatpush1.msra.mxu0 0.0
          %2064 = vmatprep.subr.mxu0 0.0
          %2065 = vmatpush1.msra.mxu0 0.0
          %2066 = vmatprep.subr.mxu0 0.0
          %2067 = vmatpush1.msra.mxu0 0.0
          %2068 = vmatprep.subr.mxu0 0.0
          %2069 = vmatpush1.msra.mxu0 0.0
          %2070 = vmatprep.subr.mxu0 0.0
          %2071 = vmatpush1.msra.mxu0 0.0
          %2072 = vmatprep.mubr.f32.mxu0 0.0
          %2073 = vmatmul.mubr.f32.gmra.mrb[0].mxu0 %v1767
          %v2074 = vpop.f32.mrb[0].mxu0
          %v2075 = vadd.f32 0.0, %v2074
          %v2076 = vpop.f32.mrb[0].mxu0
          %v2077 = vadd.f32 0.0, %v2076
          %2078 = vdwg.mxu0
          %v2083 = vrot.slane %v2004, 2
          %v2084 = vrot.slane %v2006, 2
          %v2085 = vrot.slane %v2075, 2
          %v2086 = vrot.slane %v2077, 2
          %v2091 = vadd.f32 %v584, %v2083
          %v2092 = vadd.f32 %v586, %v2084
          %v2093 = vadd.f32 %v661, %v2085
          %v2094 = vadd.f32 %v663, %v2086
          %v2095 = vxor.u32 %v2091, 2147483648
          %v2096 = vmul.f32 %v2095, 1.442695
          %v2097 = vpow.pop %v2096
          %v2098 = vadd.f32 %v2097, 1.0
          %v2099 = vrcp.pop %v2098
          %v2100 = vmul.f32 1.0, %v2099
          %v2101 = vxor.u32 %v2092, 2147483648
          %v2102 = vmul.f32 %v2101, 1.442695
          %v2103 = vpow.pop %v2102
          %v2104 = vadd.f32 %v2103, 1.0
          %v2105 = vrcp.pop %v2104
          %v2106 = vmul.f32 1.0, %v2105
          %v2107 = vtanh.pop %v2093
          %v2108 = vxor.u32 %v2094, 2147483648
          %v2109 = vmul.f32 %v2108, 1.442695
          %v2110 = vpow.pop %v2109
          %v2111 = vadd.f32 %v2110, 1.0
          %v2112 = vrcp.pop %v2111
          %v2113 = vmul.f32 1.0, %v2112
          %v2115 = vrot.slane %v1761, 6
          %v2117 = vmul.f32 %v2106, %v2115
          %v2118 = vmul.f32 %v2100, %v2107
          %v2119 = vadd.f32 %v2117, %v2118
          %v2120 = vtanh.pop %v2119
          %v2121 = vmul.f32 %v2113, %v2120
          %v2123 = vrot.slane %v1936, 2
          %v2125 = vrot.slane %v2121, 6
          %v2126 = vrot.slane %v2123, 6
          %2129 = vmatprep.subr.mxu0 %v736
          %2130 = vmatpush1.msra.mxu0 %v735
          %2131 = vmatprep.subr.mxu0 %v740
          %2132 = vmatpush1.msra.mxu0 %v739
          %2133 = vmatprep.subr.mxu0 %v744
          %2134 = vmatpush1.msra.mxu0 %v743
          %2135 = vmatprep.subr.mxu0 %v748
          %2136 = vmatpush1.msra.mxu0 %v747
          %2137 = vmatprep.subr.mxu0 %v752
          %2138 = vmatpush1.msra.mxu0 %v751
          %2139 = vmatprep.subr.mxu0 %v756
          %2140 = vmatpush1.msra.mxu0 %v755
          %2141 = vmatprep.subr.mxu0 %v760
          %2142 = vmatpush1.msra.mxu0 %v759
          %2143 = vmatprep.subr.mxu0 %v764
          %2144 = vmatpush1.msra.mxu0 %v763
          %2145 = vmatprep.subr.mxu0 %v768
          %2146 = vmatpush1.msra.mxu0 %v767
          %2147 = vmatprep.subr.mxu0 %v772
          %2148 = vmatpush1.msra.mxu0 %v771
          %2149 = vmatprep.subr.mxu0 %v776
          %2150 = vmatpush1.msra.mxu0 %v775
          %2151 = vmatprep.subr.mxu0 %v780
          %2152 = vmatpush1.msra.mxu0 %v779
          %2153 = vmatprep.subr.mxu0 %v784
          %2154 = vmatpush1.msra.mxu0 %v783
          %2155 = vmatprep.subr.mxu0 %v788
          %2156 = vmatpush1.msra.mxu0 %v787
          %2157 = vmatprep.subr.mxu0 %v792
          %2158 = vmatpush1.msra.mxu0 %v791
          %2159 = vmatprep.subr.mxu0 %v796
          %2160 = vmatpush1.msra.mxu0 %v795
          %2161 = vmatprep.subr.mxu0 %v800
          %2162 = vmatpush1.msra.mxu0 %v799
          %2163 = vmatprep.subr.mxu0 %v804
          %2164 = vmatpush1.msra.mxu0 %v803
          %2165 = vmatprep.subr.mxu0 %v808
          %2166 = vmatpush1.msra.mxu0 %v807
          %2167 = vmatprep.subr.mxu0 %v812
          %2168 = vmatpush1.msra.mxu0 %v811
          %2169 = vmatprep.subr.mxu0 %v816
          %2170 = vmatpush1.msra.mxu0 %v815
          %2171 = vmatprep.subr.mxu0 %v820
          %2172 = vmatpush1.msra.mxu0 %v819
          %2173 = vmatprep.subr.mxu0 %v824
          %2174 = vmatpush1.msra.mxu0 %v823
          %2175 = vmatprep.subr.mxu0 %v828
          %2176 = vmatpush1.msra.mxu0 %v827
          %2177 = vmatprep.subr.mxu0 %v832
          %2178 = vmatpush1.msra.mxu0 %v831
          %2179 = vmatprep.subr.mxu0 %v836
          %2180 = vmatpush1.msra.mxu0 %v835
          %2181 = vmatprep.subr.mxu0 %v840
          %2182 = vmatpush1.msra.mxu0 %v839
          %2183 = vmatprep.subr.mxu0 %v844
          %2184 = vmatpush1.msra.mxu0 %v843
          %2185 = vmatprep.subr.mxu0 %v848
          %2186 = vmatpush1.msra.mxu0 %v847
          %2187 = vmatprep.subr.mxu0 %v852
          %2188 = vmatpush1.msra.mxu0 %v851
          %2189 = vmatprep.subr.mxu0 %v856
          %2190 = vmatpush1.msra.mxu0 %v855
          %2191 = vmatprep.subr.mxu0 %v860
          %2192 = vmatpush1.msra.mxu0 %v859
          %2193 = vmatprep.mubr.f32.mxu0 %v2126
          %2194 = vmatmul.mubr.f32.gmra.mrb[0].mxu0 %v2125
          %v2195 = vpop.f32.mrb[0].mxu0
          %v2196 = vadd.f32 %v1038, %v2195
          %v2197 = vpop.f32.mrb[0].mxu0
          %v2198 = vadd.f32 %v1042, %v2197
          %2199 = vdwg.mxu0
          %2200 = vmatprep.subr.mxu0 %v738
          %2201 = vmatpush1.msra.mxu0 %v737
          %2202 = vmatprep.subr.mxu0 %v742
          %2203 = vmatpush1.msra.mxu0 %v741
          %2204 = vmatprep.subr.mxu0 %v746
          %2205 = vmatpush1.msra.mxu0 %v745
          %2206 = vmatprep.subr.mxu0 %v750
          %2207 = vmatpush1.msra.mxu0 %v749
          %2208 = vmatprep.subr.mxu0 %v754
          %2209 = vmatpush1.msra.mxu0 %v753
          %2210 = vmatprep.subr.mxu0 %v758
          %2211 = vmatpush1.msra.mxu0 %v757
          %2212 = vmatprep.subr.mxu0 %v762
          %2213 = vmatpush1.msra.mxu0 %v761
          %2214 = vmatprep.subr.mxu0 %v766
          %2215 = vmatpush1.msra.mxu0 %v765
          %2216 = vmatprep.subr.mxu0 %v770
          %2217 = vmatpush1.msra.mxu0 %v769
          %2218 = vmatprep.subr.mxu0 %v774
          %2219 = vmatpush1.msra.mxu0 %v773
          %2220 = vmatprep.subr.mxu0 %v778
          %2221 = vmatpush1.msra.mxu0 %v777
          %2222 = vmatprep.subr.mxu0 %v782
          %2223 = vmatpush1.msra.mxu0 %v781
          %2224 = vmatprep.subr.mxu0 %v786
          %2225 = vmatpush1.msra.mxu0 %v785
          %2226 = vmatprep.subr.mxu0 %v790
          %2227 = vmatpush1.msra.mxu0 %v789
          %2228 = vmatprep.subr.mxu0 %v794
          %2229 = vmatpush1.msra.mxu0 %v793
          %2230 = vmatprep.subr.mxu0 %v798
          %2231 = vmatpush1.msra.mxu0 %v797
          %2232 = vmatprep.subr.mxu0 %v802
          %2233 = vmatpush1.msra.mxu0 %v801
          %2234 = vmatprep.subr.mxu0 %v806
          %2235 = vmatpush1.msra.mxu0 %v805
          %2236 = vmatprep.subr.mxu0 %v810
          %2237 = vmatpush1.msra.mxu0 %v809
          %2238 = vmatprep.subr.mxu0 %v814
          %2239 = vmatpush1.msra.mxu0 %v813
          %2240 = vmatprep.subr.mxu0 %v818
          %2241 = vmatpush1.msra.mxu0 %v817
          %2242 = vmatprep.subr.mxu0 %v822
          %2243 = vmatpush1.msra.mxu0 %v821
          %2244 = vmatprep.subr.mxu0 %v826
          %2245 = vmatpush1.msra.mxu0 %v825
          %2246 = vmatprep.subr.mxu0 %v830
          %2247 = vmatpush1.msra.mxu0 %v829
          %2248 = vmatprep.subr.mxu0 %v834
          %2249 = vmatpush1.msra.mxu0 %v833
          %2250 = vmatprep.subr.mxu0 %v838
          %2251 = vmatpush1.msra.mxu0 %v837
          %2252 = vmatprep.subr.mxu0 %v842
          %2253 = vmatpush1.msra.mxu0 %v841
          %2254 = vmatprep.subr.mxu0 %v846
          %2255 = vmatpush1.msra.mxu0 %v845
          %2256 = vmatprep.subr.mxu0 %v850
          %2257 = vmatpush1.msra.mxu0 %v849
          %2258 = vmatprep.subr.mxu0 %v854
          %2259 = vmatpush1.msra.mxu0 %v853
          %2260 = vmatprep.subr.mxu0 %v858
          %2261 = vmatpush1.msra.mxu0 %v857
          %2262 = vmatprep.subr.mxu0 %v862
          %2263 = vmatpush1.msra.mxu0 %v861
          %2264 = vmatprep.mubr.f32.mxu0 %v2126
          %2265 = vmatmul.mubr.f32.gmra.mrb[0].mxu0 %v2125
          %v2266 = vpop.f32.mrb[0].mxu0
          %v2267 = vadd.f32 %v1046, %v2266
          %v2268 = vpop.f32.mrb[0].mxu0
          %v2269 = vadd.f32 %v1050, %v2268
          %2270 = vdwg.mxu0
          %v2271 = vxor.u32 %v2196, 2147483648
          %v2272 = vmul.f32 %v2271, 1.442695
          %v2273 = vpow.pop %v2272
          %v2274 = vadd.f32 %v2273, 1.0
          %v2275 = vrcp.pop %v2274
          %v2276 = vmul.f32 1.0, %v2275
          %v2277 = vxor.u32 %v2198, 2147483648
          %v2278 = vmul.f32 %v2277, 1.442695
          %v2279 = vpow.pop %v2278
          %v2280 = vadd.f32 %v2279, 1.0
          %v2281 = vrcp.pop %v2280
          %v2282 = vmul.f32 1.0, %v2281
          %v2283 = vtanh.pop %v2267
          %v2284 = vxor.u32 %v2269, 2147483648
          %v2285 = vmul.f32 %v2284, 1.442695
          %v2286 = vpow.pop %v2285
          %v2287 = vadd.f32 %v2286, 1.0
          %v2288 = vrcp.pop %v2287
          %v2289 = vmul.f32 1.0, %v2288
          %v2290 = vmul.f32 %v2282, %v1934
          %v2291 = vmul.f32 %v2276, %v2283
          %v2292 = vadd.f32 %v2290, %v2291
          %v2293 = vtanh.pop %v2292
          %v2294 = vmul.f32 %v2289, %v2293
          %2295 = vmatprep.subr.mxu0 %v672
          %2296 = vmatpush1.msra.mxu0 %v671
          %2297 = vmatprep.subr.mxu0 %v676
          %2298 = vmatpush1.msra.mxu0 %v675
          %2299 = vmatprep.subr.mxu0 %v680
          %2300 = vmatpush1.msra.mxu0 %v679
          %2301 = vmatprep.subr.mxu0 %v684
          %2302 = vmatpush1.msra.mxu0 %v683
          %2303 = vmatprep.subr.mxu0 %v688
          %2304 = vmatpush1.msra.mxu0 %v687
          %2305 = vmatprep.subr.mxu0 %v692
          %2306 = vmatpush1.msra.mxu0 %v691
          %2307 = vmatprep.subr.mxu0 %v696
          %2308 = vmatpush1.msra.mxu0 %v695
          %2309 = vmatprep.subr.mxu0 %v700
          %2310 = vmatpush1.msra.mxu0 %v699
          %2311 = vmatprep.subr.mxu0 %v704
          %2312 = vmatpush1.msra.mxu0 %v703
          %2313 = vmatprep.subr.mxu0 %v708
          %2314 = vmatpush1.msra.mxu0 %v707
          %2315 = vmatprep.subr.mxu0 %v712
          %2316 = vmatpush1.msra.mxu0 %v711
          %2317 = vmatprep.subr.mxu0 %v716
          %2318 = vmatpush1.msra.mxu0 %v715
          %2319 = vmatprep.subr.mxu0 %v720
          %2320 = vmatpush1.msra.mxu0 %v719
          %2321 = vmatprep.subr.mxu0 %v724
          %2322 = vmatpush1.msra.mxu0 %v723
          %2323 = vmatprep.subr.mxu0 %v728
          %2324 = vmatpush1.msra.mxu0 %v727
          %2325 = vmatprep.subr.mxu0 %v732
          %2326 = vmatpush1.msra.mxu0 %v731
          %2327 = vmatprep.subr.mxu0 0.0
          %2328 = vmatpush1.msra.mxu0 0.0
          %2329 = vmatprep.subr.mxu0 0.0
          %2330 = vmatpush1.msra.mxu0 0.0
          %2331 = vmatprep.subr.mxu0 0.0
          %2332 = vmatpush1.msra.mxu0 0.0
          %2333 = vmatprep.subr.mxu0 0.0
          %2334 = vmatpush1.msra.mxu0 0.0
          %2335 = vmatprep.subr.mxu0 0.0
          %2336 = vmatpush1.msra.mxu0 0.0
          %2337 = vmatprep.subr.mxu0 0.0
          %2338 = vmatpush1.msra.mxu0 0.0
          %2339 = vmatprep.subr.mxu0 0.0
          %2340 = vmatpush1.msra.mxu0 0.0
          %2341 = vmatprep.subr.mxu0 0.0
          %2342 = vmatpush1.msra.mxu0 0.0
          %2343 = vmatprep.subr.mxu0 0.0
          %2344 = vmatpush1.msra.mxu0 0.0
          %2345 = vmatprep.subr.mxu0 0.0
          %2346 = vmatpush1.msra.mxu0 0.0
          %2347 = vmatprep.subr.mxu0 0.0
          %2348 = vmatpush1.msra.mxu0 0.0
          %2349 = vmatprep.subr.mxu0 0.0
          %2350 = vmatpush1.msra.mxu0 0.0
          %2351 = vmatprep.subr.mxu0 0.0
          %2352 = vmatpush1.msra.mxu0 0.0
          %2353 = vmatprep.subr.mxu0 0.0
          %2354 = vmatpush1.msra.mxu0 0.0
          %2355 = vmatprep.subr.mxu0 0.0
          %2356 = vmatpush1.msra.mxu0 0.0
          %2357 = vmatprep.subr.mxu0 0.0
          %2358 = vmatpush1.msra.mxu0 0.0
          %2359 = vmatprep.mubr.f32.mxu0 0.0
          %2360 = vmatmul.mubr.f32.gmra.mrb[0].mxu0 %v2125
          %v2361 = vpop.f32.mrb[0].mxu0
          %v2362 = vadd.f32 0.0, %v2361
          %v2363 = vpop.f32.mrb[0].mxu0
          %v2364 = vadd.f32 0.0, %v2363
          %2365 = vdwg.mxu0
          %2366 = vmatprep.subr.mxu0 %v674
          %2367 = vmatpush1.msra.mxu0 %v673
          %2368 = vmatprep.subr.mxu0 %v678
          %2369 = vmatpush1.msra.mxu0 %v677
          %2370 = vmatprep.subr.mxu0 %v682
          %2371 = vmatpush1.msra.mxu0 %v681
          %2372 = vmatprep.subr.mxu0 %v686
          %2373 = vmatpush1.msra.mxu0 %v685
          %2374 = vmatprep.subr.mxu0 %v690
          %2375 = vmatpush1.msra.mxu0 %v689
          %2376 = vmatprep.subr.mxu0 %v694
          %2377 = vmatpush1.msra.mxu0 %v693
          %2378 = vmatprep.subr.mxu0 %v698
          %2379 = vmatpush1.msra.mxu0 %v697
          %2380 = vmatprep.subr.mxu0 %v702
          %2381 = vmatpush1.msra.mxu0 %v701
          %2382 = vmatprep.subr.mxu0 %v706
          %2383 = vmatpush1.msra.mxu0 %v705
          %2384 = vmatprep.subr.mxu0 %v710
          %2385 = vmatpush1.msra.mxu0 %v709
          %2386 = vmatprep.subr.mxu0 %v714
          %2387 = vmatpush1.msra.mxu0 %v713
          %2388 = vmatprep.subr.mxu0 %v718
          %2389 = vmatpush1.msra.mxu0 %v717
          %2390 = vmatprep.subr.mxu0 %v722
          %2391 = vmatpush1.msra.mxu0 %v721
          %2392 = vmatprep.subr.mxu0 %v726
          %2393 = vmatpush1.msra.mxu0 %v725
          %2394 = vmatprep.subr.mxu0 %v730
          %2395 = vmatpush1.msra.mxu0 %v729
          %2396 = vmatprep.subr.mxu0 %v734
          %2397 = vmatpush1.msra.mxu0 %v733
          %2398 = vmatprep.subr.mxu0 0.0
          %2399 = vmatpush1.msra.mxu0 0.0
          %2400 = vmatprep.subr.mxu0 0.0
          %2401 = vmatpush1.msra.mxu0 0.0
          %2402 = vmatprep.subr.mxu0 0.0
          %2403 = vmatpush1.msra.mxu0 0.0
          %2404 = vmatprep.subr.mxu0 0.0
          %2405 = vmatpush1.msra.mxu0 0.0
          %2406 = vmatprep.subr.mxu0 0.0
          %2407 = vmatpush1.msra.mxu0 0.0
          %2408 = vmatprep.subr.mxu0 0.0
          %2409 = vmatpush1.msra.mxu0 0.0
          %2410 = vmatprep.subr.mxu0 0.0
          %2411 = vmatpush1.msra.mxu0 0.0
          %2412 = vmatprep.subr.mxu0 0.0
          %2413 = vmatpush1.msra.mxu0 0.0
          %2414 = vmatprep.subr.mxu0 0.0
          %2415 = vmatpush1.msra.mxu0 0.0
          %2416 = vmatprep.subr.mxu0 0.0
          %2417 = vmatpush1.msra.mxu0 0.0
          %2418 = vmatprep.subr.mxu0 0.0
          %2419 = vmatpush1.msra.mxu0 0.0
          %2420 = vmatprep.subr.mxu0 0.0
          %2421 = vmatpush1.msra.mxu0 0.0
          %2422 = vmatprep.subr.mxu0 0.0
          %2423 = vmatpush1.msra.mxu0 0.0
          %2424 = vmatprep.subr.mxu0 0.0
          %2425 = vmatpush1.msra.mxu0 0.0
          %2426 = vmatprep.subr.mxu0 0.0
          %2427 = vmatpush1.msra.mxu0 0.0
          %2428 = vmatprep.subr.mxu0 0.0
          %2429 = vmatpush1.msra.mxu0 0.0
          %2430 = vmatprep.mubr.f32.mxu0 0.0
          %2431 = vmatmul.mubr.f32.gmra.mrb[0].mxu0 %v2125
          %v2432 = vpop.f32.mrb[0].mxu0
          %v2433 = vadd.f32 0.0, %v2432
          %v2434 = vpop.f32.mrb[0].mxu0
          %v2435 = vadd.f32 0.0, %v2434
          %2436 = vdwg.mxu0
          %v2437 = vadd.f32 %v590, %v2362
          %v2438 = vadd.f32 %v592, %v2364
          %v2439 = vadd.f32 %v667, %v2433
          %v2440 = vadd.f32 %v669, %v2435
          %v2441 = vxor.u32 %v2437, 2147483648
          %v2442 = vmul.f32 %v2441, 1.442695
          %v2443 = vpow.pop %v2442
          %v2444 = vadd.f32 %v2443, 1.0
          %v2445 = vrcp.pop %v2444
          %v2446 = vmul.f32 1.0, %v2445
          %v2447 = vxor.u32 %v2438, 2147483648
          %v2448 = vmul.f32 %v2447, 1.442695
          %v2449 = vpow.pop %v2448
          %v2450 = vadd.f32 %v2449, 1.0
          %v2451 = vrcp.pop %v2450
          %v2452 = vmul.f32 1.0, %v2451
          %v2453 = vtanh.pop %v2439
          %v2454 = vxor.u32 %v2440, 2147483648
          %v2455 = vmul.f32 %v2454, 1.442695
          %v2456 = vpow.pop %v2455
          %v2457 = vadd.f32 %v2456, 1.0
          %v2458 = vrcp.pop %v2457
          %v2459 = vmul.f32 1.0, %v2458
          %v2461 = vrot.slane %v2119, 6
          %v2463 = vmul.f32 %v2452, %v2461
          %v2464 = vmul.f32 %v2446, %v2453
          %v2465 = vadd.f32 %v2463, %v2464
          %v2466 = vtanh.pop %v2465
          %v2467 = vmul.f32 %v2459, %v2466
          %2468 = vmatprep.subr.mxu0 %v736
          %2469 = vmatpush1.msra.mxu0 %v735
          %2470 = vmatprep.subr.mxu0 %v740
          %2471 = vmatpush1.msra.mxu0 %v739
          %2472 = vmatprep.subr.mxu0 %v744
          %2473 = vmatpush1.msra.mxu0 %v743
          %2474 = vmatprep.subr.mxu0 %v748
          %2475 = vmatpush1.msra.mxu0 %v747
          %2476 = vmatprep.subr.mxu0 %v752
          %2477 = vmatpush1.msra.mxu0 %v751
          %2478 = vmatprep.subr.mxu0 %v756
          %2479 = vmatpush1.msra.mxu0 %v755
          %2480 = vmatprep.subr.mxu0 %v760
          %2481 = vmatpush1.msra.mxu0 %v759
          %2482 = vmatprep.subr.mxu0 %v764
          %2483 = vmatpush1.msra.mxu0 %v763
          %2484 = vmatprep.subr.mxu0 %v768
          %2485 = vmatpush1.msra.mxu0 %v767
          %2486 = vmatprep.subr.mxu0 %v772
          %2487 = vmatpush1.msra.mxu0 %v771
          %2488 = vmatprep.subr.mxu0 %v776
          %2489 = vmatpush1.msra.mxu0 %v775
          %2490 = vmatprep.subr.mxu0 %v780
          %2491 = vmatpush1.msra.mxu0 %v779
          %2492 = vmatprep.subr.mxu0 %v784
          %2493 = vmatpush1.msra.mxu0 %v783
          %2494 = vmatprep.subr.mxu0 %v788
          %2495 = vmatpush1.msra.mxu0 %v787
          %2496 = vmatprep.subr.mxu0 %v792
          %2497 = vmatpush1.msra.mxu0 %v791
          %2498 = vmatprep.subr.mxu0 %v796
          %2499 = vmatpush1.msra.mxu0 %v795
          %2500 = vmatprep.subr.mxu0 %v800
          %2501 = vmatpush1.msra.mxu0 %v799
          %2502 = vmatprep.subr.mxu0 %v804
          %2503 = vmatpush1.msra.mxu0 %v803
          %2504 = vmatprep.subr.mxu0 %v808
          %2505 = vmatpush1.msra.mxu0 %v807
          %2506 = vmatprep.subr.mxu0 %v812
          %2507 = vmatpush1.msra.mxu0 %v811
          %2508 = vmatprep.subr.mxu0 %v816
          %2509 = vmatpush1.msra.mxu0 %v815
          %2510 = vmatprep.subr.mxu0 %v820
          %2511 = vmatpush1.msra.mxu0 %v819
          %2512 = vmatprep.subr.mxu0 %v824
          %2513 = vmatpush1.msra.mxu0 %v823
          %2514 = vmatprep.subr.mxu0 %v828
          %2515 = vmatpush1.msra.mxu0 %v827
          %2516 = vmatprep.subr.mxu0 %v832
          %2517 = vmatpush1.msra.mxu0 %v831
          %2518 = vmatprep.subr.mxu0 %v836
          %2519 = vmatpush1.msra.mxu0 %v835
          %2520 = vmatprep.subr.mxu0 %v840
          %2521 = vmatpush1.msra.mxu0 %v839
          %2522 = vmatprep.subr.mxu0 %v844
          %2523 = vmatpush1.msra.mxu0 %v843
          %2524 = vmatprep.subr.mxu0 %v848
          %2525 = vmatpush1.msra.mxu0 %v847
          %2526 = vmatprep.subr.mxu0 %v852
          %2527 = vmatpush1.msra.mxu0 %v851
          %2528 = vmatprep.subr.mxu0 %v856
          %2529 = vmatpush1.msra.mxu0 %v855
          %2530 = vmatprep.subr.mxu0 %v860
          %2531 = vmatpush1.msra.mxu0 %v859
          %2532 = vmatprep.mubr.f32.mxu0 %v2294
          %2533 = vmatmul.mubr.f32.gmra.mrb[0].mxu0 %v2467
          %v2534 = vpop.f32.mrb[0].mxu0
          %v2535 = vadd.f32 %v1038, %v2534
          %v2536 = vpop.f32.mrb[0].mxu0
          %v2537 = vadd.f32 %v1042, %v2536
          %2538 = vdwg.mxu0
          %2539 = vmatprep.subr.mxu0 %v738
          %2540 = vmatpush1.msra.mxu0 %v737
          %2541 = vmatprep.subr.mxu0 %v742
          %2542 = vmatpush1.msra.mxu0 %v741
          %2543 = vmatprep.subr.mxu0 %v746
          %2544 = vmatpush1.msra.mxu0 %v745
          %2545 = vmatprep.subr.mxu0 %v750
          %2546 = vmatpush1.msra.mxu0 %v749
          %2547 = vmatprep.subr.mxu0 %v754
          %2548 = vmatpush1.msra.mxu0 %v753
          %2549 = vmatprep.subr.mxu0 %v758
          %2550 = vmatpush1.msra.mxu0 %v757
          %2551 = vmatprep.subr.mxu0 %v762
          %2552 = vmatpush1.msra.mxu0 %v761
          %2553 = vmatprep.subr.mxu0 %v766
          %2554 = vmatpush1.msra.mxu0 %v765
          %2555 = vmatprep.subr.mxu0 %v770
          %2556 = vmatpush1.msra.mxu0 %v769
          %2557 = vmatprep.subr.mxu0 %v774
          %2558 = vmatpush1.msra.mxu0 %v773
          %2559 = vmatprep.subr.mxu0 %v778
          %2560 = vmatpush1.msra.mxu0 %v777
          %2561 = vmatprep.subr.mxu0 %v782
          %2562 = vmatpush1.msra.mxu0 %v781
          %2563 = vmatprep.subr.mxu0 %v786
          %2564 = vmatpush1.msra.mxu0 %v785
          %2565 = vmatprep.subr.mxu0 %v790
          %2566 = vmatpush1.msra.mxu0 %v789
          %2567 = vmatprep.subr.mxu0 %v794
          %2568 = vmatpush1.msra.mxu0 %v793
          %2569 = vmatprep.subr.mxu0 %v798
          %2570 = vmatpush1.msra.mxu0 %v797
          %2571 = vmatprep.subr.mxu0 %v802
          %2572 = vmatpush1.msra.mxu0 %v801
          %2573 = vmatprep.subr.mxu0 %v806
          %2574 = vmatpush1.msra.mxu0 %v805
          %2575 = vmatprep.subr.mxu0 %v810
          %2576 = vmatpush1.msra.mxu0 %v809
          %2577 = vmatprep.subr.mxu0 %v814
          %2578 = vmatpush1.msra.mxu0 %v813
          %2579 = vmatprep.subr.mxu0 %v818
          %2580 = vmatpush1.msra.mxu0 %v817
          %2581 = vmatprep.subr.mxu0 %v822
          %2582 = vmatpush1.msra.mxu0 %v821
          %2583 = vmatprep.subr.mxu0 %v826
          %2584 = vmatpush1.msra.mxu0 %v825
          %2585 = vmatprep.subr.mxu0 %v830
          %2586 = vmatpush1.msra.mxu0 %v829
          %2587 = vmatprep.subr.mxu0 %v834
          %2588 = vmatpush1.msra.mxu0 %v833
          %2589 = vmatprep.subr.mxu0 %v838
          %2590 = vmatpush1.msra.mxu0 %v837
          %2591 = vmatprep.subr.mxu0 %v842
          %2592 = vmatpush1.msra.mxu0 %v841
          %2593 = vmatprep.subr.mxu0 %v846
          %2594 = vmatpush1.msra.mxu0 %v845
          %2595 = vmatprep.subr.mxu0 %v850
          %2596 = vmatpush1.msra.mxu0 %v849
          %2597 = vmatprep.subr.mxu0 %v854
          %2598 = vmatpush1.msra.mxu0 %v853
          %2599 = vmatprep.subr.mxu0 %v858
          %2600 = vmatpush1.msra.mxu0 %v857
          %2601 = vmatprep.subr.mxu0 %v862
          %2602 = vmatpush1.msra.mxu0 %v861
          %2603 = vmatprep.mubr.f32.mxu0 %v2294
          %2604 = vmatmul.mubr.f32.gmra.mrb[0].mxu0 %v2467
          %v2605 = vpop.f32.mrb[0].mxu0
          %v2606 = vadd.f32 %v1046, %v2605
          %v2607 = vpop.f32.mrb[0].mxu0
          %v2608 = vadd.f32 %v1050, %v2607
          %2609 = vdwg.mxu0
          %v2610 = vxor.u32 %v2535, 2147483648
          %v2611 = vmul.f32 %v2610, 1.442695
          %v2612 = vpow.pop %v2611
          %v2613 = vadd.f32 %v2612, 1.0
          %v2614 = vrcp.pop %v2613
          %v2615 = vmul.f32 1.0, %v2614
          %v2616 = vxor.u32 %v2537, 2147483648
          %v2617 = vmul.f32 %v2616, 1.442695
          %v2618 = vpow.pop %v2617
          %v2619 = vadd.f32 %v2618, 1.0
          %v2620 = vrcp.pop %v2619
          %v2621 = vmul.f32 1.0, %v2620
          %v2622 = vtanh.pop %v2606
          %v2623 = vxor.u32 %v2608, 2147483648
          %v2624 = vmul.f32 %v2623, 1.442695
          %v2625 = vpow.pop %v2624
          %v2626 = vadd.f32 %v2625, 1.0
          %v2627 = vrcp.pop %v2626
          %v2628 = vmul.f32 1.0, %v2627
          %v2629 = vmul.f32 %v2621, %v2292
          %v2630 = vmul.f32 %v2615, %v2622
          %v2631 = vadd.f32 %v2629, %v2630
          %v2632 = vtanh.pop %v2631
          %v2633 = vmul.f32 %v2628, %v2632
          %2634 = vmatprep.subr.mxu0 %v672
          %2635 = vmatpush1.msra.mxu0 %v671
          %2636 = vmatprep.subr.mxu0 %v676
          %2637 = vmatpush1.msra.mxu0 %v675
          %2638 = vmatprep.subr.mxu0 %v680
          %2639 = vmatpush1.msra.mxu0 %v679
          %2640 = vmatprep.subr.mxu0 %v684
          %2641 = vmatpush1.msra.mxu0 %v683
          %2642 = vmatprep.subr.mxu0 %v688
          %2643 = vmatpush1.msra.mxu0 %v687
          %2644 = vmatprep.subr.mxu0 %v692
          %2645 = vmatpush1.msra.mxu0 %v691
          %2646 = vmatprep.subr.mxu0 %v696
          %2647 = vmatpush1.msra.mxu0 %v695
          %2648 = vmatprep.subr.mxu0 %v700
          %2649 = vmatpush1.msra.mxu0 %v699
          %2650 = vmatprep.subr.mxu0 %v704
          %2651 = vmatpush1.msra.mxu0 %v703
          %2652 = vmatprep.subr.mxu0 %v708
          %2653 = vmatpush1.msra.mxu0 %v707
          %2654 = vmatprep.subr.mxu0 %v712
          %2655 = vmatpush1.msra.mxu0 %v711
          %2656 = vmatprep.subr.mxu0 %v716
          %2657 = vmatpush1.msra.mxu0 %v715
          %2658 = vmatprep.subr.mxu0 %v720
          %2659 = vmatpush1.msra.mxu0 %v719
          %2660 = vmatprep.subr.mxu0 %v724
          %2661 = vmatpush1.msra.mxu0 %v723
          %2662 = vmatprep.subr.mxu0 %v728
          %2663 = vmatpush1.msra.mxu0 %v727
          %2664 = vmatprep.subr.mxu0 %v732
          %2665 = vmatpush1.msra.mxu0 %v731
          %2666 = vmatprep.subr.mxu0 0.0
          %2667 = vmatpush1.msra.mxu0 0.0
          %2668 = vmatprep.subr.mxu0 0.0
          %2669 = vmatpush1.msra.mxu0 0.0
          %2670 = vmatprep.subr.mxu0 0.0
          %2671 = vmatpush1.msra.mxu0 0.0
          %2672 = vmatprep.subr.mxu0 0.0
          %2673 = vmatpush1.msra.mxu0 0.0
          %2674 = vmatprep.subr.mxu0 0.0
          %2675 = vmatpush1.msra.mxu0 0.0
          %2676 = vmatprep.subr.mxu0 0.0
          %2677 = vmatpush1.msra.mxu0 0.0
          %2678 = vmatprep.subr.mxu0 0.0
          %2679 = vmatpush1.msra.mxu0 0.0
          %2680 = vmatprep.subr.mxu0 0.0
          %2681 = vmatpush1.msra.mxu0 0.0
          %2682 = vmatprep.subr.mxu0 0.0
          %2683 = vmatpush1.msra.mxu0 0.0
          %2684 = vmatprep.subr.mxu0 0.0
          %2685 = vmatpush1.msra.mxu0 0.0
          %2686 = vmatprep.subr.mxu0 0.0
          %2687 = vmatpush1.msra.mxu0 0.0
          %2688 = vmatprep.subr.mxu0 0.0
          %2689 = vmatpush1.msra.mxu0 0.0
          %2690 = vmatprep.subr.mxu0 0.0
          %2691 = vmatpush1.msra.mxu0 0.0
          %2692 = vmatprep.subr.mxu0 0.0
          %2693 = vmatpush1.msra.mxu0 0.0
          %2694 = vmatprep.subr.mxu0 0.0
          %2695 = vmatpush1.msra.mxu0 0.0
          %2696 = vmatprep.subr.mxu0 0.0
          %2697 = vmatpush1.msra.mxu0 0.0
          %2698 = vmatprep.mubr.f32.mxu0 0.0
          %2699 = vmatmul.mubr.f32.gmra.mrb[0].mxu0 %v2467
          %v2700 = vpop.f32.mrb[0].mxu0
          %v2701 = vadd.f32 0.0, %v2700
          %v2702 = vpop.f32.mrb[0].mxu0
          %v2703 = vadd.f32 0.0, %v2702
          %2704 = vdwg.mxu0
          %2705 = vmatprep.subr.mxu0 %v674
          %2706 = vmatpush1.msra.mxu0 %v673
          %2707 = vmatprep.subr.mxu0 %v678
          %2708 = vmatpush1.msra.mxu0 %v677
          %2709 = vmatprep.subr.mxu0 %v682
          %2710 = vmatpush1.msra.mxu0 %v681
          %2711 = vmatprep.subr.mxu0 %v686
          %2712 = vmatpush1.msra.mxu0 %v685
          %2713 = vmatprep.subr.mxu0 %v690
          %2714 = vmatpush1.msra.mxu0 %v689
          %2715 = vmatprep.subr.mxu0 %v694
          %2716 = vmatpush1.msra.mxu0 %v693
          %2717 = vmatprep.subr.mxu0 %v698
          %2718 = vmatpush1.msra.mxu0 %v697
          %2719 = vmatprep.subr.mxu0 %v702
          %2720 = vmatpush1.msra.mxu0 %v701
          %2721 = vmatprep.subr.mxu0 %v706
          %2722 = vmatpush1.msra.mxu0 %v705
          %2723 = vmatprep.subr.mxu0 %v710
          %2724 = vmatpush1.msra.mxu0 %v709
          %2725 = vmatprep.subr.mxu0 %v714
          %2726 = vmatpush1.msra.mxu0 %v713
          %2727 = vmatprep.subr.mxu0 %v718
          %2728 = vmatpush1.msra.mxu0 %v717
          %2729 = vmatprep.subr.mxu0 %v722
          %2730 = vmatpush1.msra.mxu0 %v721
          %2731 = vmatprep.subr.mxu0 %v726
          %2732 = vmatpush1.msra.mxu0 %v725
          %2733 = vmatprep.subr.mxu0 %v730
          %2734 = vmatpush1.msra.mxu0 %v729
          %2735 = vmatprep.subr.mxu0 %v734
          %2736 = vmatpush1.msra.mxu0 %v733
          %2737 = vmatprep.subr.mxu0 0.0
          %2738 = vmatpush1.msra.mxu0 0.0
          %2739 = vmatprep.subr.mxu0 0.0
          %2740 = vmatpush1.msra.mxu0 0.0
          %2741 = vmatprep.subr.mxu0 0.0
          %2742 = vmatpush1.msra.mxu0 0.0
          %2743 = vmatprep.subr.mxu0 0.0
          %2744 = vmatpush1.msra.mxu0 0.0
          %2745 = vmatprep.subr.mxu0 0.0
          %2746 = vmatpush1.msra.mxu0 0.0
          %2747 = vmatprep.subr.mxu0 0.0
          %2748 = vmatpush1.msra.mxu0 0.0
          %2749 = vmatprep.subr.mxu0 0.0
          %2750 = vmatpush1.msra.mxu0 0.0
          %2751 = vmatprep.subr.mxu0 0.0
          %2752 = vmatpush1.msra.mxu0 0.0
          %2753 = vmatprep.subr.mxu0 0.0
          %2754 = vmatpush1.msra.mxu0 0.0
          %2755 = vmatprep.subr.mxu0 0.0
          %2756 = vmatpush1.msra.mxu0 0.0
          %2757 = vmatprep.subr.mxu0 0.0
          %2758 = vmatpush1.msra.mxu0 0.0
          %2759 = vmatprep.subr.mxu0 0.0
          %2760 = vmatpush1.msra.mxu0 0.0
          %2761 = vmatprep.subr.mxu0 0.0
          %2762 = vmatpush1.msra.mxu0 0.0
          %2763 = vmatprep.subr.mxu0 0.0
          %2764 = vmatpush1.msra.mxu0 0.0
          %2765 = vmatprep.subr.mxu0 0.0
          %2766 = vmatpush1.msra.mxu0 0.0
          %2767 = vmatprep.subr.mxu0 0.0
          %2768 = vmatpush1.msra.mxu0 0.0
          %2769 = vmatprep.mubr.f32.mxu0 0.0
          %2770 = vmatmul.mubr.f32.gmra.mrb[0].mxu0 %v2467
          %v2771 = vpop.f32.mrb[0].mxu0
          %v2772 = vadd.f32 0.0, %v2771
          %v2773 = vpop.f32.mrb[0].mxu0
          %v2774 = vadd.f32 0.0, %v2773
          %2775 = vdwg.mxu0
          %v2780 = vrot.slane %v2701, 6
          %v2781 = vrot.slane %v2703, 6
          %v2782 = vrot.slane %v2772, 6
          %v2783 = vrot.slane %v2774, 6
          %v2788 = vadd.f32 %v590, %v2780
          %v2789 = vadd.f32 %v592, %v2781
          %v2790 = vadd.f32 %v667, %v2782
          %v2791 = vadd.f32 %v669, %v2783
          %v2792 = vxor.u32 %v2788, 2147483648
          %v2793 = vmul.f32 %v2792, 1.442695
          %v2794 = vpow.pop %v2793
          %v2795 = vadd.f32 %v2794, 1.0
          %v2796 = vrcp.pop %v2795
          %v2797 = vmul.f32 1.0, %v2796
          %v2798 = vxor.u32 %v2789, 2147483648
          %v2799 = vmul.f32 %v2798, 1.442695
          %v2800 = vpow.pop %v2799
          %v2801 = vadd.f32 %v2800, 1.0
          %v2802 = vrcp.pop %v2801
          %v2803 = vmul.f32 1.0, %v2802
          %v2804 = vtanh.pop %v2790
          %v2805 = vxor.u32 %v2791, 2147483648
          %v2806 = vmul.f32 %v2805, 1.442695
          %v2807 = vpow.pop %v2806
          %v2808 = vadd.f32 %v2807, 1.0
          %v2809 = vrcp.pop %v2808
          %v2810 = vmul.f32 1.0, %v2809
          %v2812 = vrot.slane %v2465, 6
          %v2814 = vmul.f32 %v2803, %v2812
          %v2815 = vmul.f32 %v2797, %v2804
          %v2816 = vadd.f32 %v2814, %v2815
          %v2817 = vtanh.pop %v2816
          %v2818 = vmul.f32 %v2810, %v2817
          %v2820 = vrot.slane %v2633, 6
          %v2822 = vrot.slane %v2818, 2
          %v2823 = vrot.slane %v2820, 2
          %2826 = vmatprep.subr.mxu0 %v736
          %2827 = vmatpush1.msra.mxu0 %v735
          %2828 = vmatprep.subr.mxu0 %v740
          %2829 = vmatpush1.msra.mxu0 %v739
          %2830 = vmatprep.subr.mxu0 %v744
          %2831 = vmatpush1.msra.mxu0 %v743
          %2832 = vmatprep.subr.mxu0 %v748
          %2833 = vmatpush1.msra.mxu0 %v747
          %2834 = vmatprep.subr.mxu0 %v752
          %2835 = vmatpush1.msra.mxu0 %v751
          %2836 = vmatprep.subr.mxu0 %v756
          %2837 = vmatpush1.msra.mxu0 %v755
          %2838 = vmatprep.subr.mxu0 %v760
          %2839 = vmatpush1.msra.mxu0 %v759
          %2840 = vmatprep.subr.mxu0 %v764
          %2841 = vmatpush1.msra.mxu0 %v763
          %2842 = vmatprep.subr.mxu0 %v768
          %2843 = vmatpush1.msra.mxu0 %v767
          %2844 = vmatprep.subr.mxu0 %v772
          %2845 = vmatpush1.msra.mxu0 %v771
          %2846 = vmatprep.subr.mxu0 %v776
          %2847 = vmatpush1.msra.mxu0 %v775
          %2848 = vmatprep.subr.mxu0 %v780
          %2849 = vmatpush1.msra.mxu0 %v779
          %2850 = vmatprep.subr.mxu0 %v784
          %2851 = vmatpush1.msra.mxu0 %v783
          %2852 = vmatprep.subr.mxu0 %v788
          %2853 = vmatpush1.msra.mxu0 %v787
          %2854 = vmatprep.subr.mxu0 %v792
          %2855 = vmatpush1.msra.mxu0 %v791
          %2856 = vmatprep.subr.mxu0 %v796
          %2857 = vmatpush1.msra.mxu0 %v795
          %2858 = vmatprep.subr.mxu0 %v800
          %2859 = vmatpush1.msra.mxu0 %v799
          %2860 = vmatprep.subr.mxu0 %v804
          %2861 = vmatpush1.msra.mxu0 %v803
          %2862 = vmatprep.subr.mxu0 %v808
          %2863 = vmatpush1.msra.mxu0 %v807
          %2864 = vmatprep.subr.mxu0 %v812
          %2865 = vmatpush1.msra.mxu0 %v811
          %2866 = vmatprep.subr.mxu0 %v816
          %2867 = vmatpush1.msra.mxu0 %v815
          %2868 = vmatprep.subr.mxu0 %v820
          %2869 = vmatpush1.msra.mxu0 %v819
          %2870 = vmatprep.subr.mxu0 %v824
          %2871 = vmatpush1.msra.mxu0 %v823
          %2872 = vmatprep.subr.mxu0 %v828
          %2873 = vmatpush1.msra.mxu0 %v827
          %2874 = vmatprep.subr.mxu0 %v832
          %2875 = vmatpush1.msra.mxu0 %v831
          %2876 = vmatprep.subr.mxu0 %v836
          %2877 = vmatpush1.msra.mxu0 %v835
          %2878 = vmatprep.subr.mxu0 %v840
          %2879 = vmatpush1.msra.mxu0 %v839
          %2880 = vmatprep.subr.mxu0 %v844
          %2881 = vmatpush1.msra.mxu0 %v843
          %2882 = vmatprep.subr.mxu0 %v848
          %2883 = vmatpush1.msra.mxu0 %v847
          %2884 = vmatprep.subr.mxu0 %v852
          %2885 = vmatpush1.msra.mxu0 %v851
          %2886 = vmatprep.subr.mxu0 %v856
          %2887 = vmatpush1.msra.mxu0 %v855
          %2888 = vmatprep.subr.mxu0 %v860
          %2889 = vmatpush1.msra.mxu0 %v859
          %2890 = vmatprep.mubr.f32.mxu0 %v2823
          %2891 = vmatmul.mubr.f32.gmra.mrb[0].mxu0 %v2822
          %v2892 = vpop.f32.mrb[0].mxu0
          %v2893 = vadd.f32 %v1038, %v2892
          %v2894 = vpop.f32.mrb[0].mxu0
          %v2895 = vadd.f32 %v1042, %v2894
          %2896 = vdwg.mxu0
          %2897 = vmatprep.subr.mxu0 %v738
          %2898 = vmatpush1.msra.mxu0 %v737
          %2899 = vmatprep.subr.mxu0 %v742
          %2900 = vmatpush1.msra.mxu0 %v741
          %2901 = vmatprep.subr.mxu0 %v746
          %2902 = vmatpush1.msra.mxu0 %v745
          %2903 = vmatprep.subr.mxu0 %v750
          %2904 = vmatpush1.msra.mxu0 %v749
          %2905 = vmatprep.subr.mxu0 %v754
          %2906 = vmatpush1.msra.mxu0 %v753
          %2907 = vmatprep.subr.mxu0 %v758
          %2908 = vmatpush1.msra.mxu0 %v757
          %2909 = vmatprep.subr.mxu0 %v762
          %2910 = vmatpush1.msra.mxu0 %v761
          %2911 = vmatprep.subr.mxu0 %v766
          %2912 = vmatpush1.msra.mxu0 %v765
          %2913 = vmatprep.subr.mxu0 %v770
          %2914 = vmatpush1.msra.mxu0 %v769
          %2915 = vmatprep.subr.mxu0 %v774
          %2916 = vmatpush1.msra.mxu0 %v773
          %2917 = vmatprep.subr.mxu0 %v778
          %2918 = vmatpush1.msra.mxu0 %v777
          %2919 = vmatprep.subr.mxu0 %v782
          %2920 = vmatpush1.msra.mxu0 %v781
          %2921 = vmatprep.subr.mxu0 %v786
          %2922 = vmatpush1.msra.mxu0 %v785
          %2923 = vmatprep.subr.mxu0 %v790
          %2924 = vmatpush1.msra.mxu0 %v789
          %2925 = vmatprep.subr.mxu0 %v794
          %2926 = vmatpush1.msra.mxu0 %v793
          %2927 = vmatprep.subr.mxu0 %v798
          %2928 = vmatpush1.msra.mxu0 %v797
          %2929 = vmatprep.subr.mxu0 %v802
          %2930 = vmatpush1.msra.mxu0 %v801
          %2931 = vmatprep.subr.mxu0 %v806
          %2932 = vmatpush1.msra.mxu0 %v805
          %2933 = vmatprep.subr.mxu0 %v810
          %2934 = vmatpush1.msra.mxu0 %v809
          %2935 = vmatprep.subr.mxu0 %v814
          %2936 = vmatpush1.msra.mxu0 %v813
          %2937 = vmatprep.subr.mxu0 %v818
          %2938 = vmatpush1.msra.mxu0 %v817
          %2939 = vmatprep.subr.mxu0 %v822
          %2940 = vmatpush1.msra.mxu0 %v821
          %2941 = vmatprep.subr.mxu0 %v826
          %2942 = vmatpush1.msra.mxu0 %v825
          %2943 = vmatprep.subr.mxu0 %v830
          %2944 = vmatpush1.msra.mxu0 %v829
          %2945 = vmatprep.subr.mxu0 %v834
          %2946 = vmatpush1.msra.mxu0 %v833
          %2947 = vmatprep.subr.mxu0 %v838
          %2948 = vmatpush1.msra.mxu0 %v837
          %2949 = vmatprep.subr.mxu0 %v842
          %2950 = vmatpush1.msra.mxu0 %v841
          %2951 = vmatprep.subr.mxu0 %v846
          %2952 = vmatpush1.msra.mxu0 %v845
          %2953 = vmatprep.subr.mxu0 %v850
          %2954 = vmatpush1.msra.mxu0 %v849
          %2955 = vmatprep.subr.mxu0 %v854
          %2956 = vmatpush1.msra.mxu0 %v853
          %2957 = vmatprep.subr.mxu0 %v858
          %2958 = vmatpush1.msra.mxu0 %v857
          %2959 = vmatprep.subr.mxu0 %v862
          %2960 = vmatpush1.msra.mxu0 %v861
          %2961 = vmatprep.mubr.f32.mxu0 %v2823
          %2962 = vmatmul.mubr.f32.gmra.mrb[0].mxu0 %v2822
          %v2963 = vpop.f32.mrb[0].mxu0
          %v2964 = vadd.f32 %v1046, %v2963
          %v2965 = vpop.f32.mrb[0].mxu0
          %v2966 = vadd.f32 %v1050, %v2965
          %2967 = vdwg.mxu0
          %v2968 = vxor.u32 %v2893, 2147483648
          %v2969 = vmul.f32 %v2968, 1.442695
          %v2970 = vpow.pop %v2969
          %v2971 = vadd.f32 %v2970, 1.0
          %v2972 = vrcp.pop %v2971
          %v2973 = vmul.f32 1.0, %v2972
          %v2974 = vxor.u32 %v2895, 2147483648
          %v2975 = vmul.f32 %v2974, 1.442695
          %v2976 = vpow.pop %v2975
          %v2977 = vadd.f32 %v2976, 1.0
          %v2978 = vrcp.pop %v2977
          %v2979 = vmul.f32 1.0, %v2978
          %v2980 = vtanh.pop %v2964
          %v2981 = vxor.u32 %v2966, 2147483648
          %v2982 = vmul.f32 %v2981, 1.442695
          %v2983 = vpow.pop %v2982
          %v2984 = vadd.f32 %v2983, 1.0
          %v2985 = vrcp.pop %v2984
          %v2986 = vmul.f32 1.0, %v2985
          %v2987 = vmul.f32 %v2979, %v2631
          %v2988 = vmul.f32 %v2973, %v2980
          %v2989 = vadd.f32 %v2987, %v2988
          %v2990 = vtanh.pop %v2989
          %v2991 = vmul.f32 %v2986, %v2990
          %2992 = vmatprep.subr.mxu0 %v672
          %2993 = vmatpush1.msra.mxu0 %v671
          %2994 = vmatprep.subr.mxu0 %v676
          %2995 = vmatpush1.msra.mxu0 %v675
          %2996 = vmatprep.subr.mxu0 %v680
          %2997 = vmatpush1.msra.mxu0 %v679
          %2998 = vmatprep.subr.mxu0 %v684
          %2999 = vmatpush1.msra.mxu0 %v683
          %3000 = vmatprep.subr.mxu0 %v688
          %3001 = vmatpush1.msra.mxu0 %v687
          %3002 = vmatprep.subr.mxu0 %v692
          %3003 = vmatpush1.msra.mxu0 %v691
          %3004 = vmatprep.subr.mxu0 %v696
          %3005 = vmatpush1.msra.mxu0 %v695
          %3006 = vmatprep.subr.mxu0 %v700
          %3007 = vmatpush1.msra.mxu0 %v699
          %3008 = vmatprep.subr.mxu0 %v704
          %3009 = vmatpush1.msra.mxu0 %v703
          %3010 = vmatprep.subr.mxu0 %v708
          %3011 = vmatpush1.msra.mxu0 %v707
          %3012 = vmatprep.subr.mxu0 %v712
          %3013 = vmatpush1.msra.mxu0 %v711
          %3014 = vmatprep.subr.mxu0 %v716
          %3015 = vmatpush1.msra.mxu0 %v715
          %3016 = vmatprep.subr.mxu0 %v720
          %3017 = vmatpush1.msra.mxu0 %v719
          %3018 = vmatprep.subr.mxu0 %v724
          %3019 = vmatpush1.msra.mxu0 %v723
          %3020 = vmatprep.subr.mxu0 %v728
          %3021 = vmatpush1.msra.mxu0 %v727
          %3022 = vmatprep.subr.mxu0 %v732
          %3023 = vmatpush1.msra.mxu0 %v731
          %3024 = vmatprep.subr.mxu0 0.0
          %3025 = vmatpush1.msra.mxu0 0.0
          %3026 = vmatprep.subr.mxu0 0.0
          %3027 = vmatpush1.msra.mxu0 0.0
          %3028 = vmatprep.subr.mxu0 0.0
          %3029 = vmatpush1.msra.mxu0 0.0
          %3030 = vmatprep.subr.mxu0 0.0
          %3031 = vmatpush1.msra.mxu0 0.0
          %3032 = vmatprep.subr.mxu0 0.0
          %3033 = vmatpush1.msra.mxu0 0.0
          %3034 = vmatprep.subr.mxu0 0.0
          %3035 = vmatpush1.msra.mxu0 0.0
          %3036 = vmatprep.subr.mxu0 0.0
          %3037 = vmatpush1.msra.mxu0 0.0
          %3038 = vmatprep.subr.mxu0 0.0
          %3039 = vmatpush1.msra.mxu0 0.0
          %3040 = vmatprep.subr.mxu0 0.0
          %3041 = vmatpush1.msra.mxu0 0.0
          %3042 = vmatprep.subr.mxu0 0.0
          %3043 = vmatpush1.msra.mxu0 0.0
          %3044 = vmatprep.subr.mxu0 0.0
          %3045 = vmatpush1.msra.mxu0 0.0
          %3046 = vmatprep.subr.mxu0 0.0
          %3047 = vmatpush1.msra.mxu0 0.0
          %3048 = vmatprep.subr.mxu0 0.0
          %3049 = vmatpush1.msra.mxu0 0.0
          %3050 = vmatprep.subr.mxu0 0.0
          %3051 = vmatpush1.msra.mxu0 0.0
          %3052 = vmatprep.subr.mxu0 0.0
          %3053 = vmatpush1.msra.mxu0 0.0
          %3054 = vmatprep.subr.mxu0 0.0
          %3055 = vmatpush1.msra.mxu0 0.0
          %3056 = vmatprep.mubr.f32.mxu0 0.0
          %3057 = vmatmul.mubr.f32.gmra.mrb[0].mxu0 %v2822
          %v3058 = vpop.f32.mrb[0].mxu0
          %v3059 = vadd.f32 0.0, %v3058
          %v3060 = vpop.f32.mrb[0].mxu0
          %v3061 = vadd.f32 0.0, %v3060
          %3062 = vdwg.mxu0
          %3063 = vmatprep.subr.mxu0 %v674
          %3064 = vmatpush1.msra.mxu0 %v673
          %3065 = vmatprep.subr.mxu0 %v678
          %3066 = vmatpush1.msra.mxu0 %v677
          %3067 = vmatprep.subr.mxu0 %v682
          %3068 = vmatpush1.msra.mxu0 %v681
          %3069 = vmatprep.subr.mxu0 %v686
          %3070 = vmatpush1.msra.mxu0 %v685
          %3071 = vmatprep.subr.mxu0 %v690
          %3072 = vmatpush1.msra.mxu0 %v689
          %3073 = vmatprep.subr.mxu0 %v694
          %3074 = vmatpush1.msra.mxu0 %v693
          %3075 = vmatprep.subr.mxu0 %v698
          %3076 = vmatpush1.msra.mxu0 %v697
          %3077 = vmatprep.subr.mxu0 %v702
          %3078 = vmatpush1.msra.mxu0 %v701
          %3079 = vmatprep.subr.mxu0 %v706
          %3080 = vmatpush1.msra.mxu0 %v705
          %3081 = vmatprep.subr.mxu0 %v710
          %3082 = vmatpush1.msra.mxu0 %v709
          %3083 = vmatprep.subr.mxu0 %v714
          %3084 = vmatpush1.msra.mxu0 %v713
          %3085 = vmatprep.subr.mxu0 %v718
          %3086 = vmatpush1.msra.mxu0 %v717
          %3087 = vmatprep.subr.mxu0 %v722
          %3088 = vmatpush1.msra.mxu0 %v721
          %3089 = vmatprep.subr.mxu0 %v726
          %3090 = vmatpush1.msra.mxu0 %v725
          %3091 = vmatprep.subr.mxu0 %v730
          %3092 = vmatpush1.msra.mxu0 %v729
          %3093 = vmatprep.subr.mxu0 %v734
          %3094 = vmatpush1.msra.mxu0 %v733
          %3095 = vmatprep.subr.mxu0 0.0
          %3096 = vmatpush1.msra.mxu0 0.0
          %3097 = vmatprep.subr.mxu0 0.0
          %3098 = vmatpush1.msra.mxu0 0.0
          %3099 = vmatprep.subr.mxu0 0.0
          %3100 = vmatpush1.msra.mxu0 0.0
          %3101 = vmatprep.subr.mxu0 0.0
          %3102 = vmatpush1.msra.mxu0 0.0
          %3103 = vmatprep.subr.mxu0 0.0
          %3104 = vmatpush1.msra.mxu0 0.0
          %3105 = vmatprep.subr.mxu0 0.0
          %3106 = vmatpush1.msra.mxu0 0.0
          %3107 = vmatprep.subr.mxu0 0.0
          %3108 = vmatpush1.msra.mxu0 0.0
          %3109 = vmatprep.subr.mxu0 0.0
          %3110 = vmatpush1.msra.mxu0 0.0
          %3111 = vmatprep.subr.mxu0 0.0
          %3112 = vmatpush1.msra.mxu0 0.0
          %3113 = vmatprep.subr.mxu0 0.0
          %3114 = vmatpush1.msra.mxu0 0.0
          %3115 = vmatprep.subr.mxu0 0.0
          %3116 = vmatpush1.msra.mxu0 0.0
          %3117 = vmatprep.subr.mxu0 0.0
          %3118 = vmatpush1.msra.mxu0 0.0
          %3119 = vmatprep.subr.mxu0 0.0
          %3120 = vmatpush1.msra.mxu0 0.0
          %3121 = vmatprep.subr.mxu0 0.0
          %3122 = vmatpush1.msra.mxu0 0.0
          %3123 = vmatprep.subr.mxu0 0.0
          %3124 = vmatpush1.msra.mxu0 0.0
          %3125 = vmatprep.subr.mxu0 0.0
          %3126 = vmatpush1.msra.mxu0 0.0
          %3127 = vmatprep.mubr.f32.mxu0 0.0
          %3128 = vmatmul.mubr.f32.gmra.mrb[0].mxu0 %v2822
          %v3129 = vpop.f32.mrb[0].mxu0
          %v3130 = vadd.f32 0.0, %v3129
          %v3131 = vpop.f32.mrb[0].mxu0
          %v3132 = vadd.f32 0.0, %v3131
          %3133 = vdwg.mxu0
          %v3138 = vrot.slane %v3059, 4
          %v3139 = vrot.slane %v3061, 4
          %v3140 = vrot.slane %v3130, 4
          %v3141 = vrot.slane %v3132, 4
          %v3146 = vadd.f32 %v590, %v3138
          %v3147 = vadd.f32 %v592, %v3139
          %v3148 = vadd.f32 %v667, %v3140
          %v3149 = vadd.f32 %v669, %v3141
          %v3150 = vxor.u32 %v3146, 2147483648
          %v3151 = vmul.f32 %v3150, 1.442695
          %v3152 = vpow.pop %v3151
          %v3153 = vadd.f32 %v3152, 1.0
          %v3154 = vrcp.pop %v3153
          %v3155 = vmul.f32 1.0, %v3154
          %v3156 = vxor.u32 %v3147, 2147483648
          %v3157 = vmul.f32 %v3156, 1.442695
          %v3158 = vpow.pop %v3157
          %v3159 = vadd.f32 %v3158, 1.0
          %v3160 = vrcp.pop %v3159
          %v3161 = vmul.f32 1.0, %v3160
          %v3162 = vtanh.pop %v3148
          %v3163 = vxor.u32 %v3149, 2147483648
          %v3164 = vmul.f32 %v3163, 1.442695
          %v3165 = vpow.pop %v3164
          %v3166 = vadd.f32 %v3165, 1.0
          %v3167 = vrcp.pop %v3166
          %v3168 = vmul.f32 1.0, %v3167
          %v3170 = vrot.slane %v2816, 6
          %v3172 = vmul.f32 %v3161, %v3170
          %v3173 = vmul.f32 %v3155, %v3162
          %v3174 = vadd.f32 %v3172, %v3173
          %v3175 = vtanh.pop %v3174
          %v3176 = vmul.f32 %v3168, %v3175
          %v3178 = vrot.slane %v2991, 4
          %v3180 = vrot.slane %v3176, 4
          %v3181 = vrot.slane %v3178, 4
          %3184 = vmatprep.subr.mxu0 %v736
          %3185 = vmatpush1.msra.mxu0 %v735
          %3186 = vmatprep.subr.mxu0 %v740
          %3187 = vmatpush1.msra.mxu0 %v739
          %3188 = vmatprep.subr.mxu0 %v744
          %3189 = vmatpush1.msra.mxu0 %v743
          %3190 = vmatprep.subr.mxu0 %v748
          %3191 = vmatpush1.msra.mxu0 %v747
          %3192 = vmatprep.subr.mxu0 %v752
          %3193 = vmatpush1.msra.mxu0 %v751
          %3194 = vmatprep.subr.mxu0 %v756
          %3195 = vmatpush1.msra.mxu0 %v755
          %3196 = vmatprep.subr.mxu0 %v760
          %3197 = vmatpush1.msra.mxu0 %v759
          %3198 = vmatprep.subr.mxu0 %v764
          %3199 = vmatpush1.msra.mxu0 %v763
          %3200 = vmatprep.subr.mxu0 %v768
          %3201 = vmatpush1.msra.mxu0 %v767
          %3202 = vmatprep.subr.mxu0 %v772
          %3203 = vmatpush1.msra.mxu0 %v771
          %3204 = vmatprep.subr.mxu0 %v776
          %3205 = vmatpush1.msra.mxu0 %v775
          %3206 = vmatprep.subr.mxu0 %v780
          %3207 = vmatpush1.msra.mxu0 %v779
          %3208 = vmatprep.subr.mxu0 %v784
          %3209 = vmatpush1.msra.mxu0 %v783
          %3210 = vmatprep.subr.mxu0 %v788
          %3211 = vmatpush1.msra.mxu0 %v787
          %3212 = vmatprep.subr.mxu0 %v792
          %3213 = vmatpush1.msra.mxu0 %v791
          %3214 = vmatprep.subr.mxu0 %v796
          %3215 = vmatpush1.msra.mxu0 %v795
          %3216 = vmatprep.subr.mxu0 %v800
          %3217 = vmatpush1.msra.mxu0 %v799
          %3218 = vmatprep.subr.mxu0 %v804
          %3219 = vmatpush1.msra.mxu0 %v803
          %3220 = vmatprep.subr.mxu0 %v808
          %3221 = vmatpush1.msra.mxu0 %v807
          %3222 = vmatprep.subr.mxu0 %v812
          %3223 = vmatpush1.msra.mxu0 %v811
          %3224 = vmatprep.subr.mxu0 %v816
          %3225 = vmatpush1.msra.mxu0 %v815
          %3226 = vmatprep.subr.mxu0 %v820
          %3227 = vmatpush1.msra.mxu0 %v819
          %3228 = vmatprep.subr.mxu0 %v824
          %3229 = vmatpush1.msra.mxu0 %v823
          %3230 = vmatprep.subr.mxu0 %v828
          %3231 = vmatpush1.msra.mxu0 %v827
          %3232 = vmatprep.subr.mxu0 %v832
          %3233 = vmatpush1.msra.mxu0 %v831
          %3234 = vmatprep.subr.mxu0 %v836
          %3235 = vmatpush1.msra.mxu0 %v835
          %3236 = vmatprep.subr.mxu0 %v840
          %3237 = vmatpush1.msra.mxu0 %v839
          %3238 = vmatprep.subr.mxu0 %v844
          %3239 = vmatpush1.msra.mxu0 %v843
          %3240 = vmatprep.subr.mxu0 %v848
          %3241 = vmatpush1.msra.mxu0 %v847
          %3242 = vmatprep.subr.mxu0 %v852
          %3243 = vmatpush1.msra.mxu0 %v851
          %3244 = vmatprep.subr.mxu0 %v856
          %3245 = vmatpush1.msra.mxu0 %v855
          %3246 = vmatprep.subr.mxu0 %v860
          %3247 = vmatpush1.msra.mxu0 %v859
          %3248 = vmatprep.mubr.f32.mxu0 %v3181
          %3249 = vmatmul.mubr.f32.gmra.mrb[0].mxu0 %v3180
          %v3250 = vpop.f32.mrb[0].mxu0
          %v3251 = vadd.f32 %v1038, %v3250
          %v3252 = vpop.f32.mrb[0].mxu0
          %v3253 = vadd.f32 %v1042, %v3252
          %3254 = vdwg.mxu0
          %3255 = vmatprep.subr.mxu0 %v738
          %3256 = vmatpush1.msra.mxu0 %v737
          %3257 = vmatprep.subr.mxu0 %v742
          %3258 = vmatpush1.msra.mxu0 %v741
          %3259 = vmatprep.subr.mxu0 %v746
          %3260 = vmatpush1.msra.mxu0 %v745
          %3261 = vmatprep.subr.mxu0 %v750
          %3262 = vmatpush1.msra.mxu0 %v749
          %3263 = vmatprep.subr.mxu0 %v754
          %3264 = vmatpush1.msra.mxu0 %v753
          %3265 = vmatprep.subr.mxu0 %v758
          %3266 = vmatpush1.msra.mxu0 %v757
          %3267 = vmatprep.subr.mxu0 %v762
          %3268 = vmatpush1.msra.mxu0 %v761
          %3269 = vmatprep.subr.mxu0 %v766
          %3270 = vmatpush1.msra.mxu0 %v765
          %3271 = vmatprep.subr.mxu0 %v770
          %3272 = vmatpush1.msra.mxu0 %v769
          %3273 = vmatprep.subr.mxu0 %v774
          %3274 = vmatpush1.msra.mxu0 %v773
          %3275 = vmatprep.subr.mxu0 %v778
          %3276 = vmatpush1.msra.mxu0 %v777
          %3277 = vmatprep.subr.mxu0 %v782
          %3278 = vmatpush1.msra.mxu0 %v781
          %3279 = vmatprep.subr.mxu0 %v786
          %3280 = vmatpush1.msra.mxu0 %v785
          %3281 = vmatprep.subr.mxu0 %v790
          %3282 = vmatpush1.msra.mxu0 %v789
          %3283 = vmatprep.subr.mxu0 %v794
          %3284 = vmatpush1.msra.mxu0 %v793
          %3285 = vmatprep.subr.mxu0 %v798
          %3286 = vmatpush1.msra.mxu0 %v797
          %3287 = vmatprep.subr.mxu0 %v802
          %3288 = vmatpush1.msra.mxu0 %v801
          %3289 = vmatprep.subr.mxu0 %v806
          %3290 = vmatpush1.msra.mxu0 %v805
          %3291 = vmatprep.subr.mxu0 %v810
          %3292 = vmatpush1.msra.mxu0 %v809
          %3293 = vmatprep.subr.mxu0 %v814
          %3294 = vmatpush1.msra.mxu0 %v813
          %3295 = vmatprep.subr.mxu0 %v818
          %3296 = vmatpush1.msra.mxu0 %v817
          %3297 = vmatprep.subr.mxu0 %v822
          %3298 = vmatpush1.msra.mxu0 %v821
          %3299 = vmatprep.subr.mxu0 %v826
          %3300 = vmatpush1.msra.mxu0 %v825
          %3301 = vmatprep.subr.mxu0 %v830
          %3302 = vmatpush1.msra.mxu0 %v829
          %3303 = vmatprep.subr.mxu0 %v834
          %3304 = vmatpush1.msra.mxu0 %v833
          %3305 = vmatprep.subr.mxu0 %v838
          %3306 = vmatpush1.msra.mxu0 %v837
          %3307 = vmatprep.subr.mxu0 %v842
          %3308 = vmatpush1.msra.mxu0 %v841
          %3309 = vmatprep.subr.mxu0 %v846
          %3310 = vmatpush1.msra.mxu0 %v845
          %3311 = vmatprep.subr.mxu0 %v850
          %3312 = vmatpush1.msra.mxu0 %v849
          %3313 = vmatprep.subr.mxu0 %v854
          %3314 = vmatpush1.msra.mxu0 %v853
          %3315 = vmatprep.subr.mxu0 %v858
          %3316 = vmatpush1.msra.mxu0 %v857
          %3317 = vmatprep.subr.mxu0 %v862
          %3318 = vmatpush1.msra.mxu0 %v861
          %3319 = vmatprep.mubr.f32.mxu0 %v3181
          %3320 = vmatmul.mubr.f32.gmra.mrb[0].mxu0 %v3180
          %v3321 = vpop.f32.mrb[0].mxu0
          %v3322 = vadd.f32 %v1046, %v3321
          %v3323 = vpop.f32.mrb[0].mxu0
          %v3324 = vadd.f32 %v1050, %v3323
          %3325 = vdwg.mxu0
          %v3326 = vxor.u32 %v3251, 2147483648
          %v3327 = vmul.f32 %v3326, 1.442695
          %v3328 = vpow.pop %v3327
          %v3329 = vadd.f32 %v3328, 1.0
          %v3330 = vrcp.pop %v3329
          %v3331 = vmul.f32 1.0, %v3330
          %v3332 = vxor.u32 %v3253, 2147483648
          %v3333 = vmul.f32 %v3332, 1.442695
          %v3334 = vpow.pop %v3333
          %v3335 = vadd.f32 %v3334, 1.0
          %v3336 = vrcp.pop %v3335
          %v3337 = vmul.f32 1.0, %v3336
          %v3338 = vtanh.pop %v3322
          %v3339 = vxor.u32 %v3324, 2147483648
          %v3340 = vmul.f32 %v3339, 1.442695
          %v3341 = vpow.pop %v3340
          %v3342 = vadd.f32 %v3341, 1.0
          %v3343 = vrcp.pop %v3342
          %v3344 = vmul.f32 1.0, %v3343
          %v3345 = vmul.f32 %v3337, %v2989
          %v3346 = vmul.f32 %v3331, %v3338
          %v3347 = vadd.f32 %v3345, %v3346
          %v3348 = vtanh.pop %v3347
          %v3349 = vmul.f32 %v3344, %v3348
          %3350 = vmatprep.subr.mxu0 %v672
          %3351 = vmatpush1.msra.mxu0 %v671
          %3352 = vmatprep.subr.mxu0 %v676
          %3353 = vmatpush1.msra.mxu0 %v675
          %3354 = vmatprep.subr.mxu0 %v680
          %3355 = vmatpush1.msra.mxu0 %v679
          %3356 = vmatprep.subr.mxu0 %v684
          %3357 = vmatpush1.msra.mxu0 %v683
          %3358 = vmatprep.subr.mxu0 %v688
          %3359 = vmatpush1.msra.mxu0 %v687
          %3360 = vmatprep.subr.mxu0 %v692
          %3361 = vmatpush1.msra.mxu0 %v691
          %3362 = vmatprep.subr.mxu0 %v696
          %3363 = vmatpush1.msra.mxu0 %v695
          %3364 = vmatprep.subr.mxu0 %v700
          %3365 = vmatpush1.msra.mxu0 %v699
          %3366 = vmatprep.subr.mxu0 %v704
          %3367 = vmatpush1.msra.mxu0 %v703
          %3368 = vmatprep.subr.mxu0 %v708
          %3369 = vmatpush1.msra.mxu0 %v707
          %3370 = vmatprep.subr.mxu0 %v712
          %3371 = vmatpush1.msra.mxu0 %v711
          %3372 = vmatprep.subr.mxu0 %v716
          %3373 = vmatpush1.msra.mxu0 %v715
          %3374 = vmatprep.subr.mxu0 %v720
          %3375 = vmatpush1.msra.mxu0 %v719
          %3376 = vmatprep.subr.mxu0 %v724
          %3377 = vmatpush1.msra.mxu0 %v723
          %3378 = vmatprep.subr.mxu0 %v728
          %3379 = vmatpush1.msra.mxu0 %v727
          %3380 = vmatprep.subr.mxu0 %v732
          %3381 = vmatpush1.msra.mxu0 %v731
          %3382 = vmatprep.subr.mxu0 0.0
          %3383 = vmatpush1.msra.mxu0 0.0
          %3384 = vmatprep.subr.mxu0 0.0
          %3385 = vmatpush1.msra.mxu0 0.0
          %3386 = vmatprep.subr.mxu0 0.0
          %3387 = vmatpush1.msra.mxu0 0.0
          %3388 = vmatprep.subr.mxu0 0.0
          %3389 = vmatpush1.msra.mxu0 0.0
          %3390 = vmatprep.subr.mxu0 0.0
          %3391 = vmatpush1.msra.mxu0 0.0
          %3392 = vmatprep.subr.mxu0 0.0
          %3393 = vmatpush1.msra.mxu0 0.0
          %3394 = vmatprep.subr.mxu0 0.0
          %3395 = vmatpush1.msra.mxu0 0.0
          %3396 = vmatprep.subr.mxu0 0.0
          %3397 = vmatpush1.msra.mxu0 0.0
          %3398 = vmatprep.subr.mxu0 0.0
          %3399 = vmatpush1.msra.mxu0 0.0
          %3400 = vmatprep.subr.mxu0 0.0
          %3401 = vmatpush1.msra.mxu0 0.0
          %3402 = vmatprep.subr.mxu0 0.0
          %3403 = vmatpush1.msra.mxu0 0.0
          %3404 = vmatprep.subr.mxu0 0.0
          %3405 = vmatpush1.msra.mxu0 0.0
          %3406 = vmatprep.subr.mxu0 0.0
          %3407 = vmatpush1.msra.mxu0 0.0
          %3408 = vmatprep.subr.mxu0 0.0
          %3409 = vmatpush1.msra.mxu0 0.0
          %3410 = vmatprep.subr.mxu0 0.0
          %3411 = vmatpush1.msra.mxu0 0.0
          %3412 = vmatprep.subr.mxu0 0.0
          %3413 = vmatpush1.msra.mxu0 0.0
          %3414 = vmatprep.mubr.f32.mxu0 0.0
          %3415 = vmatmul.mubr.f32.gmra.mrb[0].mxu0 %v3180
          %v3416 = vpop.f32.mrb[0].mxu0
          %v3417 = vadd.f32 0.0, %v3416
          %v3418 = vpop.f32.mrb[0].mxu0
          %v3419 = vadd.f32 0.0, %v3418
          %3420 = vdwg.mxu0
          %3421 = vmatprep.subr.mxu0 %v674
          %3422 = vmatpush1.msra.mxu0 %v673
          %3423 = vmatprep.subr.mxu0 %v678
          %3424 = vmatpush1.msra.mxu0 %v677
          %3425 = vmatprep.subr.mxu0 %v682
          %3426 = vmatpush1.msra.mxu0 %v681
          %3427 = vmatprep.subr.mxu0 %v686
          %3428 = vmatpush1.msra.mxu0 %v685
          %3429 = vmatprep.subr.mxu0 %v690
          %3430 = vmatpush1.msra.mxu0 %v689
          %3431 = vmatprep.subr.mxu0 %v694
          %3432 = vmatpush1.msra.mxu0 %v693
          %3433 = vmatprep.subr.mxu0 %v698
          %3434 = vmatpush1.msra.mxu0 %v697
          %3435 = vmatprep.subr.mxu0 %v702
          %3436 = vmatpush1.msra.mxu0 %v701
          %3437 = vmatprep.subr.mxu0 %v706
          %3438 = vmatpush1.msra.mxu0 %v705
          %3439 = vmatprep.subr.mxu0 %v710
          %3440 = vmatpush1.msra.mxu0 %v709
          %3441 = vmatprep.subr.mxu0 %v714
          %3442 = vmatpush1.msra.mxu0 %v713
          %3443 = vmatprep.subr.mxu0 %v718
          %3444 = vmatpush1.msra.mxu0 %v717
          %3445 = vmatprep.subr.mxu0 %v722
          %3446 = vmatpush1.msra.mxu0 %v721
          %3447 = vmatprep.subr.mxu0 %v726
          %3448 = vmatpush1.msra.mxu0 %v725
          %3449 = vmatprep.subr.mxu0 %v730
          %3450 = vmatpush1.msra.mxu0 %v729
          %3451 = vmatprep.subr.mxu0 %v734
          %3452 = vmatpush1.msra.mxu0 %v733
          %3453 = vmatprep.subr.mxu0 0.0
          %3454 = vmatpush1.msra.mxu0 0.0
          %3455 = vmatprep.subr.mxu0 0.0
          %3456 = vmatpush1.msra.mxu0 0.0
          %3457 = vmatprep.subr.mxu0 0.0
          %3458 = vmatpush1.msra.mxu0 0.0
          %3459 = vmatprep.subr.mxu0 0.0
          %3460 = vmatpush1.msra.mxu0 0.0
          %3461 = vmatprep.subr.mxu0 0.0
          %3462 = vmatpush1.msra.mxu0 0.0
          %3463 = vmatprep.subr.mxu0 0.0
          %3464 = vmatpush1.msra.mxu0 0.0
          %3465 = vmatprep.subr.mxu0 0.0
          %3466 = vmatpush1.msra.mxu0 0.0
          %3467 = vmatprep.subr.mxu0 0.0
          %3468 = vmatpush1.msra.mxu0 0.0
          %3469 = vmatprep.subr.mxu0 0.0
          %3470 = vmatpush1.msra.mxu0 0.0
          %3471 = vmatprep.subr.mxu0 0.0
          %3472 = vmatpush1.msra.mxu0 0.0
          %3473 = vmatprep.subr.mxu0 0.0
          %3474 = vmatpush1.msra.mxu0 0.0
          %3475 = vmatprep.subr.mxu0 0.0
          %3476 = vmatpush1.msra.mxu0 0.0
          %3477 = vmatprep.subr.mxu0 0.0
          %3478 = vmatpush1.msra.mxu0 0.0
          %3479 = vmatprep.subr.mxu0 0.0
          %3480 = vmatpush1.msra.mxu0 0.0
          %3481 = vmatprep.subr.mxu0 0.0
          %3482 = vmatpush1.msra.mxu0 0.0
          %3483 = vmatprep.subr.mxu0 0.0
          %3484 = vmatpush1.msra.mxu0 0.0
          %3485 = vmatprep.mubr.f32.mxu0 0.0
          %3486 = vmatmul.mubr.f32.gmra.mrb[0].mxu0 %v3180
          %v3487 = vpop.f32.mrb[0].mxu0
          %v3488 = vadd.f32 0.0, %v3487
          %v3489 = vpop.f32.mrb[0].mxu0
          %v3490 = vadd.f32 0.0, %v3489
          %3491 = vdwg.mxu0
          %v3496 = vrot.slane %v3417, 2
          %v3497 = vrot.slane %v3419, 2
          %v3498 = vrot.slane %v3488, 2
          %v3499 = vrot.slane %v3490, 2
          %v3504 = vadd.f32 %v590, %v3496
          %v3505 = vadd.f32 %v592, %v3497
          %v3506 = vadd.f32 %v667, %v3498
          %v3507 = vadd.f32 %v669, %v3499
          %v3508 = vxor.u32 %v3504, 2147483648
          %v3509 = vmul.f32 %v3508, 1.442695
          %v3510 = vpow.pop %v3509
          %v3511 = vadd.f32 %v3510, 1.0
          %v3512 = vrcp.pop %v3511
          %v3513 = vmul.f32 1.0, %v3512
          %v3514 = vxor.u32 %v3505, 2147483648
          %v3515 = vmul.f32 %v3514, 1.442695
          %v3516 = vpow.pop %v3515
          %v3517 = vadd.f32 %v3516, 1.0
          %v3518 = vrcp.pop %v3517
          %v3519 = vmul.f32 1.0, %v3518
          %v3520 = vtanh.pop %v3506
          %v3521 = vxor.u32 %v3507, 2147483648
          %v3522 = vmul.f32 %v3521, 1.442695
          %v3523 = vpow.pop %v3522
          %v3524 = vadd.f32 %v3523, 1.0
          %v3525 = vrcp.pop %v3524
          %v3526 = vmul.f32 1.0, %v3525
          %v3528 = vrot.slane %v3174, 6
          %v3530 = vmul.f32 %v3519, %v3528
          %v3531 = vmul.f32 %v3513, %v3520
          %v3532 = vadd.f32 %v3530, %v3531
          %v3533 = vtanh.pop %v3532
          %v3534 = vmul.f32 %v3526, %v3533
          %v3536 = vrot.slane %v3349, 2
          %v3538 = vrot.slane %v3534, 6
          %v3539 = vrot.slane %v3536, 6
          %3542 = vmatprep.subr.mxu0 %v736
          %3543 = vmatpush1.msra.mxu0 %v735
          %3544 = vmatprep.subr.mxu0 %v740
          %3545 = vmatpush1.msra.mxu0 %v739
          %3546 = vmatprep.subr.mxu0 %v744
          %3547 = vmatpush1.msra.mxu0 %v743
          %3548 = vmatprep.subr.mxu0 %v748
          %3549 = vmatpush1.msra.mxu0 %v747
          %3550 = vmatprep.subr.mxu0 %v752
          %3551 = vmatpush1.msra.mxu0 %v751
          %3552 = vmatprep.subr.mxu0 %v756
          %3553 = vmatpush1.msra.mxu0 %v755
          %3554 = vmatprep.subr.mxu0 %v760
          %3555 = vmatpush1.msra.mxu0 %v759
          %3556 = vmatprep.subr.mxu0 %v764
          %3557 = vmatpush1.msra.mxu0 %v763
          %3558 = vmatprep.subr.mxu0 %v768
          %3559 = vmatpush1.msra.mxu0 %v767
          %3560 = vmatprep.subr.mxu0 %v772
          %3561 = vmatpush1.msra.mxu0 %v771
          %3562 = vmatprep.subr.mxu0 %v776
          %3563 = vmatpush1.msra.mxu0 %v775
          %3564 = vmatprep.subr.mxu0 %v780
          %3565 = vmatpush1.msra.mxu0 %v779
          %3566 = vmatprep.subr.mxu0 %v784
          %3567 = vmatpush1.msra.mxu0 %v783
          %3568 = vmatprep.subr.mxu0 %v788
          %3569 = vmatpush1.msra.mxu0 %v787
          %3570 = vmatprep.subr.mxu0 %v792
          %3571 = vmatpush1.msra.mxu0 %v791
          %3572 = vmatprep.subr.mxu0 %v796
          %3573 = vmatpush1.msra.mxu0 %v795
          %3574 = vmatprep.subr.mxu0 %v800
          %3575 = vmatpush1.msra.mxu0 %v799
          %3576 = vmatprep.subr.mxu0 %v804
          %3577 = vmatpush1.msra.mxu0 %v803
          %3578 = vmatprep.subr.mxu0 %v808
          %3579 = vmatpush1.msra.mxu0 %v807
          %3580 = vmatprep.subr.mxu0 %v812
          %3581 = vmatpush1.msra.mxu0 %v811
          %3582 = vmatprep.subr.mxu0 %v816
          %3583 = vmatpush1.msra.mxu0 %v815
          %3584 = vmatprep.subr.mxu0 %v820
          %3585 = vmatpush1.msra.mxu0 %v819
          %3586 = vmatprep.subr.mxu0 %v824
          %3587 = vmatpush1.msra.mxu0 %v823
          %3588 = vmatprep.subr.mxu0 %v828
          %3589 = vmatpush1.msra.mxu0 %v827
          %3590 = vmatprep.subr.mxu0 %v832
          %3591 = vmatpush1.msra.mxu0 %v831
          %3592 = vmatprep.subr.mxu0 %v836
          %3593 = vmatpush1.msra.mxu0 %v835
          %3594 = vmatprep.subr.mxu0 %v840
          %3595 = vmatpush1.msra.mxu0 %v839
          %3596 = vmatprep.subr.mxu0 %v844
          %3597 = vmatpush1.msra.mxu0 %v843
          %3598 = vmatprep.subr.mxu0 %v848
          %3599 = vmatpush1.msra.mxu0 %v847
          %3600 = vmatprep.subr.mxu0 %v852
          %3601 = vmatpush1.msra.mxu0 %v851
          %3602 = vmatprep.subr.mxu0 %v856
          %3603 = vmatpush1.msra.mxu0 %v855
          %3604 = vmatprep.subr.mxu0 %v860
          %3605 = vmatpush1.msra.mxu0 %v859
          %3606 = vmatprep.mubr.f32.mxu0 %v3539
          %3607 = vmatmul.mubr.f32.gmra.mrb[0].mxu0 %v3538
          %v3608 = vpop.f32.mrb[0].mxu0
          %v3609 = vadd.f32 %v1038, %v3608
          %v3610 = vpop.f32.mrb[0].mxu0
          %v3611 = vadd.f32 %v1042, %v3610
          %3612 = vdwg.mxu0
          %3613 = vmatprep.subr.mxu0 %v738
          %3614 = vmatpush1.msra.mxu0 %v737
          %3615 = vmatprep.subr.mxu0 %v742
          %3616 = vmatpush1.msra.mxu0 %v741
          %3617 = vmatprep.subr.mxu0 %v746
          %3618 = vmatpush1.msra.mxu0 %v745
          %3619 = vmatprep.subr.mxu0 %v750
          %3620 = vmatpush1.msra.mxu0 %v749
          %3621 = vmatprep.subr.mxu0 %v754
          %3622 = vmatpush1.msra.mxu0 %v753
          %3623 = vmatprep.subr.mxu0 %v758
          %3624 = vmatpush1.msra.mxu0 %v757
          %3625 = vmatprep.subr.mxu0 %v762
          %3626 = vmatpush1.msra.mxu0 %v761
          %3627 = vmatprep.subr.mxu0 %v766
          %3628 = vmatpush1.msra.mxu0 %v765
          %3629 = vmatprep.subr.mxu0 %v770
          %3630 = vmatpush1.msra.mxu0 %v769
          %3631 = vmatprep.subr.mxu0 %v774
          %3632 = vmatpush1.msra.mxu0 %v773
          %3633 = vmatprep.subr.mxu0 %v778
          %3634 = vmatpush1.msra.mxu0 %v777
          %3635 = vmatprep.subr.mxu0 %v782
          %3636 = vmatpush1.msra.mxu0 %v781
          %3637 = vmatprep.subr.mxu0 %v786
          %3638 = vmatpush1.msra.mxu0 %v785
          %3639 = vmatprep.subr.mxu0 %v790
          %3640 = vmatpush1.msra.mxu0 %v789
          %3641 = vmatprep.subr.mxu0 %v794
          %3642 = vmatpush1.msra.mxu0 %v793
          %3643 = vmatprep.subr.mxu0 %v798
          %3644 = vmatpush1.msra.mxu0 %v797
          %3645 = vmatprep.subr.mxu0 %v802
          %3646 = vmatpush1.msra.mxu0 %v801
          %3647 = vmatprep.subr.mxu0 %v806
          %3648 = vmatpush1.msra.mxu0 %v805
          %3649 = vmatprep.subr.mxu0 %v810
          %3650 = vmatpush1.msra.mxu0 %v809
          %3651 = vmatprep.subr.mxu0 %v814
          %3652 = vmatpush1.msra.mxu0 %v813
          %3653 = vmatprep.subr.mxu0 %v818
          %3654 = vmatpush1.msra.mxu0 %v817
          %3655 = vmatprep.subr.mxu0 %v822
          %3656 = vmatpush1.msra.mxu0 %v821
          %3657 = vmatprep.subr.mxu0 %v826
          %3658 = vmatpush1.msra.mxu0 %v825
          %3659 = vmatprep.subr.mxu0 %v830
          %3660 = vmatpush1.msra.mxu0 %v829
          %3661 = vmatprep.subr.mxu0 %v834
          %3662 = vmatpush1.msra.mxu0 %v833
          %3663 = vmatprep.subr.mxu0 %v838
          %3664 = vmatpush1.msra.mxu0 %v837
          %3665 = vmatprep.subr.mxu0 %v842
          %3666 = vmatpush1.msra.mxu0 %v841
          %3667 = vmatprep.subr.mxu0 %v846
          %3668 = vmatpush1.msra.mxu0 %v845
          %3669 = vmatprep.subr.mxu0 %v850
          %3670 = vmatpush1.msra.mxu0 %v849
          %3671 = vmatprep.subr.mxu0 %v854
          %3672 = vmatpush1.msra.mxu0 %v853
          %3673 = vmatprep.subr.mxu0 %v858
          %3674 = vmatpush1.msra.mxu0 %v857
          %3675 = vmatprep.subr.mxu0 %v862
          %3676 = vmatpush1.msra.mxu0 %v861
          %3677 = vmatprep.mubr.f32.mxu0 %v3539
          %3678 = vmatmul.mubr.f32.gmra.mrb[0].mxu0 %v3538
          %v3679 = vpop.f32.mrb[0].mxu0
          %v3680 = vadd.f32 %v1046, %v3679
          %v3681 = vpop.f32.mrb[0].mxu0
          %v3682 = vadd.f32 %v1050, %v3681
          %3683 = vdwg.mxu0
          %v3684 = vxor.u32 %v3609, 2147483648
          %v3685 = vmul.f32 %v3684, 1.442695
          %v3686 = vpow.pop %v3685
          %v3687 = vadd.f32 %v3686, 1.0
          %v3688 = vrcp.pop %v3687
          %v3689 = vmul.f32 1.0, %v3688
          %v3690 = vxor.u32 %v3611, 2147483648
          %v3691 = vmul.f32 %v3690, 1.442695
          %v3692 = vpow.pop %v3691
          %v3693 = vadd.f32 %v3692, 1.0
          %v3694 = vrcp.pop %v3693
          %v3695 = vmul.f32 1.0, %v3694
          %v3696 = vtanh.pop %v3680
          %v3697 = vxor.u32 %v3682, 2147483648
          %v3698 = vmul.f32 %v3697, 1.442695
          %v3699 = vpow.pop %v3698
          %v3700 = vadd.f32 %v3699, 1.0
          %v3701 = vrcp.pop %v3700
          %v3702 = vmul.f32 1.0, %v3701
          %v3703 = vmul.f32 %v3695, %v3347
          %v3704 = vmul.f32 %v3689, %v3696
          %v3705 = vadd.f32 %v3703, %v3704
          %v3706 = vtanh.pop %v3705
          %v3707 = vmul.f32 %v3702, %v3706
          %v3708 = vld [vmem:[#allocation10] sm:$0x1]
          %v3709 = vmul.f32 %v3707, 0.5
          %v3711 = vlaneseq
          %v3712 = vshrl.u32 %v3711, 7
          %v3713 = vsub.s32 0, %v3712
          %v3714 = vrot.slane %v3708, %v3713
          %v3716 = vadd.f32 %v3714, %v3709
          %3717 = vst [vmem:[#allocation2] sm:$0x3] %v3716
        $region84: #{vgg_lstm_ws_forward.1} parent=55 // pred_fallthru
          _
        %v3718 = vld [vmem:[#allocation2] sm:$0x3]
        %v3719 = vld [vmem:[%s437] sm:$0xf]
        %v3720 = vld [vmem:[%s390] sm:$0xf]
        %v3721 = vld [vmem:[%s390 + $0x4] sm:$0xf]
        %v3722 = vld [vmem:[%s390 + $0x8] sm:$0xf]
        %v3723 = vld [vmem:[%s390 + $0xc] sm:$0xf]
        %v3724 = vld [vmem:[%s390 + $0x10] sm:$0xf]
        %v3725 = vld [vmem:[%s390 + $0x14] sm:$0xf]
        %v3726 = vld [vmem:[%s390 + $0x18] sm:$0xf]
        %v3727 = vld [vmem:[%s390 + $0x1c] sm:$0xf]
        %v3728 = vld [vmem:[%s390 + $0x20] sm:$0xf]
        %v3729 = vld [vmem:[%s390 + $0x24] sm:$0xf]
        %v3730 = vld [vmem:[%s390 + $0x28] sm:$0xf]
        %v3731 = vld [vmem:[%s390 + $0x2c] sm:$0xf]
        %v3732 = vld [vmem:[%s390 + $0x30] sm:$0xf]
        %v3733 = vld [vmem:[%s390 + $0x34] sm:$0xf]
        %v3734 = vld [vmem:[%s390 + $0x38] sm:$0xf]
        %v3735 = vld [vmem:[%s390 + $0x3c] sm:$0xf]
        %v3736 = vld [vmem:[%s390 + $0x40] sm:$0xf]
        %v3737 = vld [vmem:[%s390 + $0x44] sm:$0xf]
        %v3738 = vld [vmem:[%s390 + $0x48] sm:$0xf]
        %v3739 = vld [vmem:[%s390 + $0x4c] sm:$0xf]
        %v3740 = vld [vmem:[%s390 + $0x50] sm:$0xf]
        %v3741 = vld [vmem:[%s390 + $0x54] sm:$0xf]
        %v3742 = vld [vmem:[%s390 + $0x58] sm:$0xf]
        %v3743 = vld [vmem:[%s390 + $0x5c] sm:$0xf]
        %v3744 = vld [vmem:[%s390 + $0x60] sm:$0xf]
        %v3745 = vld [vmem:[%s390 + $0x64] sm:$0xf]
        %v3746 = vld [vmem:[%s390 + $0x68] sm:$0xf]
        %v3747 = vld [vmem:[%s390 + $0x6c] sm:$0xf]
        %v3748 = vld [vmem:[%s390 + $0x70] sm:$0xf]
        %v3749 = vld [vmem:[%s390 + $0x74] sm:$0xf]
        %v3750 = vld [vmem:[%s390 + $0x78] sm:$0xf]
        %v3751 = vld [vmem:[%s390 + $0x7c] sm:$0xf]
        %v3752 = vld [vmem:[%s390 + $0x80] sm:$0xf]
        %v3753 = vld [vmem:[%s390 + $0x84] sm:$0xf]
        %v3754 = vld [vmem:[%s390 + $0x88] sm:$0xf]
        %v3755 = vld [vmem:[%s390 + $0x8c] sm:$0xf]
        %v3756 = vld [vmem:[%s390 + $0x90] sm:$0xf]
        %v3757 = vld [vmem:[%s390 + $0x94] sm:$0xf]
        %v3758 = vld [vmem:[%s390 + $0x98] sm:$0xf]
        %v3759 = vld [vmem:[%s390 + $0x9c] sm:$0xf]
        %v3760 = vld [vmem:[%s390 + $0xa0] sm:$0xf]
        %v3761 = vld [vmem:[%s390 + $0xa4] sm:$0xf]
        %v3762 = vld [vmem:[%s390 + $0xa8] sm:$0xf]
        %v3763 = vld [vmem:[%s390 + $0xac] sm:$0xf]
        %v3764 = vld [vmem:[%s390 + $0xb0] sm:$0xf]
        %v3765 = vld [vmem:[%s390 + $0xb4] sm:$0xf]
        %v3766 = vld [vmem:[%s390 + $0xb8] sm:$0xf]
        %v3767 = vld [vmem:[%s390 + $0xbc] sm:$0xf]
        %v3768 = vld [vmem:[%s390 + $0xc0] sm:$0xf]
        %v3769 = vld [vmem:[%s390 + $0xc4] sm:$0xf]
        %v3770 = vld [vmem:[%s390 + $0xc8] sm:$0xf]
        %v3771 = vld [vmem:[%s390 + $0xcc] sm:$0xf]
        %v3772 = vld [vmem:[%s390 + $0xd0] sm:$0xf]
        %v3773 = vld [vmem:[%s390 + $0xd4] sm:$0xf]
        %v3774 = vld [vmem:[%s390 + $0xd8] sm:$0xf]
        %v3775 = vld [vmem:[%s390 + $0xdc] sm:$0xf]
        %v3776 = vld [vmem:[%s390 + $0xe0] sm:$0xf]
        %v3777 = vld [vmem:[%s390 + $0xe4] sm:$0xf]
        %v3778 = vld [vmem:[%s390 + $0xe8] sm:$0xf]
        %v3779 = vld [vmem:[%s390 + $0xec] sm:$0xf]
        %v3780 = vld [vmem:[%s390 + $0xf0] sm:$0xf]
        %v3781 = vld [vmem:[%s390 + $0xf4] sm:$0xf]
        %v3782 = vld [vmem:[%s390 + $0xf8] sm:$0xf]
        %v3783 = vld [vmem:[%s390 + $0xfc] sm:$0xf]
        %v3786 = vunpack.c.l.s4 1966171168
        %v3787 = vunpack.c.0.s8 %v3786
        %v3788 = vlaneseq
        %v3789 = vshrl.u32 %v3788, 7
        %v3790 = vsub.s32 %v3787, %v3789
        %v3791 = vrot.slane %v3719, %v3790
        %v3792 = vcombine.high %v3791, %v3791
        %v3794 = vunpack.c.l.s4 1966171168
        %v3795 = vunpack.c.0.s8 %v3794
        %v3796 = vlaneseq
        %v3797 = vshrl.u32 %v3796, 7
        %v3798 = vsub.s32 %v3795, %v3797
        %v3799 = vrot.slane %v3791, %v3798
        %v3801 = vunpack.c.l.s4 1966171168
        %v3802 = vunpack.c.0.s8 %v3801
        %v3803 = vlaneseq
        %v3804 = vshrl.u32 %v3803, 7
        %v3805 = vsub.s32 %v3802, %v3804
        %v3806 = vrot.slane %v3792, %v3805
        %v3807 = vcombine.high %v3799, %v3799
        %v3808 = vcombine.high %v3806, %v3806
        %v3877 = vunpack.c.l.b16 %v3720
        %v3878 = vunpack.c.l.b16 %v3721
        %v3879 = vunpack.c.l.b16 %v3722
        %v3880 = vunpack.c.l.b16 %v3723
        %v3881 = vunpack.c.l.b16 %v3724
        %v3882 = vunpack.c.l.b16 %v3725
        %v3883 = vunpack.c.l.b16 %v3726
        %v3884 = vunpack.c.l.b16 %v3727
        %v3885 = vunpack.c.l.b16 %v3728
        %v3886 = vunpack.c.l.b16 %v3729
        %v3887 = vunpack.c.l.b16 %v3730
        %v3888 = vunpack.c.l.b16 %v3731
        %v3889 = vunpack.c.l.b16 %v3732
        %v3890 = vunpack.c.l.b16 %v3733
        %v3891 = vunpack.c.l.b16 %v3734
        %v3892 = vunpack.c.l.b16 %v3735
        %v3893 = vunpack.c.l.b16 %v3736
        %v3894 = vunpack.c.l.b16 %v3737
        %v3895 = vunpack.c.l.b16 %v3738
        %v3896 = vunpack.c.l.b16 %v3739
        %v3897 = vunpack.c.l.b16 %v3740
        %v3898 = vunpack.c.l.b16 %v3741
        %v3899 = vunpack.c.l.b16 %v3742
        %v3900 = vunpack.c.l.b16 %v3743
        %v3901 = vunpack.c.l.b16 %v3744
        %v3902 = vunpack.c.l.b16 %v3745
        %v3903 = vunpack.c.l.b16 %v3746
        %v3904 = vunpack.c.l.b16 %v3747
        %v3905 = vunpack.c.l.b16 %v3748
        %v3906 = vunpack.c.l.b16 %v3749
        %v3907 = vunpack.c.l.b16 %v3750
        %v3908 = vunpack.c.l.b16 %v3751
        %v3909 = vunpack.c.l.b16 %v3752
        %v3910 = vunpack.c.l.b16 %v3753
        %v3911 = vunpack.c.l.b16 %v3754
        %v3912 = vunpack.c.l.b16 %v3755
        %v3913 = vunpack.c.l.b16 %v3756
        %v3914 = vunpack.c.l.b16 %v3757
        %v3915 = vunpack.c.l.b16 %v3758
        %v3916 = vunpack.c.l.b16 %v3759
        %v3917 = vunpack.c.l.b16 %v3760
        %v3918 = vunpack.c.l.b16 %v3761
        %v3919 = vunpack.c.l.b16 %v3762
        %v3920 = vunpack.c.l.b16 %v3763
        %v3921 = vunpack.c.l.b16 %v3764
        %v3922 = vunpack.c.l.b16 %v3765
        %v3923 = vunpack.c.l.b16 %v3766
        %v3924 = vunpack.c.l.b16 %v3767
        %v3925 = vunpack.c.l.b16 %v3768
        %v3926 = vunpack.c.l.b16 %v3769
        %v3927 = vunpack.c.l.b16 %v3770
        %v3928 = vunpack.c.l.b16 %v3771
        %v3929 = vunpack.c.l.b16 %v3772
        %v3930 = vunpack.c.l.b16 %v3773
        %v3931 = vunpack.c.l.b16 %v3774
        %v3932 = vunpack.c.l.b16 %v3775
        %v3933 = vunpack.c.l.b16 %v3776
        %v3934 = vunpack.c.l.b16 %v3777
        %v3935 = vunpack.c.l.b16 %v3778
        %v3936 = vunpack.c.l.b16 %v3779
        %v3937 = vunpack.c.l.b16 %v3780
        %v3938 = vunpack.c.l.b16 %v3781
        %v3939 = vunpack.c.l.b16 %v3782
        %v3940 = vunpack.c.l.b16 %v3783
        %v3941 = vpack.c.b16 %v3878, %v3877
        %v3942 = vpack.c.b16 %v3880, %v3879
        %v3943 = vpack.c.b16 %v3882, %v3881
        %v3944 = vpack.c.b16 %v3884, %v3883
        %v3945 = vpack.c.b16 %v3886, %v3885
        %v3946 = vpack.c.b16 %v3888, %v3887
        %v3947 = vpack.c.b16 %v3890, %v3889
        %v3948 = vpack.c.b16 %v3892, %v3891
        %v3949 = vpack.c.b16 %v3894, %v3893
        %v3950 = vpack.c.b16 %v3896, %v3895
        %v3951 = vpack.c.b16 %v3898, %v3897
        %v3952 = vpack.c.b16 %v3900, %v3899
        %v3953 = vpack.c.b16 %v3902, %v3901
        %v3954 = vpack.c.b16 %v3904, %v3903
        %v3955 = vpack.c.b16 %v3906, %v3905
        %v3956 = vpack.c.b16 %v3908, %v3907
        %v3957 = vpack.c.b16 %v3910, %v3909
        %v3958 = vpack.c.b16 %v3912, %v3911
        %v3959 = vpack.c.b16 %v3914, %v3913
        %v3960 = vpack.c.b16 %v3916, %v3915
        %v3961 = vpack.c.b16 %v3918, %v3917
        %v3962 = vpack.c.b16 %v3920, %v3919
        %v3963 = vpack.c.b16 %v3922, %v3921
        %v3964 = vpack.c.b16 %v3924, %v3923
        %v3965 = vpack.c.b16 %v3926, %v3925
        %v3966 = vpack.c.b16 %v3928, %v3927
        %v3967 = vpack.c.b16 %v3930, %v3929
        %v3968 = vpack.c.b16 %v3932, %v3931
        %v3969 = vpack.c.b16 %v3934, %v3933
        %v3970 = vpack.c.b16 %v3936, %v3935
        %v3971 = vpack.c.b16 %v3938, %v3937
        %v3972 = vpack.c.b16 %v3940, %v3939
        %4005 = vmatprep.subr.bf16.mxu0 0
        %4006 = vmatpush1.bf16.msra.mxu0 %v3941
        %4007 = vmatprep.subr.bf16.mxu0 0
        %4008 = vmatpush1.bf16.msra.mxu0 %v3942
        %4009 = vmatprep.subr.bf16.mxu0 0
        %4010 = vmatpush1.bf16.msra.mxu0 %v3943
        %4011 = vmatprep.subr.bf16.mxu0 0
        %4012 = vmatpush1.bf16.msra.mxu0 %v3944
        %4013 = vmatprep.subr.bf16.mxu0 0
        %4014 = vmatpush1.bf16.msra.mxu0 %v3945
        %4015 = vmatprep.subr.bf16.mxu0 0
        %4016 = vmatpush1.bf16.msra.mxu0 %v3946
        %4017 = vmatprep.subr.bf16.mxu0 0
        %4018 = vmatpush1.bf16.msra.mxu0 %v3947
        %4019 = vmatprep.subr.bf16.mxu0 0
        %4020 = vmatpush1.bf16.msra.mxu0 %v3948
        %4021 = vmatprep.subr.bf16.mxu0 0
        %4022 = vmatpush1.bf16.msra.mxu0 %v3949
        %4023 = vmatprep.subr.bf16.mxu0 0
        %4024 = vmatpush1.bf16.msra.mxu0 %v3950
        %4025 = vmatprep.subr.bf16.mxu0 0
        %4026 = vmatpush1.bf16.msra.mxu0 %v3951
        %4027 = vmatprep.subr.bf16.mxu0 0
        %4028 = vmatpush1.bf16.msra.mxu0 %v3952
        %4029 = vmatprep.subr.bf16.mxu0 0
        %4030 = vmatpush1.bf16.msra.mxu0 %v3953
        %4031 = vmatprep.subr.bf16.mxu0 0
        %4032 = vmatpush1.bf16.msra.mxu0 %v3954
        %4033 = vmatprep.subr.bf16.mxu0 0
        %4034 = vmatpush1.bf16.msra.mxu0 %v3955
        %4035 = vmatprep.subr.bf16.mxu0 0
        %4036 = vmatpush1.bf16.msra.mxu0 %v3956
        %4037 = vmatprep.mubr.bf16.mxu0 %v3806
        %4038 = vmatmul.mubr.bf16.gmra.mrb[0].mxu0 %v3799
        %v4039 = vpop.f32.mrb[0].mxu0
        %v4040 = vadd.f32 0.0, %v4039
        %v4041 = vpop.f32.mrb[0].mxu0
        %v4042 = vpop.f32.mrb[0].mxu0
        %v4043 = vpop.f32.mrb[0].mxu0
        %4044 = vdwg.mxu0
        %4045 = vmatprep.subr.bf16.mxu0 0
        %4046 = vmatpush1.bf16.msra.mxu0 %v3957
        %4047 = vmatprep.subr.bf16.mxu0 0
        %4048 = vmatpush1.bf16.msra.mxu0 %v3958
        %4049 = vmatprep.subr.bf16.mxu0 0
        %4050 = vmatpush1.bf16.msra.mxu0 %v3959
        %4051 = vmatprep.subr.bf16.mxu0 0
        %4052 = vmatpush1.bf16.msra.mxu0 %v3960
        %4053 = vmatprep.subr.bf16.mxu0 0
        %4054 = vmatpush1.bf16.msra.mxu0 %v3961
        %4055 = vmatprep.subr.bf16.mxu0 0
        %4056 = vmatpush1.bf16.msra.mxu0 %v3962
        %4057 = vmatprep.subr.bf16.mxu0 0
        %4058 = vmatpush1.bf16.msra.mxu0 %v3963
        %4059 = vmatprep.subr.bf16.mxu0 0
        %4060 = vmatpush1.bf16.msra.mxu0 %v3964
        %4061 = vmatprep.subr.bf16.mxu0 0
        %4062 = vmatpush1.bf16.msra.mxu0 %v3965
        %4063 = vmatprep.subr.bf16.mxu0 0
        %4064 = vmatpush1.bf16.msra.mxu0 %v3966
        %4065 = vmatprep.subr.bf16.mxu0 0
        %4066 = vmatpush1.bf16.msra.mxu0 %v3967
        %4067 = vmatprep.subr.bf16.mxu0 0
        %4068 = vmatpush1.bf16.msra.mxu0 %v3968
        %4069 = vmatprep.subr.bf16.mxu0 0
        %4070 = vmatpush1.bf16.msra.mxu0 %v3969
        %4071 = vmatprep.subr.bf16.mxu0 0
        %4072 = vmatpush1.bf16.msra.mxu0 %v3970
        %4073 = vmatprep.subr.bf16.mxu0 0
        %4074 = vmatpush1.bf16.msra.mxu0 %v3971
        %4075 = vmatprep.subr.bf16.mxu0 0
        %4076 = vmatpush1.bf16.msra.mxu0 %v3972
        %4077 = vmatprep.mubr.bf16.mxu0 %v3808
        %4078 = vmatmul.mubr.bf16.gmra.mrb[0].mxu0 %v3807
        %v4079 = vpop.f32.mrb[0].mxu0
        %v4080 = vadd.f32 %v4040, %v4079
        %v4081 = vpop.f32.mrb[0].mxu0
        %v4082 = vpop.f32.mrb[0].mxu0
        %v4083 = vpop.f32.mrb[0].mxu0
        %4084 = vdwg.mxu0
        %v4085 = vadd.f32 %v3718, %v4080
        %4086 = vst [vmem:[#allocation2] sm:$0x3] %v4085
        // Predicated region
        $region85: #{vgg_lstm_ws_forward.1} parent=55 // pred_check
          %p4087 = pneg %p447
        $region86: #{vgg_lstm_ws_forward.1} parent=55 // pred_check_branch
          %4089 = sbr.rel (%p4087) target = $region88
        $region87: #{vgg_lstm_ws_forward.1} parent=55 // pred_region
          %v4090 = vld [vmem:[#allocation2] sm:$0x3]
          %4091 = vst [vmem:[%s445] sm:$0x3] %v4090
        $region88: #{vgg_lstm_ws_forward.1} parent=55 // pred_fallthru
          _
        %p4092 = scmp.lt.s32.totalorder %s29, 1
        %s4093 = scalar_select %p4092, %s29, 1
        %s4094 = smul.addr %s4093, 2
        %s4095 = scalar_lea.vmem %s9, %s4094
        // Predicated region
        $region89: #{vgg_lstm_ws_forward.1} parent=55 // pred_check
          %p4096 = pneg %p258
        $region90: #{vgg_lstm_ws_forward.1} parent=55 // pred_check_branch
          %4098 = sbr.rel (%p4096) target = $region92
        $region91: #{vgg_lstm_ws_forward.1} parent=55 // pred_region
          _
        $region92: #{vgg_lstm_ws_forward.1} parent=55 // pred_fallthru
          _
      $region56: #{vgg_lstm_ws_forward.1} parent=5 // pred_fallthru
        _
      %p4099 = scmp.le.s32.totalorder 2, %s20
      // Predicated region
      $region93: #{vgg_lstm_ws_forward.1} parent=5 // pred_check
        %p4100 = pneg %p4099
      $region94: #{vgg_lstm_ws_forward.1} parent=5 // pred_check_branch
        %4102 = sbr.rel (%p4100) target = $region96
      $region95: #{vgg_lstm_ws_forward.1} parent=5 // pred_region
        %s4103 = ssub.s32 %s20, 2
        // Predicated region
        $region97: #{vgg_lstm_ws_forward.1} parent=95 // pred_check
          %p4104 = pneg %p264
        $region98: #{vgg_lstm_ws_forward.1} parent=95 // pred_check_branch
          %4106 = sbr.rel (%p4104) target = $region100
        $region99: #{vgg_lstm_ws_forward.1} parent=95 // pred_region
          %p4107 = scmp.lt.s32.totalorder %s31, 1
          %s4108 = scalar_select %p4107, %s31, 1
          %s4109 = smul.addr %s4108, 2
          %s4110 = scalar_lea.vmem %s9, %s4109
        $region100: #{vgg_lstm_ws_forward.1} parent=95 // pred_fallthru
          _
      $region96: #{vgg_lstm_ws_forward.1} parent=5 // pred_fallthru
        _
    $region6: #{vgg_lstm_ws_forward.1} parent=1 // loop_footer
      %s24 = sadd.s32 1, %s20
    $region7: #{vgg_lstm_ws_forward.1} parent=1 // loop_footer_branch
      %19 = sbr.rel target = $region3
    $region8: #{vgg_lstm_ws_forward.1} parent=1 // loop_exit
      _
    %4111 = vsyncpa [#allocation4], 1
    %s4112 = scalar_lea.sflag [#allocation4], 1
    %4113 = vsyncpa %s4112, 1
    %4114 = vsyncpa [#allocation6], 1
    %4115 = vsyncpa [#allocation9], 1
    %s4116 = scalar_lea.sflag [#allocation9], 1
    %4117 = vsyncpa %s4116, 1

</llo_original>
